<compile_context>
chip_gen: v5e
topology: v5e:2x2
jax: 0.10.0
libtpu: 0.0.40
codegen_flags: <defaults>
</compile_context>

<pallas_src>
import math

import jax
import jax.numpy as jnp
from jax.experimental import pallas as pl
from jax.experimental.pallas import tpu as pltpu


_HIDDEN = (128, 256, 512, 1024)


def _generator_mlp_kernel(z_ref,
                          w1_ref, b1_ref, w2_ref, b2_ref, w3_ref, b3_ref,
                          w4_ref, b4_ref, w5_ref, b5_ref,
                          o_ref, h_ref):
    """Fused forward over one (batch_tile, out_feature_tile) grid cell."""
    j = pl.program_id(1)          # out-feature tile index

    # Hidden trunk depends only on the batch tile: compute once per batch tile
    # and hold it in VMEM scratch for every output tile.
    @pl.when(j == 0)
    def _():
        h = z_ref[...].astype(jnp.float32)
        for w_ref, b_ref in ((w1_ref, b1_ref), (w2_ref, b2_ref),
                             (w3_ref, b3_ref), (w4_ref, b4_ref)):
            # bf16 operands on the MXU, f32 accumulation, f32 bias add.
            y = jnp.dot(h.astype(jnp.bfloat16), w_ref[...],
                        preferred_element_type=jnp.float32) + b_ref[...]
            h = jnp.maximum(y, 0.2 * y)            # LeakyReLU(0.2): mul + max
        h_ref[...] = h

    # Final Linear (N-tiled) + Tanh, emitted in the (narrow) output dtype.
    y = jnp.dot(h_ref[...].astype(jnp.bfloat16), w5_ref[...],
                preferred_element_type=jnp.float32) + b5_ref[...]
    o_ref[...] = jnp.tanh(y).astype(o_ref.dtype)


def generator_mlp_forward(z, params, img_shape, out_dtype=jnp.bfloat16):
    """z: (B, latent_dim) -> img: (B, *img_shape), whole forward in one kernel."""
    B, latent_dim = z.shape
    out_f = math.prod(img_shape)

    # ---- batch tiling: TILE_B multiple of 16 so bf16 LHS fills packed vregs.
    tile_b = 256 if B >= 256 else max(16, -(-B // 16) * 16)
    b_pad = -(-B // tile_b) * tile_b
    if b_pad != B:
        z = jnp.concatenate(
            [z, jnp.zeros((b_pad - B, latent_dim), z.dtype)], axis=0)
    num_b_tiles = b_pad // tile_b

    # ---- final-layer N tiling (mandatory for big img_shape on v7x 64 MiB VMEM).
    tile_n = out_f
    if out_f > 2048:
        for cand in (2048, 1024, 512, 256, 128):
            if out_f % cand == 0:
                tile_n = cand
                break
        # TODO(synk): if out_f > 2048 and not a multiple of 128, fall back to
        # a padded final layer instead of keeping it fully resident.
    num_n_tiles = out_f // tile_n

    flat_params = [t for wb in params for t in wb]   # w1,b1,...,w5,b5
    dims = (latent_dim,) + _HIDDEN

    # ---- BlockSpecs: z/out move with the grid, weights/biases are pinned.
    in_specs = [pl.BlockSpec((tile_b, latent_dim), lambda i, j: (i, 0))]
    for in_f, out_feat in zip(dims[:-1], dims[1:]):
        in_specs.append(pl.BlockSpec((in_f, out_feat), lambda i, j: (0, 0)))
        in_specs.append(pl.BlockSpec((1, out_feat), lambda i, j: (0, 0)))
    in_specs.append(pl.BlockSpec((_HIDDEN[-1], tile_n), lambda i, j: (0, j)))
    in_specs.append(pl.BlockSpec((1, tile_n), lambda i, j: (0, j)))
    out_spec = pl.BlockSpec((tile_b, tile_n), lambda i, j: (i, j))

    # ---- scheduler hint.
    layer_dims = list(zip(dims, _HIDDEN + (out_f,)))
    flops = 2 * b_pad * sum(i * o for i, o in layer_dims)
    weight_bytes = sum(int(t.size) * t.dtype.itemsize for t in flat_params)
    out_itemsize = jnp.dtype(out_dtype).itemsize
    bytes_accessed = (weight_bytes
                      + int(z.size) * z.dtype.itemsize
                      + b_pad * out_f * out_itemsize)
    cost = pl.CostEstimate(flops=flops,
                           transcendentals=b_pad * out_f,
                           bytes_accessed=bytes_accessed)

    # ---- explicit VMEM budget with headroom (capped at v7x's 64 MiB physical).
    vmem_est = 2 * (tile_b * latent_dim * 4
                    + tile_b * tile_n * out_itemsize
                    + sum(i * o * 2 + o * 4 for i, o in zip(dims[:-1], dims[1:]))
                    + _HIDDEN[-1] * tile_n * 2 + tile_n * 4)
    vmem_est += tile_b * _HIDDEN[-1] * 4             # hidden-trunk scratch
    vmem_limit = int(min(max(2 * vmem_est, 32 * 2**20), 64 * 2**20))

    out = pl.pallas_call(
        _generator_mlp_kernel,
        out_shape=jax.ShapeDtypeStruct((b_pad, out_f), out_dtype),
        grid_spec=pltpu.PrefetchScalarGridSpec(
            num_scalar_prefetch=0,
            grid=(num_b_tiles, num_n_tiles),
            in_specs=in_specs,
            out_specs=out_spec,
            scratch_shapes=[pltpu.VMEM((tile_b, _HIDDEN[-1]), jnp.float32)]),
        compiler_params=pltpu.CompilerParams(
            dimension_semantics=("parallel", "arbitrary"),
            vmem_limit_bytes=vmem_limit),
        cost_estimate=cost,
    )(z, *flat_params)

    return out[:B].reshape((B,) + tuple(img_shape))


def init_linear_params(key, in_f, out_f):
    """Mimics torch.nn.Linear default init (uniform +-1/sqrt(in_f)).

    Weight stored as (in_f, out_f) in bf16 (forward is x @ W == torch x @ W.T);
    bias stored as a (1, out_f) f32 row so no per-call reshape is needed.
    """
    kw, kb = jax.random.split(key)
    bound = 1.0 / math.sqrt(in_f)
    w = jax.random.uniform(kw, (in_f, out_f), jnp.float32, -bound, bound)
    b = jax.random.uniform(kb, (out_f,), jnp.float32, -bound, bound)
    return w.astype(jnp.bfloat16), b.reshape(1, out_f)


def make_generator_mlp_params(key, latent_dim, img_shape):
    dims = [latent_dim, *_HIDDEN, math.prod(img_shape)]
    keys = jax.random.split(key, len(dims) - 1)
    return [init_linear_params(k, i, o)
            for k, i, o in zip(keys, dims[:-1], dims[1:])]


def generator_mlp_reference(z, params, img_shape):
    """Pure-JAX f32 reference (same stored bf16 weights, f32 math)."""
    h = z.astype(jnp.float32)
    for w, b in params[:4]:
        h = h @ w.astype(jnp.float32) + b
        h = jnp.where(h > 0, h, 0.2 * h)
    w, b = params[4]
    h = jnp.tanh(h @ w.astype(jnp.float32) + b)
    return h.reshape((h.shape[0],) + tuple(img_shape))


if __name__ == "__main__":
    key = jax.random.PRNGKey(0)
    k_param, k_z = jax.random.split(key)

    batch = 2
    latent_dim = 32
    img_shape = (1, 16, 16)  # (C, H, W) -> output (B, 1, 16, 16), NCHW

    params = make_generator_mlp_params(k_param, latent_dim, img_shape)
    z = jax.random.normal(k_z, (batch, latent_dim), dtype=jnp.float32)

    img = jax.block_until_ready(generator_mlp_forward(z, params, img_shape))
    ref = generator_mlp_reference(z, params, img_shape)

    assert img.shape == (batch,) + img_shape, img.shape
    # bf16 activations inside the kernel + bf16 output -> loose tolerance.
    diff = jnp.max(jnp.abs(img.astype(jnp.float32) - ref))
    assert jnp.allclose(img.astype(jnp.float32), ref, atol=4e-2, rtol=4e-2), (
        f"mismatch vs reference, max abs diff = {float(diff)}")

    print("KERNEL_OK")
</pallas_src>

<mosaic_0001>
module attributes {stable_mosaic.version = 11 : i64} {
  func.func @_generator_mlp_kernel(%arg0: i32, %arg1: i32, %arg2: memref<16x32xf32, #tpu.memory_space<vmem>>, %arg3: memref<32x128xbf16, #tpu.memory_space<vmem>>, %arg4: memref<1x128xf32, #tpu.memory_space<vmem>>, %arg5: memref<128x256xbf16, #tpu.memory_space<vmem>>, %arg6: memref<1x256xf32, #tpu.memory_space<vmem>>, %arg7: memref<256x512xbf16, #tpu.memory_space<vmem>>, %arg8: memref<1x512xf32, #tpu.memory_space<vmem>>, %arg9: memref<512x1024xbf16, #tpu.memory_space<vmem>>, %arg10: memref<1x1024xf32, #tpu.memory_space<vmem>>, %arg11: memref<1024x256xbf16, #tpu.memory_space<vmem>>, %arg12: memref<1x256xf32, #tpu.memory_space<vmem>>, %arg13: memref<16x256xbf16, #tpu.memory_space<vmem>>, %arg14: memref<16x1024xf32, #tpu.memory_space<vmem>>) attributes {dimension_semantics = [#tpu.dimension_semantics<parallel>, #tpu.dimension_semantics<arbitrary>], iteration_bounds = array<i64: 1, 1>, scalar_prefetch = 0 : i64, scratch_operands = 1 : i64, tpu.core_type = #tpu.core_type<tc>, window_params = [{transform_indices = @transform_0, window_bounds = array<i64: 16, 32>}, {pipeline_mode = #tpu.pipeline_mode<synchronous>, transform_indices = @transform_1, window_bounds = array<i64: 32, 128>}, {pipeline_mode = #tpu.pipeline_mode<synchronous>, transform_indices = @transform_2, window_bounds = array<i64: 1, 128>}, {pipeline_mode = #tpu.pipeline_mode<synchronous>, transform_indices = @transform_3, window_bounds = array<i64: 128, 256>}, {pipeline_mode = #tpu.pipeline_mode<synchronous>, transform_indices = @transform_4, window_bounds = array<i64: 1, 256>}, {pipeline_mode = #tpu.pipeline_mode<synchronous>, transform_indices = @transform_5, window_bounds = array<i64: 256, 512>}, {pipeline_mode = #tpu.pipeline_mode<synchronous>, transform_indices = @transform_6, window_bounds = array<i64: 1, 512>}, {pipeline_mode = #tpu.pipeline_mode<synchronous>, transform_indices = @transform_7, window_bounds = array<i64: 512, 1024>}, {pipeline_mode = #tpu.pipeline_mode<synchronous>, transform_indices = @transform_8, window_bounds = array<i64: 1, 1024>}, {transform_indices = @transform_9, window_bounds = array<i64: 1024, 256>}, {transform_indices = @transform_10, window_bounds = array<i64: 1, 256>}, {transform_indices = @transform_11, window_bounds = array<i64: 16, 256>}]} {
    %c0_i32 = arith.constant 0 : i32
    %0 = arith.cmpi eq, %arg1, %c0_i32 : i32
    %1 = arith.extui %0 : i1 to i32
    %c0_i32_0 = arith.constant 0 : i32
    %2 = arith.cmpi ne, %1, %c0_i32_0 : i32
    scf.if %2 {
      %c0_8 = arith.constant 0 : index
      %c0_9 = arith.constant 0 : index
      %13 = vector.load %arg2[%c0_8, %c0_9] : memref<16x32xf32, #tpu.memory_space<vmem>>, vector<16x32xf32>
      %14 = arith.truncf %13 : vector<16x32xf32> to vector<16x32xbf16>
      %c0_10 = arith.constant 0 : index
      %c0_11 = arith.constant 0 : index
      %15 = vector.load %arg3[%c0_10, %c0_11] : memref<32x128xbf16, #tpu.memory_space<vmem>>, vector<32x128xbf16>
      %cst_12 = arith.constant dense<0.000000e+00> : vector<16x128xf32>
      %16 = tpu.matmul %14, %15, %cst_12 {dimension_numbers = #tpu.dot_dimension_numbers<[1], [0], [0], [1], [0, 0, 1, 1], [], []>} : vector<16x32xbf16>, vector<32x128xbf16>, vector<16x128xf32> -> vector<16x128xf32>
      %c0_13 = arith.constant 0 : index
      %c0_14 = arith.constant 0 : index
      %17 = vector.load %arg4[%c0_13, %c0_14] : memref<1x128xf32, #tpu.memory_space<vmem>>, vector<1x128xf32>
      %18 = vector.broadcast %17 : vector<1x128xf32> to vector<16x128xf32>
      %19 = arith.addf %16, %18 : vector<16x128xf32>
      %cst_15 = arith.constant 2.000000e-01 : f32
      %20 = vector.broadcast %cst_15 : f32 to vector<16x128xf32>
      %21 = arith.mulf %20, %19 : vector<16x128xf32>
      %22 = arith.maximumf %19, %21 : vector<16x128xf32>
      %23 = arith.truncf %22 : vector<16x128xf32> to vector<16x128xbf16>
      %c0_16 = arith.constant 0 : index
      %c0_17 = arith.constant 0 : index
      %24 = vector.load %arg5[%c0_16, %c0_17] : memref<128x256xbf16, #tpu.memory_space<vmem>>, vector<128x256xbf16>
      %cst_18 = arith.constant dense<0.000000e+00> : vector<16x256xf32>
      %25 = tpu.matmul %23, %24, %cst_18 {dimension_numbers = #tpu.dot_dimension_numbers<[1], [0], [0], [1], [0, 0, 1, 1], [], []>} : vector<16x128xbf16>, vector<128x256xbf16>, vector<16x256xf32> -> vector<16x256xf32>
      %c0_19 = arith.constant 0 : index
      %c0_20 = arith.constant 0 : index
      %26 = vector.load %arg6[%c0_19, %c0_20] : memref<1x256xf32, #tpu.memory_space<vmem>>, vector<1x256xf32>
      %27 = vector.broadcast %26 : vector<1x256xf32> to vector<16x256xf32>
      %28 = arith.addf %25, %27 : vector<16x256xf32>
      %cst_21 = arith.constant 2.000000e-01 : f32
      %29 = vector.broadcast %cst_21 : f32 to vector<16x256xf32>
      %30 = arith.mulf %29, %28 : vector<16x256xf32>
      %31 = arith.maximumf %28, %30 : vector<16x256xf32>
      %32 = arith.truncf %31 : vector<16x256xf32> to vector<16x256xbf16>
      %c0_22 = arith.constant 0 : index
      %c0_23 = arith.constant 0 : index
      %33 = vector.load %arg7[%c0_22, %c0_23] : memref<256x512xbf16, #tpu.memory_space<vmem>>, vector<256x512xbf16>
      %cst_24 = arith.constant dense<0.000000e+00> : vector<16x512xf32>
      %34 = tpu.matmul %32, %33, %cst_24 {dimension_numbers = #tpu.dot_dimension_numbers<[1], [0], [0], [1], [0, 0, 1, 1], [], []>} : vector<16x256xbf16>, vector<256x512xbf16>, vector<16x512xf32> -> vector<16x512xf32>
      %c0_25 = arith.constant 0 : index
      %c0_26 = arith.constant 0 : index
      %35 = vector.load %arg8[%c0_25, %c0_26] : memref<1x512xf32, #tpu.memory_space<vmem>>, vector<1x512xf32>
      %36 = vector.broadcast %35 : vector<1x512xf32> to vector<16x512xf32>
      %37 = arith.addf %34, %36 : vector<16x512xf32>
      %cst_27 = arith.constant 2.000000e-01 : f32
      %38 = vector.broadcast %cst_27 : f32 to vector<16x512xf32>
      %39 = arith.mulf %38, %37 : vector<16x512xf32>
      %40 = arith.maximumf %37, %39 : vector<16x512xf32>
      %41 = arith.truncf %40 : vector<16x512xf32> to vector<16x512xbf16>
      %c0_28 = arith.constant 0 : index
      %c0_29 = arith.constant 0 : index
      %42 = vector.load %arg9[%c0_28, %c0_29] : memref<512x1024xbf16, #tpu.memory_space<vmem>>, vector<512x1024xbf16>
      %cst_30 = arith.constant dense<0.000000e+00> : vector<16x1024xf32>
      %43 = tpu.matmul %41, %42, %cst_30 {dimension_numbers = #tpu.dot_dimension_numbers<[1], [0], [0], [1], [0, 0, 1, 1], [], []>} : vector<16x512xbf16>, vector<512x1024xbf16>, vector<16x1024xf32> -> vector<16x1024xf32>
      %c0_31 = arith.constant 0 : index
      %c0_32 = arith.constant 0 : index
      %44 = vector.load %arg10[%c0_31, %c0_32] : memref<1x1024xf32, #tpu.memory_space<vmem>>, vector<1x1024xf32>
      %45 = vector.broadcast %44 : vector<1x1024xf32> to vector<16x1024xf32>
      %46 = arith.addf %43, %45 : vector<16x1024xf32>
      %cst_33 = arith.constant 2.000000e-01 : f32
      %47 = vector.broadcast %cst_33 : f32 to vector<16x1024xf32>
      %48 = arith.mulf %47, %46 : vector<16x1024xf32>
      %49 = arith.maximumf %46, %48 : vector<16x1024xf32>
      %c0_34 = arith.constant 0 : index
      %c0_35 = arith.constant 0 : index
      %50 = vector.load %arg14[%c0_34, %c0_35] : memref<16x1024xf32, #tpu.memory_space<vmem>>, vector<16x1024xf32>
      tpu.vector_store %arg14[%c0_34, %c0_35], %49 {strides = array<i32>} : memref<16x1024xf32, #tpu.memory_space<vmem>>, vector<16x1024xf32>,
    } else {
    }
    %c0 = arith.constant 0 : index
    %c0_1 = arith.constant 0 : index
    %3 = vector.load %arg14[%c0, %c0_1] : memref<16x1024xf32, #tpu.memory_space<vmem>>, vector<16x1024xf32>
    %4 = arith.truncf %3 : vector<16x1024xf32> to vector<16x1024xbf16>
    %c0_2 = arith.constant 0 : index
    %c0_3 = arith.constant 0 : index
    %5 = vector.load %arg11[%c0_2, %c0_3] : memref<1024x256xbf16, #tpu.memory_space<vmem>>, vector<1024x256xbf16>
    %cst = arith.constant dense<0.000000e+00> : vector<16x256xf32>
    %6 = tpu.matmul %4, %5, %cst {dimension_numbers = #tpu.dot_dimension_numbers<[1], [0], [0], [1], [0, 0, 1, 1], [], []>} : vector<16x1024xbf16>, vector<1024x256xbf16>, vector<16x256xf32> -> vector<16x256xf32>
    %c0_4 = arith.constant 0 : index
    %c0_5 = arith.constant 0 : index
    %7 = vector.load %arg12[%c0_4, %c0_5] : memref<1x256xf32, #tpu.memory_space<vmem>>, vector<1x256xf32>
    %8 = vector.broadcast %7 : vector<1x256xf32> to vector<16x256xf32>
    %9 = arith.addf %6, %8 : vector<16x256xf32>
    %10 = math.tanh %9 : vector<16x256xf32>
    %11 = arith.truncf %10 : vector<16x256xf32> to vector<16x256xbf16>
    %c0_6 = arith.constant 0 : index
    %c0_7 = arith.constant 0 : index
    %12 = vector.load %arg13[%c0_6, %c0_7] : memref<16x256xbf16, #tpu.memory_space<vmem>>, vector<16x256xbf16>
    tpu.vector_store %arg13[%c0_6, %c0_7], %11 {strides = array<i32>} : memref<16x256xbf16, #tpu.memory_space<vmem>>, vector<16x256xbf16>,
    return
  }
  func.func @transform_0(%arg0: i32, %arg1: i32) -> (i32, i32) {
    %c0_i32 = arith.constant 0 : i32
    %c0_i32_0 = arith.constant 0 : i32
    return %arg0, %c0_i32 : i32, i32
  }
  func.func @transform_1(%arg0: i32, %arg1: i32) -> (i32, i32) {
    %c0_i32 = arith.constant 0 : i32
    %c0_i32_0 = arith.constant 0 : i32
    %c0_i32_1 = arith.constant 0 : i32
    return %c0_i32, %c0_i32_0 : i32, i32
  }
  func.func @transform_2(%arg0: i32, %arg1: i32) -> (i32, i32) {
    %c0_i32 = arith.constant 0 : i32
    %c0_i32_0 = arith.constant 0 : i32
    %c0_i32_1 = arith.constant 0 : i32
    return %c0_i32, %c0_i32_0 : i32, i32
  }
  func.func @transform_3(%arg0: i32, %arg1: i32) -> (i32, i32) {
    %c0_i32 = arith.constant 0 : i32
    %c0_i32_0 = arith.constant 0 : i32
    %c0_i32_1 = arith.constant 0 : i32
    return %c0_i32, %c0_i32_0 : i32, i32
  }
  func.func @transform_4(%arg0: i32, %arg1: i32) -> (i32, i32) {
    %c0_i32 = arith.constant 0 : i32
    %c0_i32_0 = arith.constant 0 : i32
    %c0_i32_1 = arith.constant 0 : i32
    return %c0_i32, %c0_i32_0 : i32, i32
  }
  func.func @transform_5(%arg0: i32, %arg1: i32) -> (i32, i32) {
    %c0_i32 = arith.constant 0 : i32
    %c0_i32_0 = arith.constant 0 : i32
    %c0_i32_1 = arith.constant 0 : i32
    return %c0_i32, %c0_i32_0 : i32, i32
  }
  func.func @transform_6(%arg0: i32, %arg1: i32) -> (i32, i32) {
    %c0_i32 = arith.constant 0 : i32
    %c0_i32_0 = arith.constant 0 : i32
    %c0_i32_1 = arith.constant 0 : i32
    return %c0_i32, %c0_i32_0 : i32, i32
  }
  func.func @transform_7(%arg0: i32, %arg1: i32) -> (i32, i32) {
    %c0_i32 = arith.constant 0 : i32
    %c0_i32_0 = arith.constant 0 : i32
    %c0_i32_1 = arith.constant 0 : i32
    return %c0_i32, %c0_i32_0 : i32, i32
  }
  func.func @transform_8(%arg0: i32, %arg1: i32) -> (i32, i32) {
    %c0_i32 = arith.constant 0 : i32
    %c0_i32_0 = arith.constant 0 : i32
    %c0_i32_1 = arith.constant 0 : i32
    return %c0_i32, %c0_i32_0 : i32, i32
  }
  func.func @transform_9(%arg0: i32, %arg1: i32) -> (i32, i32) {
    %c0_i32 = arith.constant 0 : i32
    %c0_i32_0 = arith.constant 0 : i32
    return %c0_i32, %arg1 : i32, i32
  }
  func.func @transform_10(%arg0: i32, %arg1: i32) -> (i32, i32) {
    %c0_i32 = arith.constant 0 : i32
    %c0_i32_0 = arith.constant 0 : i32
    return %c0_i32, %arg1 : i32, i32
  }
  func.func @transform_11(%arg0: i32, %arg1: i32) -> (i32, i32) {
    %c0_i32 = arith.constant 0 : i32
    return %arg0, %arg1 : i32, i32
  }
}

</mosaic_0001>

<llo_original>
// kernel: tpu_custom_call.1
$region0: #{tpu_custom_call.1}
  #allocation0 [shape = 'u32[]', space=smem, size = 0x4, offset = 0x4, fixed_abs, tag = 'smem constant byte address 0x4 - core index']
  #allocation1 [shape = 'u32[72,128]{1,0:T(1,128)}', space=vmem, size = 0x9000, scoped, tag = 'internal scratch']
  #allocation2 [shape = 'f32[16,1024]{1,0:T(8,128)}', space=vmem, size = 0x10000, scoped, tag = 'scratch operand']
  %s0 = inlined_call_operand.hbm [shape: f32[16,32], index: 0, kind: input, shape index: {}]
  %s1 = inlined_call_operand.hbm [shape: bf16[32,128], index: 1, kind: input, shape index: {}]
  %s2 = inlined_call_operand.hbm [shape: f32[1,128], index: 2, kind: input, shape index: {}]
  %s3 = inlined_call_operand.hbm [shape: bf16[128,256], index: 3, kind: input, shape index: {}]
  %s4 = inlined_call_operand.hbm [shape: f32[1,256], index: 4, kind: input, shape index: {}]
  %s5 = inlined_call_operand.hbm [shape: bf16[256,512], index: 5, kind: input, shape index: {}]
  %s6 = inlined_call_operand.vmem [shape: f32[1,512], index: 6, kind: input, shape index: {}]
  %s7 = inlined_call_operand.hbm [shape: bf16[512,1024], index: 7, kind: input, shape index: {}]
  %s8 = inlined_call_operand.hbm [shape: f32[1,1024], index: 8, kind: input, shape index: {}]
  %s9 = inlined_call_operand.hbm [shape: bf16[1024,256], index: 9, kind: input, shape index: {}]
  %s10 = inlined_call_operand.vmem [shape: f32[1,256], index: 10, kind: input, shape index: {}]
  %s11 = inlined_call_operand.hbm [shape: bf16[16,256], index: 11, kind: output, shape index: {}]
  %s12 = sld [smem:[#allocation0]]
  $region94: #{tpu_custom_call.1} parent=0
    _
  %s14 = ssub.s32 1, %s12
  %s15 = scalar_select 0, %s14, %s12
  $region1: #{tpu_custom_call.1} parent=0
    #allocation3 [shape = 'u8[8192]{0}', space=vmem, size = 0x2000, scoped, tag = 'input window, operand 0, single buffered']
    #allocation4 [shape = 's32[1]{0}', space=sflag, size = 0x4, scoped, tag = 'scoped memory for tpu_custom_call.1']
    #allocation5 [shape = 's32[1]{0}', space=sflag, size = 0x4, scoped, tag = 'scoped memory for tpu_custom_call.1']
    #allocation6 [shape = 'u8[8192]{0}', space=vmem, size = 0x2000, scoped, tag = 'input window, operand 1, single buffered']
    #allocation7 [shape = 's32[1]{0}', space=sflag, size = 0x4, scoped, tag = 'scoped memory for tpu_custom_call.1']
    #allocation8 [shape = 'u8[512]{0}', space=vmem, size = 0x400, scoped, tag = 'input window, operand 2, single buffered']
    #allocation9 [shape = 'u8[65536]{0}', space=vmem, size = 0x10000, scoped, tag = 'input window, operand 3, single buffered']
    #allocation10 [shape = 's32[1]{0}', space=sflag, size = 0x4, scoped, tag = 'scoped memory for tpu_custom_call.1']
    #allocation11 [shape = 'u8[1024]{0}', space=vmem, size = 0x400, scoped, tag = 'input window, operand 4, single buffered']
    #allocation12 [shape = 'u8[262144]{0}', space=vmem, size = 0x40000, scoped, tag = 'input window, operand 5, single buffered']
    #allocation13 [shape = 's32[1]{0}', space=sflag, size = 0x4, scoped, tag = 'scoped memory for tpu_custom_call.1']
    #allocation14 [shape = 'u8[1048576]{0}', space=vmem, size = 0x100000, scoped, tag = 'input window, operand 7, single buffered']
    #allocation15 [shape = 'u8[4096]{0}', space=vmem, size = 0x1000, scoped, tag = 'input window, operand 8, single buffered']
    #allocation16 [shape = 's32[1]{0}', space=sflag, size = 0x4, scoped, tag = 'scoped memory for tpu_custom_call.1']
    #allocation17 [shape = 'u8[524288]{0}', space=vmem, size = 0x80000, scoped, tag = 'input window, operand 9, single buffered']
    #allocation18 [shape = 'u8[8192]{0}', space=vmem, size = 0x2000, scoped, tag = 'output window, operand 0, single buffered']
    %16 = vsyncpa [#allocation4], 0
    %17 = vsyncpa [#allocation7], 0
    %18 = vsyncpa [#allocation10], 0
    %19 = vsyncpa [#allocation13], 0
    %20 = vsyncpa [#allocation16], 0
    %21 = vsyncpa [#allocation5], 0
    // Predicated region
    $region2: #{tpu_custom_call.1} parent=1 // pred_check
      _
    $region3: #{tpu_custom_call.1} parent=1 // pred_check_branch
      %23 = sbr.rel (0) target = $region5
    $region4: #{tpu_custom_call.1} parent=1 // pred_region
      %25 = vsyncadd [#allocation4], 0
      %s26 = sshll.u32 %s0, 4
      %s27 = int_to_ptr.hbm [resolvable:$true] %s26
      %s28 = sshll.u32 [#allocation3], 4
      %s29 = int_to_ptr.vmem [resolvable:$true] %s28
      %34 = dma.hbm_to_vmem [thread:$0]  %s27, 256, %s29, [#allocation4], 128, 128, 8
    $region5: #{tpu_custom_call.1} parent=1 // pred_fallthru
      _
    // Predicated region
    $region6: #{tpu_custom_call.1} parent=1 // pred_check
      _
    $region7: #{tpu_custom_call.1} parent=1 // pred_check_branch
      %36 = sbr.rel (0) target = $region9
    $region8: #{tpu_custom_call.1} parent=1 // pred_region
      %38 = vsyncadd [#allocation7], 0
      %s39 = sshll.u32 %s1, 4
      %s40 = int_to_ptr.hbm [resolvable:$true] %s39
      %s41 = sshll.u32 [#allocation6], 4
      %s42 = int_to_ptr.vmem [resolvable:$true] %s41
      %47 = dma.hbm_to_vmem [thread:$0]  %s40, 256, %s42, [#allocation7], 64, 64, 4
    $region9: #{tpu_custom_call.1} parent=1 // pred_fallthru
      _
    // Predicated region
    $region10: #{tpu_custom_call.1} parent=1 // pred_check
      _
    $region11: #{tpu_custom_call.1} parent=1 // pred_check_branch
      %49 = sbr.rel (0) target = $region13
    $region12: #{tpu_custom_call.1} parent=1 // pred_region
      %51 = vsyncadd [#allocation7], 0
      %s53 = sshll.u32 %s2, 4
      %s54 = int_to_ptr.hbm [resolvable:$true] %s53
      %s55 = sshll.u32 [#allocation8], 4
      %s56 = int_to_ptr.vmem [resolvable:$true] %s55
      %58 = dma.hbm_to_vmem [thread:$0]  %s54, 16, %s56, [#allocation7]
    $region13: #{tpu_custom_call.1} parent=1 // pred_fallthru
      _
    // Predicated region
    $region14: #{tpu_custom_call.1} parent=1 // pred_check
      _
    $region15: #{tpu_custom_call.1} parent=1 // pred_check_branch
      %60 = sbr.rel (0) target = $region17
    $region16: #{tpu_custom_call.1} parent=1 // pred_region
      %62 = vsyncadd [#allocation10], 0
      %s63 = sshll.u32 %s3, 4
      %s64 = int_to_ptr.hbm [resolvable:$true] %s63
      %s65 = sshll.u32 [#allocation9], 4
      %s66 = int_to_ptr.vmem [resolvable:$true] %s65
      %71 = dma.hbm_to_vmem [thread:$0]  %s64, 2048, %s66, [#allocation10], 128, 128, 8
    $region17: #{tpu_custom_call.1} parent=1 // pred_fallthru
      _
    // Predicated region
    $region18: #{tpu_custom_call.1} parent=1 // pred_check
      _
    $region19: #{tpu_custom_call.1} parent=1 // pred_check_branch
      %73 = sbr.rel (0) target = $region21
    $region20: #{tpu_custom_call.1} parent=1 // pred_region
      %75 = vsyncadd [#allocation10], 0
      %s77 = sshll.u32 %s4, 4
      %s78 = int_to_ptr.hbm [resolvable:$true] %s77
      %s79 = sshll.u32 [#allocation11], 4
      %s80 = int_to_ptr.vmem [resolvable:$true] %s79
      %82 = dma.hbm_to_vmem [thread:$0]  %s78, 32, %s80, [#allocation10]
    $region21: #{tpu_custom_call.1} parent=1 // pred_fallthru
      _
    // Predicated region
    $region22: #{tpu_custom_call.1} parent=1 // pred_check
      _
    $region23: #{tpu_custom_call.1} parent=1 // pred_check_branch
      %84 = sbr.rel (0) target = $region25
    $region24: #{tpu_custom_call.1} parent=1 // pred_region
      %86 = vsyncadd [#allocation13], 0
      %s87 = sshll.u32 %s5, 4
      %s88 = int_to_ptr.hbm [resolvable:$true] %s87
      %s89 = sshll.u32 [#allocation12], 4
      %s90 = int_to_ptr.vmem [resolvable:$true] %s89
      %95 = dma.hbm_to_vmem [thread:$0]  %s88, 8192, %s90, [#allocation13], 256, 256, 16
    $region25: #{tpu_custom_call.1} parent=1 // pred_fallthru
      _
    // Predicated region
    $region26: #{tpu_custom_call.1} parent=1 // pred_check
      _
    $region27: #{tpu_custom_call.1} parent=1 // pred_check_branch
      %97 = sbr.rel (0) target = $region29
    $region28: #{tpu_custom_call.1} parent=1 // pred_region
      _
    $region29: #{tpu_custom_call.1} parent=1 // pred_fallthru
      _
    // Predicated region
    $region30: #{tpu_custom_call.1} parent=1 // pred_check
      _
    $region31: #{tpu_custom_call.1} parent=1 // pred_check_branch
      %99 = sbr.rel (0) target = $region33
    $region32: #{tpu_custom_call.1} parent=1 // pred_region
      %101 = vsyncadd [#allocation13], 0
      %s102 = sshll.u32 %s7, 4
      %s103 = int_to_ptr.hbm [resolvable:$true] %s102
      %s104 = sshll.u32 [#allocation14], 4
      %s105 = int_to_ptr.vmem [resolvable:$true] %s104
      %110 = dma.hbm_to_vmem [thread:$0]  %s103, 32768, %s105, [#allocation13], 512, 512, 32
    $region33: #{tpu_custom_call.1} parent=1 // pred_fallthru
      _
    // Predicated region
    $region34: #{tpu_custom_call.1} parent=1 // pred_check
      _
    $region35: #{tpu_custom_call.1} parent=1 // pred_check_branch
      %112 = sbr.rel (0) target = $region37
    $region36: #{tpu_custom_call.1} parent=1 // pred_region
      %114 = vsyncadd [#allocation16], 0
      %s116 = sshll.u32 %s8, 4
      %s117 = int_to_ptr.hbm [resolvable:$true] %s116
      %s118 = sshll.u32 [#allocation15], 4
      %s119 = int_to_ptr.vmem [resolvable:$true] %s118
      %121 = dma.hbm_to_vmem [thread:$0]  %s117, 128, %s119, [#allocation16]
    $region37: #{tpu_custom_call.1} parent=1 // pred_fallthru
      _
    // Predicated region
    $region38: #{tpu_custom_call.1} parent=1 // pred_check
      _
    $region39: #{tpu_custom_call.1} parent=1 // pred_check_branch
      %123 = sbr.rel (0) target = $region41
    $region40: #{tpu_custom_call.1} parent=1 // pred_region
      %125 = vsyncadd [#allocation16], 0
      %s126 = sshll.u32 %s9, 4
      %s127 = int_to_ptr.hbm [resolvable:$true] %s126
      %s128 = sshll.u32 [#allocation17], 4
      %s129 = int_to_ptr.vmem [resolvable:$true] %s128
      %134 = dma.hbm_to_vmem [thread:$0]  %s127, 16384, %s129, [#allocation16], 128, 128, 8
    $region41: #{tpu_custom_call.1} parent=1 // pred_fallthru
      _
    // Predicated region
    $region42: #{tpu_custom_call.1} parent=1 // pred_check
      _
    $region43: #{tpu_custom_call.1} parent=1 // pred_check_branch
      %136 = sbr.rel (0) target = $region45
    $region44: #{tpu_custom_call.1} parent=1 // pred_region
      _
    $region45: #{tpu_custom_call.1} parent=1 // pred_fallthru
      _
    // Predicated region
    $region46: #{tpu_custom_call.1} parent=1 // pred_check
      _
    $region47: #{tpu_custom_call.1} parent=1 // pred_check_branch
      %138 = sbr.rel (0) target = $region49
    $region48: #{tpu_custom_call.1} parent=1 // pred_region
      %140 = dma.done [#allocation4], 256
    $region49: #{tpu_custom_call.1} parent=1 // pred_fallthru
      _
    // Predicated region
    $region50: #{tpu_custom_call.1} parent=1 // pred_check
      _
    $region51: #{tpu_custom_call.1} parent=1 // pred_check_branch
      %142 = sbr.rel (0) target = $region53
    $region52: #{tpu_custom_call.1} parent=1 // pred_region
      %144 = dma.done [#allocation7], 256
    $region53: #{tpu_custom_call.1} parent=1 // pred_fallthru
      _
    // Predicated region
    $region54: #{tpu_custom_call.1} parent=1 // pred_check
      _
    $region55: #{tpu_custom_call.1} parent=1 // pred_check_branch
      %146 = sbr.rel (0) target = $region57
    $region56: #{tpu_custom_call.1} parent=1 // pred_region
      %148 = dma.done [#allocation7], 16
    $region57: #{tpu_custom_call.1} parent=1 // pred_fallthru
      _
    // Predicated region
    $region58: #{tpu_custom_call.1} parent=1 // pred_check
      _
    $region59: #{tpu_custom_call.1} parent=1 // pred_check_branch
      %150 = sbr.rel (0) target = $region61
    $region60: #{tpu_custom_call.1} parent=1 // pred_region
      %152 = dma.done [#allocation10], 2048
    $region61: #{tpu_custom_call.1} parent=1 // pred_fallthru
      _
    // Predicated region
    $region62: #{tpu_custom_call.1} parent=1 // pred_check
      _
    $region63: #{tpu_custom_call.1} parent=1 // pred_check_branch
      %154 = sbr.rel (0) target = $region65
    $region64: #{tpu_custom_call.1} parent=1 // pred_region
      %156 = dma.done [#allocation10], 32
    $region65: #{tpu_custom_call.1} parent=1 // pred_fallthru
      _
    // Predicated region
    $region66: #{tpu_custom_call.1} parent=1 // pred_check
      _
    $region67: #{tpu_custom_call.1} parent=1 // pred_check_branch
      %158 = sbr.rel (0) target = $region69
    $region68: #{tpu_custom_call.1} parent=1 // pred_region
      %160 = dma.done [#allocation13], 8192
    $region69: #{tpu_custom_call.1} parent=1 // pred_fallthru
      _
    // Predicated region
    $region70: #{tpu_custom_call.1} parent=1 // pred_check
      _
    $region71: #{tpu_custom_call.1} parent=1 // pred_check_branch
      %162 = sbr.rel (0) target = $region73
    $region72: #{tpu_custom_call.1} parent=1 // pred_region
      %164 = dma.done [#allocation13], 32768
    $region73: #{tpu_custom_call.1} parent=1 // pred_fallthru
      _
    // Predicated region
    $region74: #{tpu_custom_call.1} parent=1 // pred_check
      _
    $region75: #{tpu_custom_call.1} parent=1 // pred_check_branch
      %166 = sbr.rel (0) target = $region77
    $region76: #{tpu_custom_call.1} parent=1 // pred_region
      %168 = dma.done [#allocation16], 128
    $region77: #{tpu_custom_call.1} parent=1 // pred_fallthru
      _
    // Predicated region
    $region78: #{tpu_custom_call.1} parent=1 // pred_check
      _
    $region79: #{tpu_custom_call.1} parent=1 // pred_check_branch
      %170 = sbr.rel (0) target = $region81
    $region80: #{tpu_custom_call.1} parent=1 // pred_region
      %172 = dma.done [#allocation16], 16384
    $region81: #{tpu_custom_call.1} parent=1 // pred_fallthru
      _
    %p174 = scmp.eq.s32.totalorder 0, 0
    // Predicated region
    $region82: #{tpu_custom_call.1} parent=1 // pred_check
      %p175 = pneg %p174
    $region83: #{tpu_custom_call.1} parent=1 // pred_check_branch
      %177 = sbr.rel (%p175) target = $region85
    $region84: #{tpu_custom_call.1} parent=1 // pred_region
      %v178 = vld [vmem:[#allocation3] sm:$0xff]
      %v179 = vld [vmem:[#allocation3 + $0x8] sm:$0xff]
      %v180 = vpack.c.bf16 %v179, %v178
      %v181 = vld [vmem:[#allocation6] sm:$0xf]
      %v182 = vld [vmem:[#allocation6 + $0x4] sm:$0xf]
      %v183 = vld [vmem:[#allocation6 + $0x8] sm:$0xf]
      %v184 = vld [vmem:[#allocation6 + $0xc] sm:$0xf]
      %v185 = vld [vmem:[#allocation8] sm:$0x1]
      %v187 = vperm.slane %v185, 0
      %v193 = vunpack.c.l.b16 %v181
      %v194 = vunpack.c.l.b16 %v182
      %v195 = vunpack.c.l.b16 %v183
      %v196 = vunpack.c.l.b16 %v184
      %v197 = vpack.c.b16 %v194, %v193
      %v198 = vpack.c.b16 %v196, %v195
      %vm201 = vcmask 261120
      %v203 = vsel %vm201, %v180, 0
      %205 = vmatpush.bf16.msra.mxu0 0
      %206 = vmatpush.bf16.msra.mxu0 0
      %207 = vmatpush.bf16.msra.mxu0 0
      %208 = vmatpush.bf16.msra.mxu0 0
      %209 = vmatpush.bf16.msra.mxu0 0
      %210 = vmatpush.bf16.msra.mxu0 0
      %211 = vmatpush.bf16.msra.mxu0 %v198
      %212 = vmatpush.bf16.msra.mxu0 %v197
      %213 = vmatmul.bf16.gmra.mxu0 %v203
      %v214 = vpop.f32.mrf.mxu0
      %v215 = vadd.f32 %v187, %v214
      %v216 = vpop.f32.mrf.mxu0
      %v217 = vadd.f32 %v187, %v216
      %218 = vdwg.mxu0
      %v219 = vmul.f32 %v215, 0.2
      %v220 = vmul.f32 %v217, 0.2
      %v221 = vmax.f32 %v215, %v219
      %v222 = vmax.f32 %v217, %v220
      %v223 = vpack.c.bf16 %v222, %v221
      %v224 = vld [vmem:[#allocation9] sm:$0xff]
      %v225 = vld [vmem:[#allocation9 + $0x8] sm:$0xff]
      %v226 = vld [vmem:[#allocation9 + $0x10] sm:$0xff]
      %v227 = vld [vmem:[#allocation9 + $0x18] sm:$0xff]
      %v228 = vld [vmem:[#allocation9 + $0x20] sm:$0xff]
      %v229 = vld [vmem:[#allocation9 + $0x28] sm:$0xff]
      %v230 = vld [vmem:[#allocation9 + $0x30] sm:$0xff]
      %v231 = vld [vmem:[#allocation9 + $0x38] sm:$0xff]
      %v232 = vld [vmem:[#allocation9 + $0x40] sm:$0xff]
      %v233 = vld [vmem:[#allocation9 + $0x48] sm:$0xff]
      %v234 = vld [vmem:[#allocation9 + $0x50] sm:$0xff]
      %v235 = vld [vmem:[#allocation9 + $0x58] sm:$0xff]
      %v236 = vld [vmem:[#allocation9 + $0x60] sm:$0xff]
      %v237 = vld [vmem:[#allocation9 + $0x68] sm:$0xff]
      %v238 = vld [vmem:[#allocation9 + $0x70] sm:$0xff]
      %v239 = vld [vmem:[#allocation9 + $0x78] sm:$0xff]
      %v240 = vld [vmem:[#allocation11] sm:$0x3]
      %v242 = vperm.slane %v240, 0
      %v243 = vperm.slane %v240, 1
      %v262 = vunpack.c.l.b16 %v224
      %v263 = vunpack.c.h.b16 %v224
      %v264 = vunpack.c.l.b16 %v225
      %v265 = vunpack.c.h.b16 %v225
      %v266 = vunpack.c.l.b16 %v226
      %v267 = vunpack.c.h.b16 %v226
      %v268 = vunpack.c.l.b16 %v227
      %v269 = vunpack.c.h.b16 %v227
      %v270 = vunpack.c.l.b16 %v228
      %v271 = vunpack.c.h.b16 %v228
      %v272 = vunpack.c.l.b16 %v229
      %v273 = vunpack.c.h.b16 %v229
      %v274 = vunpack.c.l.b16 %v230
      %v275 = vunpack.c.h.b16 %v230
      %v276 = vunpack.c.l.b16 %v231
      %v277 = vunpack.c.h.b16 %v231
      %v278 = vunpack.c.l.b16 %v232
      %v279 = vunpack.c.h.b16 %v232
      %v280 = vunpack.c.l.b16 %v233
      %v281 = vunpack.c.h.b16 %v233
      %v282 = vunpack.c.l.b16 %v234
      %v283 = vunpack.c.h.b16 %v234
      %v284 = vunpack.c.l.b16 %v235
      %v285 = vunpack.c.h.b16 %v235
      %v286 = vunpack.c.l.b16 %v236
      %v287 = vunpack.c.h.b16 %v236
      %v288 = vunpack.c.l.b16 %v237
      %v289 = vunpack.c.h.b16 %v237
      %v290 = vunpack.c.l.b16 %v238
      %v291 = vunpack.c.h.b16 %v238
      %v292 = vunpack.c.l.b16 %v239
      %v293 = vunpack.c.h.b16 %v239
      %v294 = vpack.c.b16 %v264, %v262
      %v295 = vpack.c.b16 %v265, %v263
      %v296 = vpack.c.b16 %v268, %v266
      %v297 = vpack.c.b16 %v269, %v267
      %v298 = vpack.c.b16 %v272, %v270
      %v299 = vpack.c.b16 %v273, %v271
      %v300 = vpack.c.b16 %v276, %v274
      %v301 = vpack.c.b16 %v277, %v275
      %v302 = vpack.c.b16 %v280, %v278
      %v303 = vpack.c.b16 %v281, %v279
      %v304 = vpack.c.b16 %v284, %v282
      %v305 = vpack.c.b16 %v285, %v283
      %v306 = vpack.c.b16 %v288, %v286
      %v307 = vpack.c.b16 %v289, %v287
      %v308 = vpack.c.b16 %v292, %v290
      %v309 = vpack.c.b16 %v293, %v291
      %326 = vmatpush.bf16.msra.mxu0 %v308
      %327 = vmatpush.bf16.msra.mxu0 %v306
      %328 = vmatpush.bf16.msra.mxu0 %v304
      %329 = vmatpush.bf16.msra.mxu0 %v302
      %330 = vmatpush.bf16.msra.mxu0 %v300
      %331 = vmatpush.bf16.msra.mxu0 %v298
      %332 = vmatpush.bf16.msra.mxu0 %v296
      %333 = vmatpush.bf16.msra.mxu0 %v294
      %334 = vmatmul.bf16.gmra.mxu0 %v223
      %v335 = vpop.f32.mrf.mxu0
      %v336 = vadd.f32 %v242, %v335
      %v337 = vpop.f32.mrf.mxu0
      %v338 = vadd.f32 %v242, %v337
      %339 = vdwg.mxu0
      %340 = vmatpush.bf16.msra.mxu0 %v309
      %341 = vmatpush.bf16.msra.mxu0 %v307
      %342 = vmatpush.bf16.msra.mxu0 %v305
      %343 = vmatpush.bf16.msra.mxu0 %v303
      %344 = vmatpush.bf16.msra.mxu0 %v301
      %345 = vmatpush.bf16.msra.mxu0 %v299
      %346 = vmatpush.bf16.msra.mxu0 %v297
      %347 = vmatpush.bf16.msra.mxu0 %v295
      %348 = vmatmul.bf16.gmra.mxu0 %v223
      %v349 = vpop.f32.mrf.mxu0
      %v350 = vadd.f32 %v243, %v349
      %v351 = vpop.f32.mrf.mxu0
      %v352 = vadd.f32 %v243, %v351
      %353 = vdwg.mxu0
      %v354 = vmul.f32 %v336, 0.2
      %v355 = vmul.f32 %v350, 0.2
      %v356 = vmul.f32 %v338, 0.2
      %v357 = vmul.f32 %v352, 0.2
      %v358 = vmax.f32 %v336, %v354
      %v359 = vmax.f32 %v350, %v355
      %v360 = vmax.f32 %v338, %v356
      %v361 = vmax.f32 %v352, %v357
      %v362 = vpack.c.bf16 %v360, %v358
      %v363 = vpack.c.bf16 %v361, %v359
      %v364 = vld [vmem:[#allocation12] sm:$0xff]
      %v365 = vld [vmem:[#allocation12 + $0x8] sm:$0xff]
      %v366 = vld [vmem:[#allocation12 + $0x10] sm:$0xff]
      %v367 = vld [vmem:[#allocation12 + $0x18] sm:$0xff]
      %v368 = vld [vmem:[#allocation12 + $0x20] sm:$0xff]
      %v369 = vld [vmem:[#allocation12 + $0x28] sm:$0xff]
      %v370 = vld [vmem:[#allocation12 + $0x30] sm:$0xff]
      %v371 = vld [vmem:[#allocation12 + $0x38] sm:$0xff]
      %v372 = vld [vmem:[#allocation12 + $0x40] sm:$0xff]
      %v373 = vld [vmem:[#allocation12 + $0x48] sm:$0xff]
      %v374 = vld [vmem:[#allocation12 + $0x50] sm:$0xff]
      %v375 = vld [vmem:[#allocation12 + $0x58] sm:$0xff]
      %v376 = vld [vmem:[#allocation12 + $0x60] sm:$0xff]
      %v377 = vld [vmem:[#allocation12 + $0x68] sm:$0xff]
      %v378 = vld [vmem:[#allocation12 + $0x70] sm:$0xff]
      %v379 = vld [vmem:[#allocation12 + $0x78] sm:$0xff]
      %v380 = vld [vmem:[#allocation12 + $0x80] sm:$0xff]
      %v381 = vld [vmem:[#allocation12 + $0x88] sm:$0xff]
      %v382 = vld [vmem:[#allocation12 + $0x90] sm:$0xff]
      %v383 = vld [vmem:[#allocation12 + $0x98] sm:$0xff]
      %v384 = vld [vmem:[#allocation12 + $0xa0] sm:$0xff]
      %v385 = vld [vmem:[#allocation12 + $0xa8] sm:$0xff]
      %v386 = vld [vmem:[#allocation12 + $0xb0] sm:$0xff]
      %v387 = vld [vmem:[#allocation12 + $0xb8] sm:$0xff]
      %v388 = vld [vmem:[#allocation12 + $0xc0] sm:$0xff]
      %v389 = vld [vmem:[#allocation12 + $0xc8] sm:$0xff]
      %v390 = vld [vmem:[#allocation12 + $0xd0] sm:$0xff]
      %v391 = vld [vmem:[#allocation12 + $0xd8] sm:$0xff]
      %v392 = vld [vmem:[#allocation12 + $0xe0] sm:$0xff]
      %v393 = vld [vmem:[#allocation12 + $0xe8] sm:$0xff]
      %v394 = vld [vmem:[#allocation12 + $0xf0] sm:$0xff]
      %v395 = vld [vmem:[#allocation12 + $0xf8] sm:$0xff]
      %v396 = vld [vmem:[#allocation12 + $0x100] sm:$0xff]
      %v397 = vld [vmem:[#allocation12 + $0x108] sm:$0xff]
      %v398 = vld [vmem:[#allocation12 + $0x110] sm:$0xff]
      %v399 = vld [vmem:[#allocation12 + $0x118] sm:$0xff]
      %v400 = vld [vmem:[#allocation12 + $0x120] sm:$0xff]
      %v401 = vld [vmem:[#allocation12 + $0x128] sm:$0xff]
      %v402 = vld [vmem:[#allocation12 + $0x130] sm:$0xff]
      %v403 = vld [vmem:[#allocation12 + $0x138] sm:$0xff]
      %v404 = vld [vmem:[#allocation12 + $0x140] sm:$0xff]
      %v405 = vld [vmem:[#allocation12 + $0x148] sm:$0xff]
      %v406 = vld [vmem:[#allocation12 + $0x150] sm:$0xff]
      %v407 = vld [vmem:[#allocation12 + $0x158] sm:$0xff]
      %v408 = vld [vmem:[#allocation12 + $0x160] sm:$0xff]
      %v409 = vld [vmem:[#allocation12 + $0x168] sm:$0xff]
      %v410 = vld [vmem:[#allocation12 + $0x170] sm:$0xff]
      %v411 = vld [vmem:[#allocation12 + $0x178] sm:$0xff]
      %v412 = vld [vmem:[#allocation12 + $0x180] sm:$0xff]
      %v413 = vld [vmem:[#allocation12 + $0x188] sm:$0xff]
      %v414 = vld [vmem:[#allocation12 + $0x190] sm:$0xff]
      %v415 = vld [vmem:[#allocation12 + $0x198] sm:$0xff]
      %v416 = vld [vmem:[#allocation12 + $0x1a0] sm:$0xff]
      %v417 = vld [vmem:[#allocation12 + $0x1a8] sm:$0xff]
      %v418 = vld [vmem:[#allocation12 + $0x1b0] sm:$0xff]
      %v419 = vld [vmem:[#allocation12 + $0x1b8] sm:$0xff]
      %v420 = vld [vmem:[#allocation12 + $0x1c0] sm:$0xff]
      %v421 = vld [vmem:[#allocation12 + $0x1c8] sm:$0xff]
      %v422 = vld [vmem:[#allocation12 + $0x1d0] sm:$0xff]
      %v423 = vld [vmem:[#allocation12 + $0x1d8] sm:$0xff]
      %v424 = vld [vmem:[#allocation12 + $0x1e0] sm:$0xff]
      %v425 = vld [vmem:[#allocation12 + $0x1e8] sm:$0xff]
      %v426 = vld [vmem:[#allocation12 + $0x1f0] sm:$0xff]
      %v427 = vld [vmem:[#allocation12 + $0x1f8] sm:$0xff]
      %v428 = vld [vmem:[%s6] sm:$0xf]
      %v430 = vperm.slane %v428, 0
      %v431 = vperm.slane %v428, 1
      %v432 = vperm.slane %v428, 2
      %v433 = vperm.slane %v428, 3
      %v502 = vunpack.c.l.b16 %v364
      %v503 = vunpack.c.h.b16 %v364
      %v504 = vunpack.c.l.b16 %v365
      %v505 = vunpack.c.h.b16 %v365
      %v506 = vunpack.c.l.b16 %v366
      %v507 = vunpack.c.h.b16 %v366
      %v508 = vunpack.c.l.b16 %v367
      %v509 = vunpack.c.h.b16 %v367
      %v510 = vunpack.c.l.b16 %v368
      %v511 = vunpack.c.h.b16 %v368
      %v512 = vunpack.c.l.b16 %v369
      %v513 = vunpack.c.h.b16 %v369
      %v514 = vunpack.c.l.b16 %v370
      %v515 = vunpack.c.h.b16 %v370
      %v516 = vunpack.c.l.b16 %v371
      %v517 = vunpack.c.h.b16 %v371
      %v518 = vunpack.c.l.b16 %v372
      %v519 = vunpack.c.h.b16 %v372
      %v520 = vunpack.c.l.b16 %v373
      %v521 = vunpack.c.h.b16 %v373
      %v522 = vunpack.c.l.b16 %v374
      %v523 = vunpack.c.h.b16 %v374
      %v524 = vunpack.c.l.b16 %v375
      %v525 = vunpack.c.h.b16 %v375
      %v526 = vunpack.c.l.b16 %v376
      %v527 = vunpack.c.h.b16 %v376
      %v528 = vunpack.c.l.b16 %v377
      %v529 = vunpack.c.h.b16 %v377
      %v530 = vunpack.c.l.b16 %v378
      %v531 = vunpack.c.h.b16 %v378
      %v532 = vunpack.c.l.b16 %v379
      %v533 = vunpack.c.h.b16 %v379
      %v534 = vunpack.c.l.b16 %v380
      %v535 = vunpack.c.h.b16 %v380
      %v536 = vunpack.c.l.b16 %v381
      %v537 = vunpack.c.h.b16 %v381
      %v538 = vunpack.c.l.b16 %v382
      %v539 = vunpack.c.h.b16 %v382
      %v540 = vunpack.c.l.b16 %v383
      %v541 = vunpack.c.h.b16 %v383
      %v542 = vunpack.c.l.b16 %v384
      %v543 = vunpack.c.h.b16 %v384
      %v544 = vunpack.c.l.b16 %v385
      %v545 = vunpack.c.h.b16 %v385
      %v546 = vunpack.c.l.b16 %v386
      %v547 = vunpack.c.h.b16 %v386
      %v548 = vunpack.c.l.b16 %v387
      %v549 = vunpack.c.h.b16 %v387
      %v550 = vunpack.c.l.b16 %v388
      %v551 = vunpack.c.h.b16 %v388
      %v552 = vunpack.c.l.b16 %v389
      %v553 = vunpack.c.h.b16 %v389
      %v554 = vunpack.c.l.b16 %v390
      %v555 = vunpack.c.h.b16 %v390
      %v556 = vunpack.c.l.b16 %v391
      %v557 = vunpack.c.h.b16 %v391
      %v558 = vunpack.c.l.b16 %v392
      %v559 = vunpack.c.h.b16 %v392
      %v560 = vunpack.c.l.b16 %v393
      %v561 = vunpack.c.h.b16 %v393
      %v562 = vunpack.c.l.b16 %v394
      %v563 = vunpack.c.h.b16 %v394
      %v564 = vunpack.c.l.b16 %v395
      %v565 = vunpack.c.h.b16 %v395
      %v566 = vunpack.c.l.b16 %v396
      %v567 = vunpack.c.h.b16 %v396
      %v568 = vunpack.c.l.b16 %v397
      %v569 = vunpack.c.h.b16 %v397
      %v570 = vunpack.c.l.b16 %v398
      %v571 = vunpack.c.h.b16 %v398
      %v572 = vunpack.c.l.b16 %v399
      %v573 = vunpack.c.h.b16 %v399
      %v574 = vunpack.c.l.b16 %v400
      %v575 = vunpack.c.h.b16 %v400
      %v576 = vunpack.c.l.b16 %v401
      %v577 = vunpack.c.h.b16 %v401
      %v578 = vunpack.c.l.b16 %v402
      %v579 = vunpack.c.h.b16 %v402
      %v580 = vunpack.c.l.b16 %v403
      %v581 = vunpack.c.h.b16 %v403
      %v582 = vunpack.c.l.b16 %v404
      %v583 = vunpack.c.h.b16 %v404
      %v584 = vunpack.c.l.b16 %v405
      %v585 = vunpack.c.h.b16 %v405
      %v586 = vunpack.c.l.b16 %v406
      %v587 = vunpack.c.h.b16 %v406
      %v588 = vunpack.c.l.b16 %v407
      %v589 = vunpack.c.h.b16 %v407
      %v590 = vunpack.c.l.b16 %v408
      %v591 = vunpack.c.h.b16 %v408
      %v592 = vunpack.c.l.b16 %v409
      %v593 = vunpack.c.h.b16 %v409
      %v594 = vunpack.c.l.b16 %v410
      %v595 = vunpack.c.h.b16 %v410
      %v596 = vunpack.c.l.b16 %v411
      %v597 = vunpack.c.h.b16 %v411
      %v598 = vunpack.c.l.b16 %v412
      %v599 = vunpack.c.h.b16 %v412
      %v600 = vunpack.c.l.b16 %v413
      %v601 = vunpack.c.h.b16 %v413
      %v602 = vunpack.c.l.b16 %v414
      %v603 = vunpack.c.h.b16 %v414
      %v604 = vunpack.c.l.b16 %v415
      %v605 = vunpack.c.h.b16 %v415
      %v606 = vunpack.c.l.b16 %v416
      %v607 = vunpack.c.h.b16 %v416
      %v608 = vunpack.c.l.b16 %v417
      %v609 = vunpack.c.h.b16 %v417
      %v610 = vunpack.c.l.b16 %v418
      %v611 = vunpack.c.h.b16 %v418
      %v612 = vunpack.c.l.b16 %v419
      %v613 = vunpack.c.h.b16 %v419
      %v614 = vunpack.c.l.b16 %v420
      %v615 = vunpack.c.h.b16 %v420
      %v616 = vunpack.c.l.b16 %v421
      %v617 = vunpack.c.h.b16 %v421
      %v618 = vunpack.c.l.b16 %v422
      %v619 = vunpack.c.h.b16 %v422
      %v620 = vunpack.c.l.b16 %v423
      %v621 = vunpack.c.h.b16 %v423
      %v622 = vunpack.c.l.b16 %v424
      %v623 = vunpack.c.h.b16 %v424
      %v624 = vunpack.c.l.b16 %v425
      %v625 = vunpack.c.h.b16 %v425
      %v626 = vunpack.c.l.b16 %v426
      %v627 = vunpack.c.h.b16 %v426
      %v628 = vunpack.c.l.b16 %v427
      %v629 = vunpack.c.h.b16 %v427
      %v630 = vpack.c.b16 %v506, %v502
      %v631 = vpack.c.b16 %v507, %v503
      %v632 = vpack.c.b16 %v508, %v504
      %v633 = vpack.c.b16 %v509, %v505
      %v634 = vpack.c.b16 %v514, %v510
      %v635 = vpack.c.b16 %v515, %v511
      %v636 = vpack.c.b16 %v516, %v512
      %v637 = vpack.c.b16 %v517, %v513
      %v638 = vpack.c.b16 %v522, %v518
      %v639 = vpack.c.b16 %v523, %v519
      %v640 = vpack.c.b16 %v524, %v520
      %v641 = vpack.c.b16 %v525, %v521
      %v642 = vpack.c.b16 %v530, %v526
      %v643 = vpack.c.b16 %v531, %v527
      %v644 = vpack.c.b16 %v532, %v528
      %v645 = vpack.c.b16 %v533, %v529
      %v646 = vpack.c.b16 %v538, %v534
      %v647 = vpack.c.b16 %v539, %v535
      %v648 = vpack.c.b16 %v540, %v536
      %v649 = vpack.c.b16 %v541, %v537
      %v650 = vpack.c.b16 %v546, %v542
      %v651 = vpack.c.b16 %v547, %v543
      %v652 = vpack.c.b16 %v548, %v544
      %v653 = vpack.c.b16 %v549, %v545
      %v654 = vpack.c.b16 %v554, %v550
      %v655 = vpack.c.b16 %v555, %v551
      %v656 = vpack.c.b16 %v556, %v552
      %v657 = vpack.c.b16 %v557, %v553
      %v658 = vpack.c.b16 %v562, %v558
      %v659 = vpack.c.b16 %v563, %v559
      %v660 = vpack.c.b16 %v564, %v560
      %v661 = vpack.c.b16 %v565, %v561
      %v662 = vpack.c.b16 %v570, %v566
      %v663 = vpack.c.b16 %v571, %v567
      %v664 = vpack.c.b16 %v572, %v568
      %v665 = vpack.c.b16 %v573, %v569
      %v666 = vpack.c.b16 %v578, %v574
      %v667 = vpack.c.b16 %v579, %v575
      %v668 = vpack.c.b16 %v580, %v576
      %v669 = vpack.c.b16 %v581, %v577
      %v670 = vpack.c.b16 %v586, %v582
      %v671 = vpack.c.b16 %v587, %v583
      %v672 = vpack.c.b16 %v588, %v584
      %v673 = vpack.c.b16 %v589, %v585
      %v674 = vpack.c.b16 %v594, %v590
      %v675 = vpack.c.b16 %v595, %v591
      %v676 = vpack.c.b16 %v596, %v592
      %v677 = vpack.c.b16 %v597, %v593
      %v678 = vpack.c.b16 %v602, %v598
      %v679 = vpack.c.b16 %v603, %v599
      %v680 = vpack.c.b16 %v604, %v600
      %v681 = vpack.c.b16 %v605, %v601
      %v682 = vpack.c.b16 %v610, %v606
      %v683 = vpack.c.b16 %v611, %v607
      %v684 = vpack.c.b16 %v612, %v608
      %v685 = vpack.c.b16 %v613, %v609
      %v686 = vpack.c.b16 %v618, %v614
      %v687 = vpack.c.b16 %v619, %v615
      %v688 = vpack.c.b16 %v620, %v616
      %v689 = vpack.c.b16 %v621, %v617
      %v690 = vpack.c.b16 %v626, %v622
      %v691 = vpack.c.b16 %v627, %v623
      %v692 = vpack.c.b16 %v628, %v624
      %v693 = vpack.c.b16 %v629, %v625
      %758 = vmatpush.bf16.msra.mxu0 %v658
      %759 = vmatpush.bf16.msra.mxu0 %v654
      %760 = vmatpush.bf16.msra.mxu0 %v650
      %761 = vmatpush.bf16.msra.mxu0 %v646
      %762 = vmatpush.bf16.msra.mxu0 %v642
      %763 = vmatpush.bf16.msra.mxu0 %v638
      %764 = vmatpush.bf16.msra.mxu0 %v634
      %765 = vmatpush.bf16.msra.mxu0 %v630
      %766 = vmatmul.bf16.gmra.mxu0 %v362
      %v767 = vpop.f32.mrf.mxu0
      %v768 = vadd.f32 %v430, %v767
      %v769 = vpop.f32.mrf.mxu0
      %v770 = vadd.f32 %v430, %v769
      %771 = vdwg.mxu0
      %772 = vmatpush.bf16.msra.mxu0 %v690
      %773 = vmatpush.bf16.msra.mxu0 %v686
      %774 = vmatpush.bf16.msra.mxu0 %v682
      %775 = vmatpush.bf16.msra.mxu0 %v678
      %776 = vmatpush.bf16.msra.mxu0 %v674
      %777 = vmatpush.bf16.msra.mxu0 %v670
      %778 = vmatpush.bf16.msra.mxu0 %v666
      %779 = vmatpush.bf16.msra.mxu0 %v662
      %780 = vmatmul.bf16.gmra.mxu0 %v363
      %v781 = vpop.f32.mrf.mxu0
      %v782 = vadd.f32 %v768, %v781
      %v783 = vpop.f32.mrf.mxu0
      %v784 = vadd.f32 %v770, %v783
      %785 = vdwg.mxu0
      %786 = vmatpush.bf16.msra.mxu0 %v659
      %787 = vmatpush.bf16.msra.mxu0 %v655
      %788 = vmatpush.bf16.msra.mxu0 %v651
      %789 = vmatpush.bf16.msra.mxu0 %v647
      %790 = vmatpush.bf16.msra.mxu0 %v643
      %791 = vmatpush.bf16.msra.mxu0 %v639
      %792 = vmatpush.bf16.msra.mxu0 %v635
      %793 = vmatpush.bf16.msra.mxu0 %v631
      %794 = vmatmul.bf16.gmra.mxu0 %v362
      %v795 = vpop.f32.mrf.mxu0
      %v796 = vadd.f32 %v431, %v795
      %v797 = vpop.f32.mrf.mxu0
      %v798 = vadd.f32 %v431, %v797
      %799 = vdwg.mxu0
      %800 = vmatpush.bf16.msra.mxu0 %v691
      %801 = vmatpush.bf16.msra.mxu0 %v687
      %802 = vmatpush.bf16.msra.mxu0 %v683
      %803 = vmatpush.bf16.msra.mxu0 %v679
      %804 = vmatpush.bf16.msra.mxu0 %v675
      %805 = vmatpush.bf16.msra.mxu0 %v671
      %806 = vmatpush.bf16.msra.mxu0 %v667
      %807 = vmatpush.bf16.msra.mxu0 %v663
      %808 = vmatmul.bf16.gmra.mxu0 %v363
      %v809 = vpop.f32.mrf.mxu0
      %v810 = vadd.f32 %v796, %v809
      %v811 = vpop.f32.mrf.mxu0
      %v812 = vadd.f32 %v798, %v811
      %813 = vdwg.mxu0
      %814 = vmatpush.bf16.msra.mxu0 %v660
      %815 = vmatpush.bf16.msra.mxu0 %v656
      %816 = vmatpush.bf16.msra.mxu0 %v652
      %817 = vmatpush.bf16.msra.mxu0 %v648
      %818 = vmatpush.bf16.msra.mxu0 %v644
      %819 = vmatpush.bf16.msra.mxu0 %v640
      %820 = vmatpush.bf16.msra.mxu0 %v636
      %821 = vmatpush.bf16.msra.mxu0 %v632
      %822 = vmatmul.bf16.gmra.mxu0 %v362
      %v823 = vpop.f32.mrf.mxu0
      %v824 = vadd.f32 %v432, %v823
      %v825 = vpop.f32.mrf.mxu0
      %v826 = vadd.f32 %v432, %v825
      %827 = vdwg.mxu0
      %828 = vmatpush.bf16.msra.mxu0 %v692
      %829 = vmatpush.bf16.msra.mxu0 %v688
      %830 = vmatpush.bf16.msra.mxu0 %v684
      %831 = vmatpush.bf16.msra.mxu0 %v680
      %832 = vmatpush.bf16.msra.mxu0 %v676
      %833 = vmatpush.bf16.msra.mxu0 %v672
      %834 = vmatpush.bf16.msra.mxu0 %v668
      %835 = vmatpush.bf16.msra.mxu0 %v664
      %836 = vmatmul.bf16.gmra.mxu0 %v363
      %v837 = vpop.f32.mrf.mxu0
      %v838 = vadd.f32 %v824, %v837
      %v839 = vpop.f32.mrf.mxu0
      %v840 = vadd.f32 %v826, %v839
      %841 = vdwg.mxu0
      %842 = vmatpush.bf16.msra.mxu0 %v661
      %843 = vmatpush.bf16.msra.mxu0 %v657
      %844 = vmatpush.bf16.msra.mxu0 %v653
      %845 = vmatpush.bf16.msra.mxu0 %v649
      %846 = vmatpush.bf16.msra.mxu0 %v645
      %847 = vmatpush.bf16.msra.mxu0 %v641
      %848 = vmatpush.bf16.msra.mxu0 %v637
      %849 = vmatpush.bf16.msra.mxu0 %v633
      %850 = vmatmul.bf16.gmra.mxu0 %v362
      %v851 = vpop.f32.mrf.mxu0
      %v852 = vadd.f32 %v433, %v851
      %v853 = vpop.f32.mrf.mxu0
      %v854 = vadd.f32 %v433, %v853
      %855 = vdwg.mxu0
      %856 = vmatpush.bf16.msra.mxu0 %v693
      %857 = vmatpush.bf16.msra.mxu0 %v689
      %858 = vmatpush.bf16.msra.mxu0 %v685
      %859 = vmatpush.bf16.msra.mxu0 %v681
      %860 = vmatpush.bf16.msra.mxu0 %v677
      %861 = vmatpush.bf16.msra.mxu0 %v673
      %862 = vmatpush.bf16.msra.mxu0 %v669
      %863 = vmatpush.bf16.msra.mxu0 %v665
      %864 = vmatmul.bf16.gmra.mxu0 %v363
      %v865 = vpop.f32.mrf.mxu0
      %v866 = vadd.f32 %v852, %v865
      %v867 = vpop.f32.mrf.mxu0
      %v868 = vadd.f32 %v854, %v867
      %869 = vdwg.mxu0
      %v870 = vmul.f32 %v782, 0.2
      %v871 = vmul.f32 %v810, 0.2
      %v872 = vmul.f32 %v838, 0.2
      %v873 = vmul.f32 %v866, 0.2
      %v874 = vmul.f32 %v784, 0.2
      %v875 = vmul.f32 %v812, 0.2
      %v876 = vmul.f32 %v840, 0.2
      %v877 = vmul.f32 %v868, 0.2
      %v878 = vmax.f32 %v782, %v870
      %v879 = vmax.f32 %v810, %v871
      %v880 = vmax.f32 %v838, %v872
      %v881 = vmax.f32 %v866, %v873
      %v882 = vmax.f32 %v784, %v874
      %v883 = vmax.f32 %v812, %v875
      %v884 = vmax.f32 %v840, %v876
      %v885 = vmax.f32 %v868, %v877
      %v886 = vpack.c.bf16 %v882, %v878
      %v887 = vpack.c.bf16 %v883, %v879
      %v888 = vpack.c.bf16 %v884, %v880
      %v889 = vpack.c.bf16 %v885, %v881
      %v890 = vld [vmem:[#allocation14] sm:$0xff]
      %v891 = vld [vmem:[#allocation14 + $0x8] sm:$0xff]
      %v892 = vld [vmem:[#allocation14 + $0x10] sm:$0xff]
      %v893 = vld [vmem:[#allocation14 + $0x18] sm:$0xff]
      %v894 = vld [vmem:[#allocation14 + $0x20] sm:$0xff]
      %v895 = vld [vmem:[#allocation14 + $0x28] sm:$0xff]
      %v896 = vld [vmem:[#allocation14 + $0x30] sm:$0xff]
      %v897 = vld [vmem:[#allocation14 + $0x38] sm:$0xff]
      %v898 = vld [vmem:[#allocation14 + $0x40] sm:$0xff]
      %v899 = vld [vmem:[#allocation14 + $0x48] sm:$0xff]
      %v900 = vld [vmem:[#allocation14 + $0x50] sm:$0xff]
      %v901 = vld [vmem:[#allocation14 + $0x58] sm:$0xff]
      %v902 = vld [vmem:[#allocation14 + $0x60] sm:$0xff]
      %v903 = vld [vmem:[#allocation14 + $0x68] sm:$0xff]
      %v904 = vld [vmem:[#allocation14 + $0x70] sm:$0xff]
      %v905 = vld [vmem:[#allocation14 + $0x78] sm:$0xff]
      %v906 = vld [vmem:[#allocation14 + $0x80] sm:$0xff]
      %v907 = vld [vmem:[#allocation14 + $0x88] sm:$0xff]
      %v908 = vld [vmem:[#allocation14 + $0x90] sm:$0xff]
      %v909 = vld [vmem:[#allocation14 + $0x98] sm:$0xff]
      %v910 = vld [vmem:[#allocation14 + $0xa0] sm:$0xff]
      %v911 = vld [vmem:[#allocation14 + $0xa8] sm:$0xff]
      %v912 = vld [vmem:[#allocation14 + $0xb0] sm:$0xff]
      %v913 = vld [vmem:[#allocation14 + $0xb8] sm:$0xff]
      %v914 = vld [vmem:[#allocation14 + $0xc0] sm:$0xff]
      %v915 = vld [vmem:[#allocation14 + $0xc8] sm:$0xff]
      %v916 = vld [vmem:[#allocation14 + $0xd0] sm:$0xff]
      %v917 = vld [vmem:[#allocation14 + $0xd8] sm:$0xff]
      %v918 = vld [vmem:[#allocation14 + $0xe0] sm:$0xff]
      %v919 = vld [vmem:[#allocation14 + $0xe8] sm:$0xff]
      %v920 = vld [vmem:[#allocation14 + $0xf0] sm:$0xff]
      %v921 = vld [vmem:[#allocation14 + $0xf8] sm:$0xff]
      %v922 = vld [vmem:[#allocation14 + $0x100] sm:$0xff]
      %v923 = vld [vmem:[#allocation14 + $0x108] sm:$0xff]
      %v924 = vld [vmem:[#allocation14 + $0x110] sm:$0xff]
      %v925 = vld [vmem:[#allocation14 + $0x118] sm:$0xff]
      %v926 = vld [vmem:[#allocation14 + $0x120] sm:$0xff]
      %v927 = vld [vmem:[#allocation14 + $0x128] sm:$0xff]
      %v928 = vld [vmem:[#allocation14 + $0x130] sm:$0xff]
      %v929 = vld [vmem:[#allocation14 + $0x138] sm:$0xff]
      %v930 = vld [vmem:[#allocation14 + $0x140] sm:$0xff]
      %v931 = vld [vmem:[#allocation14 + $0x148] sm:$0xff]
      %v932 = vld [vmem:[#allocation14 + $0x150] sm:$0xff]
      %v933 = vld [vmem:[#allocation14 + $0x158] sm:$0xff]
      %v934 = vld [vmem:[#allocation14 + $0x160] sm:$0xff]
      %v935 = vld [vmem:[#allocation14 + $0x168] sm:$0xff]
      %v936 = vld [vmem:[#allocation14 + $0x170] sm:$0xff]
      %v937 = vld [vmem:[#allocation14 + $0x178] sm:$0xff]
      %v938 = vld [vmem:[#allocation14 + $0x180] sm:$0xff]
      %v939 = vld [vmem:[#allocation14 + $0x188] sm:$0xff]
      %v940 = vld [vmem:[#allocation14 + $0x190] sm:$0xff]
      %v941 = vld [vmem:[#allocation14 + $0x198] sm:$0xff]
      %v942 = vld [vmem:[#allocation14 + $0x1a0] sm:$0xff]
      %v943 = vld [vmem:[#allocation14 + $0x1a8] sm:$0xff]
      %v944 = vld [vmem:[#allocation14 + $0x1b0] sm:$0xff]
      %v945 = vld [vmem:[#allocation14 + $0x1b8] sm:$0xff]
      %v946 = vld [vmem:[#allocation14 + $0x1c0] sm:$0xff]
      %v947 = vld [vmem:[#allocation14 + $0x1c8] sm:$0xff]
      %v948 = vld [vmem:[#allocation14 + $0x1d0] sm:$0xff]
      %v949 = vld [vmem:[#allocation14 + $0x1d8] sm:$0xff]
      %v950 = vld [vmem:[#allocation14 + $0x1e0] sm:$0xff]
      %v951 = vld [vmem:[#allocation14 + $0x1e8] sm:$0xff]
      %v952 = vld [vmem:[#allocation14 + $0x1f0] sm:$0xff]
      %v953 = vld [vmem:[#allocation14 + $0x1f8] sm:$0xff]
      %v954 = vld [vmem:[#allocation14 + $0x200] sm:$0xff]
      %v955 = vld [vmem:[#allocation14 + $0x208] sm:$0xff]
      %v956 = vld [vmem:[#allocation14 + $0x210] sm:$0xff]
      %v957 = vld [vmem:[#allocation14 + $0x218] sm:$0xff]
      %v958 = vld [vmem:[#allocation14 + $0x220] sm:$0xff]
      %v959 = vld [vmem:[#allocation14 + $0x228] sm:$0xff]
      %v960 = vld [vmem:[#allocation14 + $0x230] sm:$0xff]
      %v961 = vld [vmem:[#allocation14 + $0x238] sm:$0xff]
      %v962 = vld [vmem:[#allocation14 + $0x240] sm:$0xff]
      %v963 = vld [vmem:[#allocation14 + $0x248] sm:$0xff]
      %v964 = vld [vmem:[#allocation14 + $0x250] sm:$0xff]
      %v965 = vld [vmem:[#allocation14 + $0x258] sm:$0xff]
      %v966 = vld [vmem:[#allocation14 + $0x260] sm:$0xff]
      %v967 = vld [vmem:[#allocation14 + $0x268] sm:$0xff]
      %v968 = vld [vmem:[#allocation14 + $0x270] sm:$0xff]
      %v969 = vld [vmem:[#allocation14 + $0x278] sm:$0xff]
      %v970 = vld [vmem:[#allocation14 + $0x280] sm:$0xff]
      %v971 = vld [vmem:[#allocation14 + $0x288] sm:$0xff]
      %v972 = vld [vmem:[#allocation14 + $0x290] sm:$0xff]
      %v973 = vld [vmem:[#allocation14 + $0x298] sm:$0xff]
      %v974 = vld [vmem:[#allocation14 + $0x2a0] sm:$0xff]
      %v975 = vld [vmem:[#allocation14 + $0x2a8] sm:$0xff]
      %v976 = vld [vmem:[#allocation14 + $0x2b0] sm:$0xff]
      %v977 = vld [vmem:[#allocation14 + $0x2b8] sm:$0xff]
      %v978 = vld [vmem:[#allocation14 + $0x2c0] sm:$0xff]
      %v979 = vld [vmem:[#allocation14 + $0x2c8] sm:$0xff]
      %v980 = vld [vmem:[#allocation14 + $0x2d0] sm:$0xff]
      %v981 = vld [vmem:[#allocation14 + $0x2d8] sm:$0xff]
      %v982 = vld [vmem:[#allocation14 + $0x2e0] sm:$0xff]
      %v983 = vld [vmem:[#allocation14 + $0x2e8] sm:$0xff]
      %v984 = vld [vmem:[#allocation14 + $0x2f0] sm:$0xff]
      %v985 = vld [vmem:[#allocation14 + $0x2f8] sm:$0xff]
      %v986 = vld [vmem:[#allocation14 + $0x300] sm:$0xff]
      %v987 = vld [vmem:[#allocation14 + $0x308] sm:$0xff]
      %v988 = vld [vmem:[#allocation14 + $0x310] sm:$0xff]
      %v989 = vld [vmem:[#allocation14 + $0x318] sm:$0xff]
      %v990 = vld [vmem:[#allocation14 + $0x320] sm:$0xff]
      %v991 = vld [vmem:[#allocation14 + $0x328] sm:$0xff]
      %v992 = vld [vmem:[#allocation14 + $0x330] sm:$0xff]
      %v993 = vld [vmem:[#allocation14 + $0x338] sm:$0xff]
      %v994 = vld [vmem:[#allocation14 + $0x340] sm:$0xff]
      %v995 = vld [vmem:[#allocation14 + $0x348] sm:$0xff]
      %v996 = vld [vmem:[#allocation14 + $0x350] sm:$0xff]
      %v997 = vld [vmem:[#allocation14 + $0x358] sm:$0xff]
      %v998 = vld [vmem:[#allocation14 + $0x360] sm:$0xff]
      %v999 = vld [vmem:[#allocation14 + $0x368] sm:$0xff]
      %v1000 = vld [vmem:[#allocation14 + $0x370] sm:$0xff]
      %v1001 = vld [vmem:[#allocation14 + $0x378] sm:$0xff]
      %v1002 = vld [vmem:[#allocation14 + $0x380] sm:$0xff]
      %v1003 = vld [vmem:[#allocation14 + $0x388] sm:$0xff]
      %v1004 = vld [vmem:[#allocation14 + $0x390] sm:$0xff]
      %v1005 = vld [vmem:[#allocation14 + $0x398] sm:$0xff]
      %v1006 = vld [vmem:[#allocation14 + $0x3a0] sm:$0xff]
      %v1007 = vld [vmem:[#allocation14 + $0x3a8] sm:$0xff]
      %v1008 = vld [vmem:[#allocation14 + $0x3b0] sm:$0xff]
      %v1009 = vld [vmem:[#allocation14 + $0x3b8] sm:$0xff]
      %v1010 = vld [vmem:[#allocation14 + $0x3c0] sm:$0xff]
      %v1011 = vld [vmem:[#allocation14 + $0x3c8] sm:$0xff]
      %v1012 = vld [vmem:[#allocation14 + $0x3d0] sm:$0xff]
      %v1013 = vld [vmem:[#allocation14 + $0x3d8] sm:$0xff]
      %v1014 = vld [vmem:[#allocation14 + $0x3e0] sm:$0xff]
      %v1015 = vld [vmem:[#allocation14 + $0x3e8] sm:$0xff]
      %v1016 = vld [vmem:[#allocation14 + $0x3f0] sm:$0xff]
      %v1017 = vld [vmem:[#allocation14 + $0x3f8] sm:$0xff]
      %v1018 = vld [vmem:[#allocation14 + $0x400] sm:$0xff]
      %v1019 = vld [vmem:[#allocation14 + $0x408] sm:$0xff]
      %v1020 = vld [vmem:[#allocation14 + $0x410] sm:$0xff]
      %v1021 = vld [vmem:[#allocation14 + $0x418] sm:$0xff]
      %v1022 = vld [vmem:[#allocation14 + $0x420] sm:$0xff]
      %v1023 = vld [vmem:[#allocation14 + $0x428] sm:$0xff]
      %v1024 = vld [vmem:[#allocation14 + $0x430] sm:$0xff]
      %v1025 = vld [vmem:[#allocation14 + $0x438] sm:$0xff]
      %v1026 = vld [vmem:[#allocation14 + $0x440] sm:$0xff]
      %v1027 = vld [vmem:[#allocation14 + $0x448] sm:$0xff]
      %v1028 = vld [vmem:[#allocation14 + $0x450] sm:$0xff]
      %v1029 = vld [vmem:[#allocation14 + $0x458] sm:$0xff]
      %v1030 = vld [vmem:[#allocation14 + $0x460] sm:$0xff]
      %v1031 = vld [vmem:[#allocation14 + $0x468] sm:$0xff]
      %v1032 = vld [vmem:[#allocation14 + $0x470] sm:$0xff]
      %v1033 = vld [vmem:[#allocation14 + $0x478] sm:$0xff]
      %v1034 = vld [vmem:[#allocation14 + $0x480] sm:$0xff]
      %v1035 = vld [vmem:[#allocation14 + $0x488] sm:$0xff]
      %v1036 = vld [vmem:[#allocation14 + $0x490] sm:$0xff]
      %v1037 = vld [vmem:[#allocation14 + $0x498] sm:$0xff]
      %v1038 = vld [vmem:[#allocation14 + $0x4a0] sm:$0xff]
      %v1039 = vld [vmem:[#allocation14 + $0x4a8] sm:$0xff]
      %v1040 = vld [vmem:[#allocation14 + $0x4b0] sm:$0xff]
      %v1041 = vld [vmem:[#allocation14 + $0x4b8] sm:$0xff]
      %v1042 = vld [vmem:[#allocation14 + $0x4c0] sm:$0xff]
      %v1043 = vld [vmem:[#allocation14 + $0x4c8] sm:$0xff]
      %v1044 = vld [vmem:[#allocation14 + $0x4d0] sm:$0xff]
      %v1045 = vld [vmem:[#allocation14 + $0x4d8] sm:$0xff]
      %v1046 = vld [vmem:[#allocation14 + $0x4e0] sm:$0xff]
      %v1047 = vld [vmem:[#allocation14 + $0x4e8] sm:$0xff]
      %v1048 = vld [vmem:[#allocation14 + $0x4f0] sm:$0xff]
      %v1049 = vld [vmem:[#allocation14 + $0x4f8] sm:$0xff]
      %v1050 = vld [vmem:[#allocation14 + $0x500] sm:$0xff]
      %v1051 = vld [vmem:[#allocation14 + $0x508] sm:$0xff]
      %v1052 = vld [vmem:[#allocation14 + $0x510] sm:$0xff]
      %v1053 = vld [vmem:[#allocation14 + $0x518] sm:$0xff]
      %v1054 = vld [vmem:[#allocation14 + $0x520] sm:$0xff]
      %v1055 = vld [vmem:[#allocation14 + $0x528] sm:$0xff]
      %v1056 = vld [vmem:[#allocation14 + $0x530] sm:$0xff]
      %v1057 = vld [vmem:[#allocation14 + $0x538] sm:$0xff]
      %v1058 = vld [vmem:[#allocation14 + $0x540] sm:$0xff]
      %v1059 = vld [vmem:[#allocation14 + $0x548] sm:$0xff]
      %v1060 = vld [vmem:[#allocation14 + $0x550] sm:$0xff]
      %v1061 = vld [vmem:[#allocation14 + $0x558] sm:$0xff]
      %v1062 = vld [vmem:[#allocation14 + $0x560] sm:$0xff]
      %v1063 = vld [vmem:[#allocation14 + $0x568] sm:$0xff]
      %v1064 = vld [vmem:[#allocation14 + $0x570] sm:$0xff]
      %v1065 = vld [vmem:[#allocation14 + $0x578] sm:$0xff]
      %v1066 = vld [vmem:[#allocation14 + $0x580] sm:$0xff]
      %v1067 = vld [vmem:[#allocation14 + $0x588] sm:$0xff]
      %v1068 = vld [vmem:[#allocation14 + $0x590] sm:$0xff]
      %v1069 = vld [vmem:[#allocation14 + $0x598] sm:$0xff]
      %v1070 = vld [vmem:[#allocation14 + $0x5a0] sm:$0xff]
      %v1071 = vld [vmem:[#allocation14 + $0x5a8] sm:$0xff]
      %v1072 = vld [vmem:[#allocation14 + $0x5b0] sm:$0xff]
      %v1073 = vld [vmem:[#allocation14 + $0x5b8] sm:$0xff]
      %v1074 = vld [vmem:[#allocation14 + $0x5c0] sm:$0xff]
      %v1075 = vld [vmem:[#allocation14 + $0x5c8] sm:$0xff]
      %v1076 = vld [vmem:[#allocation14 + $0x5d0] sm:$0xff]
      %v1077 = vld [vmem:[#allocation14 + $0x5d8] sm:$0xff]
      %v1078 = vld [vmem:[#allocation14 + $0x5e0] sm:$0xff]
      %v1079 = vld [vmem:[#allocation14 + $0x5e8] sm:$0xff]
      %v1080 = vld [vmem:[#allocation14 + $0x5f0] sm:$0xff]
      %v1081 = vld [vmem:[#allocation14 + $0x5f8] sm:$0xff]
      %v1082 = vld [vmem:[#allocation14 + $0x600] sm:$0xff]
      %v1083 = vld [vmem:[#allocation14 + $0x608] sm:$0xff]
      %v1084 = vld [vmem:[#allocation14 + $0x610] sm:$0xff]
      %v1085 = vld [vmem:[#allocation14 + $0x618] sm:$0xff]
      %v1086 = vld [vmem:[#allocation14 + $0x620] sm:$0xff]
      %v1087 = vld [vmem:[#allocation14 + $0x628] sm:$0xff]
      %v1088 = vld [vmem:[#allocation14 + $0x630] sm:$0xff]
      %v1089 = vld [vmem:[#allocation14 + $0x638] sm:$0xff]
      %v1090 = vld [vmem:[#allocation14 + $0x640] sm:$0xff]
      %v1091 = vld [vmem:[#allocation14 + $0x648] sm:$0xff]
      %v1092 = vld [vmem:[#allocation14 + $0x650] sm:$0xff]
      %v1093 = vld [vmem:[#allocation14 + $0x658] sm:$0xff]
      %v1094 = vld [vmem:[#allocation14 + $0x660] sm:$0xff]
      %v1095 = vld [vmem:[#allocation14 + $0x668] sm:$0xff]
      %v1096 = vld [vmem:[#allocation14 + $0x670] sm:$0xff]
      %v1097 = vld [vmem:[#allocation14 + $0x678] sm:$0xff]
      %v1098 = vld [vmem:[#allocation14 + $0x680] sm:$0xff]
      %v1099 = vld [vmem:[#allocation14 + $0x688] sm:$0xff]
      %v1100 = vld [vmem:[#allocation14 + $0x690] sm:$0xff]
      %v1101 = vld [vmem:[#allocation14 + $0x698] sm:$0xff]
      %v1102 = vld [vmem:[#allocation14 + $0x6a0] sm:$0xff]
      %v1103 = vld [vmem:[#allocation14 + $0x6a8] sm:$0xff]
      %v1104 = vld [vmem:[#allocation14 + $0x6b0] sm:$0xff]
      %v1105 = vld [vmem:[#allocation14 + $0x6b8] sm:$0xff]
      %v1106 = vld [vmem:[#allocation14 + $0x6c0] sm:$0xff]
      %v1107 = vld [vmem:[#allocation14 + $0x6c8] sm:$0xff]
      %v1108 = vld [vmem:[#allocation14 + $0x6d0] sm:$0xff]
      %v1109 = vld [vmem:[#allocation14 + $0x6d8] sm:$0xff]
      %v1110 = vld [vmem:[#allocation14 + $0x6e0] sm:$0xff]
      %v1111 = vld [vmem:[#allocation14 + $0x6e8] sm:$0xff]
      %v1112 = vld [vmem:[#allocation14 + $0x6f0] sm:$0xff]
      %v1113 = vld [vmem:[#allocation14 + $0x6f8] sm:$0xff]
      %v1114 = vld [vmem:[#allocation14 + $0x700] sm:$0xff]
      %v1115 = vld [vmem:[#allocation14 + $0x708] sm:$0xff]
      %v1116 = vld [vmem:[#allocation14 + $0x710] sm:$0xff]
      %v1117 = vld [vmem:[#allocation14 + $0x718] sm:$0xff]
      %v1118 = vld [vmem:[#allocation14 + $0x720] sm:$0xff]
      %v1119 = vld [vmem:[#allocation14 + $0x728] sm:$0xff]
      %v1120 = vld [vmem:[#allocation14 + $0x730] sm:$0xff]
      %v1121 = vld [vmem:[#allocation14 + $0x738] sm:$0xff]
      %v1122 = vld [vmem:[#allocation14 + $0x740] sm:$0xff]
      %v1123 = vld [vmem:[#allocation14 + $0x748] sm:$0xff]
      %v1124 = vld [vmem:[#allocation14 + $0x750] sm:$0xff]
      %v1125 = vld [vmem:[#allocation14 + $0x758] sm:$0xff]
      %v1126 = vld [vmem:[#allocation14 + $0x760] sm:$0xff]
      %v1127 = vld [vmem:[#allocation14 + $0x768] sm:$0xff]
      %v1128 = vld [vmem:[#allocation14 + $0x770] sm:$0xff]
      %v1129 = vld [vmem:[#allocation14 + $0x778] sm:$0xff]
      %v1130 = vld [vmem:[#allocation14 + $0x780] sm:$0xff]
      %v1131 = vld [vmem:[#allocation14 + $0x788] sm:$0xff]
      %v1132 = vld [vmem:[#allocation14 + $0x790] sm:$0xff]
      %v1133 = vld [vmem:[#allocation14 + $0x798] sm:$0xff]
      %v1134 = vld [vmem:[#allocation14 + $0x7a0] sm:$0xff]
      %v1135 = vld [vmem:[#allocation14 + $0x7a8] sm:$0xff]
      %v1136 = vld [vmem:[#allocation14 + $0x7b0] sm:$0xff]
      %v1137 = vld [vmem:[#allocation14 + $0x7b8] sm:$0xff]
      %v1138 = vld [vmem:[#allocation14 + $0x7c0] sm:$0xff]
      %v1139 = vld [vmem:[#allocation14 + $0x7c8] sm:$0xff]
      %v1140 = vld [vmem:[#allocation14 + $0x7d0] sm:$0xff]
      %v1141 = vld [vmem:[#allocation14 + $0x7d8] sm:$0xff]
      %v1142 = vld [vmem:[#allocation14 + $0x7e0] sm:$0xff]
      %v1143 = vld [vmem:[#allocation14 + $0x7e8] sm:$0xff]
      %v1144 = vld [vmem:[#allocation14 + $0x7f0] sm:$0xff]
      %v1145 = vld [vmem:[#allocation14 + $0x7f8] sm:$0xff]
      %v1146 = vld [vmem:[#allocation15] sm:$0xff]
      %v1148 = vperm.slane %v1146, 0
      %v1149 = vperm.slane %v1146, 1
      %v1150 = vperm.slane %v1146, 2
      %v1151 = vperm.slane %v1146, 3
      %v1152 = vperm.slane %v1146, 4
      %v1153 = vperm.slane %v1146, 5
      %v1154 = vperm.slane %v1146, 6
      %v1155 = vperm.slane %v1146, 7
      %v1420 = vunpack.c.l.b16 %v890
      %v1421 = vunpack.c.h.b16 %v890
      %v1422 = vunpack.c.l.b16 %v891
      %v1423 = vunpack.c.h.b16 %v891
      %v1424 = vunpack.c.l.b16 %v892
      %v1425 = vunpack.c.h.b16 %v892
      %v1426 = vunpack.c.l.b16 %v893
      %v1427 = vunpack.c.h.b16 %v893
      %v1428 = vunpack.c.l.b16 %v894
      %v1429 = vunpack.c.h.b16 %v894
      %v1430 = vunpack.c.l.b16 %v895
      %v1431 = vunpack.c.h.b16 %v895
      %v1432 = vunpack.c.l.b16 %v896
      %v1433 = vunpack.c.h.b16 %v896
      %v1434 = vunpack.c.l.b16 %v897
      %v1435 = vunpack.c.h.b16 %v897
      %v1436 = vunpack.c.l.b16 %v898
      %v1437 = vunpack.c.h.b16 %v898
      %v1438 = vunpack.c.l.b16 %v899
      %v1439 = vunpack.c.h.b16 %v899
      %v1440 = vunpack.c.l.b16 %v900
      %v1441 = vunpack.c.h.b16 %v900
      %v1442 = vunpack.c.l.b16 %v901
      %v1443 = vunpack.c.h.b16 %v901
      %v1444 = vunpack.c.l.b16 %v902
      %v1445 = vunpack.c.h.b16 %v902
      %v1446 = vunpack.c.l.b16 %v903
      %v1447 = vunpack.c.h.b16 %v903
      %v1448 = vunpack.c.l.b16 %v904
      %v1449 = vunpack.c.h.b16 %v904
      %v1450 = vunpack.c.l.b16 %v905
      %v1451 = vunpack.c.h.b16 %v905
      %v1452 = vunpack.c.l.b16 %v906
      %v1453 = vunpack.c.h.b16 %v906
      %v1454 = vunpack.c.l.b16 %v907
      %v1455 = vunpack.c.h.b16 %v907
      %v1456 = vunpack.c.l.b16 %v908
      %v1457 = vunpack.c.h.b16 %v908
      %v1458 = vunpack.c.l.b16 %v909
      %v1459 = vunpack.c.h.b16 %v909
      %v1460 = vunpack.c.l.b16 %v910
      %v1461 = vunpack.c.h.b16 %v910
      %v1462 = vunpack.c.l.b16 %v911
      %v1463 = vunpack.c.h.b16 %v911
      %v1464 = vunpack.c.l.b16 %v912
      %v1465 = vunpack.c.h.b16 %v912
      %v1466 = vunpack.c.l.b16 %v913
      %v1467 = vunpack.c.h.b16 %v913
      %v1468 = vunpack.c.l.b16 %v914
      %v1469 = vunpack.c.h.b16 %v914
      %v1470 = vunpack.c.l.b16 %v915
      %v1471 = vunpack.c.h.b16 %v915
      %v1472 = vunpack.c.l.b16 %v916
      %v1473 = vunpack.c.h.b16 %v916
      %v1474 = vunpack.c.l.b16 %v917
      %v1475 = vunpack.c.h.b16 %v917
      %v1476 = vunpack.c.l.b16 %v918
      %v1477 = vunpack.c.h.b16 %v918
      %v1478 = vunpack.c.l.b16 %v919
      %v1479 = vunpack.c.h.b16 %v919
      %v1480 = vunpack.c.l.b16 %v920
      %v1481 = vunpack.c.h.b16 %v920
      %v1482 = vunpack.c.l.b16 %v921
      %v1483 = vunpack.c.h.b16 %v921
      %v1484 = vunpack.c.l.b16 %v922
      %v1485 = vunpack.c.h.b16 %v922
      %v1486 = vunpack.c.l.b16 %v923
      %v1487 = vunpack.c.h.b16 %v923
      %v1488 = vunpack.c.l.b16 %v924
      %v1489 = vunpack.c.h.b16 %v924
      %v1490 = vunpack.c.l.b16 %v925
      %v1491 = vunpack.c.h.b16 %v925
      %v1492 = vunpack.c.l.b16 %v926
      %v1493 = vunpack.c.h.b16 %v926
      %v1494 = vunpack.c.l.b16 %v927
      %v1495 = vunpack.c.h.b16 %v927
      %v1496 = vunpack.c.l.b16 %v928
      %v1497 = vunpack.c.h.b16 %v928
      %v1498 = vunpack.c.l.b16 %v929
      %v1499 = vunpack.c.h.b16 %v929
      %v1500 = vunpack.c.l.b16 %v930
      %v1501 = vunpack.c.h.b16 %v930
      %v1502 = vunpack.c.l.b16 %v931
      %v1503 = vunpack.c.h.b16 %v931
      %v1504 = vunpack.c.l.b16 %v932
      %v1505 = vunpack.c.h.b16 %v932
      %v1506 = vunpack.c.l.b16 %v933
      %v1507 = vunpack.c.h.b16 %v933
      %v1508 = vunpack.c.l.b16 %v934
      %v1509 = vunpack.c.h.b16 %v934
      %v1510 = vunpack.c.l.b16 %v935
      %v1511 = vunpack.c.h.b16 %v935
      %v1512 = vunpack.c.l.b16 %v936
      %v1513 = vunpack.c.h.b16 %v936
      %v1514 = vunpack.c.l.b16 %v937
      %v1515 = vunpack.c.h.b16 %v937
      %v1516 = vunpack.c.l.b16 %v938
      %v1517 = vunpack.c.h.b16 %v938
      %v1518 = vunpack.c.l.b16 %v939
      %v1519 = vunpack.c.h.b16 %v939
      %v1520 = vunpack.c.l.b16 %v940
      %v1521 = vunpack.c.h.b16 %v940
      %v1522 = vunpack.c.l.b16 %v941
      %v1523 = vunpack.c.h.b16 %v941
      %v1524 = vunpack.c.l.b16 %v942
      %v1525 = vunpack.c.h.b16 %v942
      %v1526 = vunpack.c.l.b16 %v943
      %v1527 = vunpack.c.h.b16 %v943
      %v1528 = vunpack.c.l.b16 %v944
      %v1529 = vunpack.c.h.b16 %v944
      %v1530 = vunpack.c.l.b16 %v945
      %v1531 = vunpack.c.h.b16 %v945
      %v1532 = vunpack.c.l.b16 %v946
      %v1533 = vunpack.c.h.b16 %v946
      %v1534 = vunpack.c.l.b16 %v947
      %v1535 = vunpack.c.h.b16 %v947
      %v1536 = vunpack.c.l.b16 %v948
      %v1537 = vunpack.c.h.b16 %v948
      %v1538 = vunpack.c.l.b16 %v949
      %v1539 = vunpack.c.h.b16 %v949
      %v1540 = vunpack.c.l.b16 %v950
      %v1541 = vunpack.c.h.b16 %v950
      %v1542 = vunpack.c.l.b16 %v951
      %v1543 = vunpack.c.h.b16 %v951
      %v1544 = vunpack.c.l.b16 %v952
      %v1545 = vunpack.c.h.b16 %v952
      %v1546 = vunpack.c.l.b16 %v953
      %v1547 = vunpack.c.h.b16 %v953
      %v1548 = vunpack.c.l.b16 %v954
      %v1549 = vunpack.c.h.b16 %v954
      %v1550 = vunpack.c.l.b16 %v955
      %v1551 = vunpack.c.h.b16 %v955
      %v1552 = vunpack.c.l.b16 %v956
      %v1553 = vunpack.c.h.b16 %v956
      %v1554 = vunpack.c.l.b16 %v957
      %v1555 = vunpack.c.h.b16 %v957
      %v1556 = vunpack.c.l.b16 %v958
      %v1557 = vunpack.c.h.b16 %v958
      %v1558 = vunpack.c.l.b16 %v959
      %v1559 = vunpack.c.h.b16 %v959
      %v1560 = vunpack.c.l.b16 %v960
      %v1561 = vunpack.c.h.b16 %v960
      %v1562 = vunpack.c.l.b16 %v961
      %v1563 = vunpack.c.h.b16 %v961
      %v1564 = vunpack.c.l.b16 %v962
      %v1565 = vunpack.c.h.b16 %v962
      %v1566 = vunpack.c.l.b16 %v963
      %v1567 = vunpack.c.h.b16 %v963
      %v1568 = vunpack.c.l.b16 %v964
      %v1569 = vunpack.c.h.b16 %v964
      %v1570 = vunpack.c.l.b16 %v965
      %v1571 = vunpack.c.h.b16 %v965
      %v1572 = vunpack.c.l.b16 %v966
      %v1573 = vunpack.c.h.b16 %v966
      %v1574 = vunpack.c.l.b16 %v967
      %v1575 = vunpack.c.h.b16 %v967
      %v1576 = vunpack.c.l.b16 %v968
      %v1577 = vunpack.c.h.b16 %v968
      %v1578 = vunpack.c.l.b16 %v969
      %v1579 = vunpack.c.h.b16 %v969
      %v1580 = vunpack.c.l.b16 %v970
      %v1581 = vunpack.c.h.b16 %v970
      %v1582 = vunpack.c.l.b16 %v971
      %v1583 = vunpack.c.h.b16 %v971
      %v1584 = vunpack.c.l.b16 %v972
      %v1585 = vunpack.c.h.b16 %v972
      %v1586 = vunpack.c.l.b16 %v973
      %v1587 = vunpack.c.h.b16 %v973
      %v1588 = vunpack.c.l.b16 %v974
      %v1589 = vunpack.c.h.b16 %v974
      %v1590 = vunpack.c.l.b16 %v975
      %v1591 = vunpack.c.h.b16 %v975
      %v1592 = vunpack.c.l.b16 %v976
      %v1593 = vunpack.c.h.b16 %v976
      %v1594 = vunpack.c.l.b16 %v977
      %v1595 = vunpack.c.h.b16 %v977
      %v1596 = vunpack.c.l.b16 %v978
      %v1597 = vunpack.c.h.b16 %v978
      %v1598 = vunpack.c.l.b16 %v979
      %v1599 = vunpack.c.h.b16 %v979
      %v1600 = vunpack.c.l.b16 %v980
      %v1601 = vunpack.c.h.b16 %v980
      %v1602 = vunpack.c.l.b16 %v981
      %v1603 = vunpack.c.h.b16 %v981
      %v1604 = vunpack.c.l.b16 %v982
      %v1605 = vunpack.c.h.b16 %v982
      %v1606 = vunpack.c.l.b16 %v983
      %v1607 = vunpack.c.h.b16 %v983
      %v1608 = vunpack.c.l.b16 %v984
      %v1609 = vunpack.c.h.b16 %v984
      %v1610 = vunpack.c.l.b16 %v985
      %v1611 = vunpack.c.h.b16 %v985
      %v1612 = vunpack.c.l.b16 %v986
      %v1613 = vunpack.c.h.b16 %v986
      %v1614 = vunpack.c.l.b16 %v987
      %v1615 = vunpack.c.h.b16 %v987
      %v1616 = vunpack.c.l.b16 %v988
      %v1617 = vunpack.c.h.b16 %v988
      %v1618 = vunpack.c.l.b16 %v989
      %v1619 = vunpack.c.h.b16 %v989
      %v1620 = vunpack.c.l.b16 %v990
      %v1621 = vunpack.c.h.b16 %v990
      %v1622 = vunpack.c.l.b16 %v991
      %v1623 = vunpack.c.h.b16 %v991
      %v1624 = vunpack.c.l.b16 %v992
      %v1625 = vunpack.c.h.b16 %v992
      %v1626 = vunpack.c.l.b16 %v993
      %v1627 = vunpack.c.h.b16 %v993
      %v1628 = vunpack.c.l.b16 %v994
      %v1629 = vunpack.c.h.b16 %v994
      %v1630 = vunpack.c.l.b16 %v995
      %v1631 = vunpack.c.h.b16 %v995
      %v1632 = vunpack.c.l.b16 %v996
      %v1633 = vunpack.c.h.b16 %v996
      %v1634 = vunpack.c.l.b16 %v997
      %v1635 = vunpack.c.h.b16 %v997
      %v1636 = vunpack.c.l.b16 %v998
      %v1637 = vunpack.c.h.b16 %v998
      %v1638 = vunpack.c.l.b16 %v999
      %v1639 = vunpack.c.h.b16 %v999
      %v1640 = vunpack.c.l.b16 %v1000
      %v1641 = vunpack.c.h.b16 %v1000
      %v1642 = vunpack.c.l.b16 %v1001
      %v1643 = vunpack.c.h.b16 %v1001
      %v1644 = vunpack.c.l.b16 %v1002
      %v1645 = vunpack.c.h.b16 %v1002
      %v1646 = vunpack.c.l.b16 %v1003
      %v1647 = vunpack.c.h.b16 %v1003
      %v1648 = vunpack.c.l.b16 %v1004
      %v1649 = vunpack.c.h.b16 %v1004
      %v1650 = vunpack.c.l.b16 %v1005
      %v1651 = vunpack.c.h.b16 %v1005
      %v1652 = vunpack.c.l.b16 %v1006
      %v1653 = vunpack.c.h.b16 %v1006
      %v1654 = vunpack.c.l.b16 %v1007
      %v1655 = vunpack.c.h.b16 %v1007
      %v1656 = vunpack.c.l.b16 %v1008
      %v1657 = vunpack.c.h.b16 %v1008
      %v1658 = vunpack.c.l.b16 %v1009
      %v1659 = vunpack.c.h.b16 %v1009
      %v1660 = vunpack.c.l.b16 %v1010
      %v1661 = vunpack.c.h.b16 %v1010
      %v1662 = vunpack.c.l.b16 %v1011
      %v1663 = vunpack.c.h.b16 %v1011
      %v1664 = vunpack.c.l.b16 %v1012
      %v1665 = vunpack.c.h.b16 %v1012
      %v1666 = vunpack.c.l.b16 %v1013
      %v1667 = vunpack.c.h.b16 %v1013
      %v1668 = vunpack.c.l.b16 %v1014
      %v1669 = vunpack.c.h.b16 %v1014
      %v1670 = vunpack.c.l.b16 %v1015
      %v1671 = vunpack.c.h.b16 %v1015
      %v1672 = vunpack.c.l.b16 %v1016
      %v1673 = vunpack.c.h.b16 %v1016
      %v1674 = vunpack.c.l.b16 %v1017
      %v1675 = vunpack.c.h.b16 %v1017
      %v1676 = vunpack.c.l.b16 %v1018
      %v1677 = vunpack.c.h.b16 %v1018
      %v1678 = vunpack.c.l.b16 %v1019
      %v1679 = vunpack.c.h.b16 %v1019
      %v1680 = vunpack.c.l.b16 %v1020
      %v1681 = vunpack.c.h.b16 %v1020
      %v1682 = vunpack.c.l.b16 %v1021
      %v1683 = vunpack.c.h.b16 %v1021
      %v1684 = vunpack.c.l.b16 %v1022
      %v1685 = vunpack.c.h.b16 %v1022
      %v1686 = vunpack.c.l.b16 %v1023
      %v1687 = vunpack.c.h.b16 %v1023
      %v1688 = vunpack.c.l.b16 %v1024
      %v1689 = vunpack.c.h.b16 %v1024
      %v1690 = vunpack.c.l.b16 %v1025
      %v1691 = vunpack.c.h.b16 %v1025
      %v1692 = vunpack.c.l.b16 %v1026
      %v1693 = vunpack.c.h.b16 %v1026
      %v1694 = vunpack.c.l.b16 %v1027
      %v1695 = vunpack.c.h.b16 %v1027
      %v1696 = vunpack.c.l.b16 %v1028
      %v1697 = vunpack.c.h.b16 %v1028
      %v1698 = vunpack.c.l.b16 %v1029
      %v1699 = vunpack.c.h.b16 %v1029
      %v1700 = vunpack.c.l.b16 %v1030
      %v1701 = vunpack.c.h.b16 %v1030
      %v1702 = vunpack.c.l.b16 %v1031
      %v1703 = vunpack.c.h.b16 %v1031
      %v1704 = vunpack.c.l.b16 %v1032
      %v1705 = vunpack.c.h.b16 %v1032
      %v1706 = vunpack.c.l.b16 %v1033
      %v1707 = vunpack.c.h.b16 %v1033
      %v1708 = vunpack.c.l.b16 %v1034
      %v1709 = vunpack.c.h.b16 %v1034
      %v1710 = vunpack.c.l.b16 %v1035
      %v1711 = vunpack.c.h.b16 %v1035
      %v1712 = vunpack.c.l.b16 %v1036
      %v1713 = vunpack.c.h.b16 %v1036
      %v1714 = vunpack.c.l.b16 %v1037
      %v1715 = vunpack.c.h.b16 %v1037
      %v1716 = vunpack.c.l.b16 %v1038
      %v1717 = vunpack.c.h.b16 %v1038
      %v1718 = vunpack.c.l.b16 %v1039
      %v1719 = vunpack.c.h.b16 %v1039
      %v1720 = vunpack.c.l.b16 %v1040
      %v1721 = vunpack.c.h.b16 %v1040
      %v1722 = vunpack.c.l.b16 %v1041
      %v1723 = vunpack.c.h.b16 %v1041
      %v1724 = vunpack.c.l.b16 %v1042
      %v1725 = vunpack.c.h.b16 %v1042
      %v1726 = vunpack.c.l.b16 %v1043
      %v1727 = vunpack.c.h.b16 %v1043
      %v1728 = vunpack.c.l.b16 %v1044
      %v1729 = vunpack.c.h.b16 %v1044
      %v1730 = vunpack.c.l.b16 %v1045
      %v1731 = vunpack.c.h.b16 %v1045
      %v1732 = vunpack.c.l.b16 %v1046
      %v1733 = vunpack.c.h.b16 %v1046
      %v1734 = vunpack.c.l.b16 %v1047
      %v1735 = vunpack.c.h.b16 %v1047
      %v1736 = vunpack.c.l.b16 %v1048
      %v1737 = vunpack.c.h.b16 %v1048
      %v1738 = vunpack.c.l.b16 %v1049
      %v1739 = vunpack.c.h.b16 %v1049
      %v1740 = vunpack.c.l.b16 %v1050
      %v1741 = vunpack.c.h.b16 %v1050
      %v1742 = vunpack.c.l.b16 %v1051
      %v1743 = vunpack.c.h.b16 %v1051
      %v1744 = vunpack.c.l.b16 %v1052
      %v1745 = vunpack.c.h.b16 %v1052
      %v1746 = vunpack.c.l.b16 %v1053
      %v1747 = vunpack.c.h.b16 %v1053
      %v1748 = vunpack.c.l.b16 %v1054
      %v1749 = vunpack.c.h.b16 %v1054
      %v1750 = vunpack.c.l.b16 %v1055
      %v1751 = vunpack.c.h.b16 %v1055
      %v1752 = vunpack.c.l.b16 %v1056
      %v1753 = vunpack.c.h.b16 %v1056
      %v1754 = vunpack.c.l.b16 %v1057
      %v1755 = vunpack.c.h.b16 %v1057
      %v1756 = vunpack.c.l.b16 %v1058
      %v1757 = vunpack.c.h.b16 %v1058
      %v1758 = vunpack.c.l.b16 %v1059
      %v1759 = vunpack.c.h.b16 %v1059
      %v1760 = vunpack.c.l.b16 %v1060
      %v1761 = vunpack.c.h.b16 %v1060
      %v1762 = vunpack.c.l.b16 %v1061
      %v1763 = vunpack.c.h.b16 %v1061
      %v1764 = vunpack.c.l.b16 %v1062
      %v1765 = vunpack.c.h.b16 %v1062
      %v1766 = vunpack.c.l.b16 %v1063
      %v1767 = vunpack.c.h.b16 %v1063
      %v1768 = vunpack.c.l.b16 %v1064
      %v1769 = vunpack.c.h.b16 %v1064
      %v1770 = vunpack.c.l.b16 %v1065
      %v1771 = vunpack.c.h.b16 %v1065
      %v1772 = vunpack.c.l.b16 %v1066
      %v1773 = vunpack.c.h.b16 %v1066
      %v1774 = vunpack.c.l.b16 %v1067
      %v1775 = vunpack.c.h.b16 %v1067
      %v1776 = vunpack.c.l.b16 %v1068
      %v1777 = vunpack.c.h.b16 %v1068
      %v1778 = vunpack.c.l.b16 %v1069
      %v1779 = vunpack.c.h.b16 %v1069
      %v1780 = vunpack.c.l.b16 %v1070
      %v1781 = vunpack.c.h.b16 %v1070
      %v1782 = vunpack.c.l.b16 %v1071
      %v1783 = vunpack.c.h.b16 %v1071
      %v1784 = vunpack.c.l.b16 %v1072
      %v1785 = vunpack.c.h.b16 %v1072
      %v1786 = vunpack.c.l.b16 %v1073
      %v1787 = vunpack.c.h.b16 %v1073
      %v1788 = vunpack.c.l.b16 %v1074
      %v1789 = vunpack.c.h.b16 %v1074
      %v1790 = vunpack.c.l.b16 %v1075
      %v1791 = vunpack.c.h.b16 %v1075
      %v1792 = vunpack.c.l.b16 %v1076
      %v1793 = vunpack.c.h.b16 %v1076
      %v1794 = vunpack.c.l.b16 %v1077
      %v1795 = vunpack.c.h.b16 %v1077
      %v1796 = vunpack.c.l.b16 %v1078
      %v1797 = vunpack.c.h.b16 %v1078
      %v1798 = vunpack.c.l.b16 %v1079
      %v1799 = vunpack.c.h.b16 %v1079
      %v1800 = vunpack.c.l.b16 %v1080
      %v1801 = vunpack.c.h.b16 %v1080
      %v1802 = vunpack.c.l.b16 %v1081
      %v1803 = vunpack.c.h.b16 %v1081
      %v1804 = vunpack.c.l.b16 %v1082
      %v1805 = vunpack.c.h.b16 %v1082
      %v1806 = vunpack.c.l.b16 %v1083
      %v1807 = vunpack.c.h.b16 %v1083
      %v1808 = vunpack.c.l.b16 %v1084
      %v1809 = vunpack.c.h.b16 %v1084
      %v1810 = vunpack.c.l.b16 %v1085
      %v1811 = vunpack.c.h.b16 %v1085
      %v1812 = vunpack.c.l.b16 %v1086
      %v1813 = vunpack.c.h.b16 %v1086
      %v1814 = vunpack.c.l.b16 %v1087
      %v1815 = vunpack.c.h.b16 %v1087
      %v1816 = vunpack.c.l.b16 %v1088
      %v1817 = vunpack.c.h.b16 %v1088
      %v1818 = vunpack.c.l.b16 %v1089
      %v1819 = vunpack.c.h.b16 %v1089
      %v1820 = vunpack.c.l.b16 %v1090
      %v1821 = vunpack.c.h.b16 %v1090
      %v1822 = vunpack.c.l.b16 %v1091
      %v1823 = vunpack.c.h.b16 %v1091
      %v1824 = vunpack.c.l.b16 %v1092
      %v1825 = vunpack.c.h.b16 %v1092
      %v1826 = vunpack.c.l.b16 %v1093
      %v1827 = vunpack.c.h.b16 %v1093
      %v1828 = vunpack.c.l.b16 %v1094
      %v1829 = vunpack.c.h.b16 %v1094
      %v1830 = vunpack.c.l.b16 %v1095
      %v1831 = vunpack.c.h.b16 %v1095
      %v1832 = vunpack.c.l.b16 %v1096
      %v1833 = vunpack.c.h.b16 %v1096
      %v1834 = vunpack.c.l.b16 %v1097
      %v1835 = vunpack.c.h.b16 %v1097
      %v1836 = vunpack.c.l.b16 %v1098
      %v1837 = vunpack.c.h.b16 %v1098
      %v1838 = vunpack.c.l.b16 %v1099
      %v1839 = vunpack.c.h.b16 %v1099
      %v1840 = vunpack.c.l.b16 %v1100
      %v1841 = vunpack.c.h.b16 %v1100
      %v1842 = vunpack.c.l.b16 %v1101
      %v1843 = vunpack.c.h.b16 %v1101
      %v1844 = vunpack.c.l.b16 %v1102
      %v1845 = vunpack.c.h.b16 %v1102
      %v1846 = vunpack.c.l.b16 %v1103
      %v1847 = vunpack.c.h.b16 %v1103
      %v1848 = vunpack.c.l.b16 %v1104
      %v1849 = vunpack.c.h.b16 %v1104
      %v1850 = vunpack.c.l.b16 %v1105
      %v1851 = vunpack.c.h.b16 %v1105
      %v1852 = vunpack.c.l.b16 %v1106
      %v1853 = vunpack.c.h.b16 %v1106
      %v1854 = vunpack.c.l.b16 %v1107
      %v1855 = vunpack.c.h.b16 %v1107
      %v1856 = vunpack.c.l.b16 %v1108
      %v1857 = vunpack.c.h.b16 %v1108
      %v1858 = vunpack.c.l.b16 %v1109
      %v1859 = vunpack.c.h.b16 %v1109
      %v1860 = vunpack.c.l.b16 %v1110
      %v1861 = vunpack.c.h.b16 %v1110
      %v1862 = vunpack.c.l.b16 %v1111
      %v1863 = vunpack.c.h.b16 %v1111
      %v1864 = vunpack.c.l.b16 %v1112
      %v1865 = vunpack.c.h.b16 %v1112
      %v1866 = vunpack.c.l.b16 %v1113
      %v1867 = vunpack.c.h.b16 %v1113
      %v1868 = vunpack.c.l.b16 %v1114
      %v1869 = vunpack.c.h.b16 %v1114
      %v1870 = vunpack.c.l.b16 %v1115
      %v1871 = vunpack.c.h.b16 %v1115
      %v1872 = vunpack.c.l.b16 %v1116
      %v1873 = vunpack.c.h.b16 %v1116
      %v1874 = vunpack.c.l.b16 %v1117
      %v1875 = vunpack.c.h.b16 %v1117
      %v1876 = vunpack.c.l.b16 %v1118
      %v1877 = vunpack.c.h.b16 %v1118
      %v1878 = vunpack.c.l.b16 %v1119
      %v1879 = vunpack.c.h.b16 %v1119
      %v1880 = vunpack.c.l.b16 %v1120
      %v1881 = vunpack.c.h.b16 %v1120
      %v1882 = vunpack.c.l.b16 %v1121
      %v1883 = vunpack.c.h.b16 %v1121
      %v1884 = vunpack.c.l.b16 %v1122
      %v1885 = vunpack.c.h.b16 %v1122
      %v1886 = vunpack.c.l.b16 %v1123
      %v1887 = vunpack.c.h.b16 %v1123
      %v1888 = vunpack.c.l.b16 %v1124
      %v1889 = vunpack.c.h.b16 %v1124
      %v1890 = vunpack.c.l.b16 %v1125
      %v1891 = vunpack.c.h.b16 %v1125
      %v1892 = vunpack.c.l.b16 %v1126
      %v1893 = vunpack.c.h.b16 %v1126
      %v1894 = vunpack.c.l.b16 %v1127
      %v1895 = vunpack.c.h.b16 %v1127
      %v1896 = vunpack.c.l.b16 %v1128
      %v1897 = vunpack.c.h.b16 %v1128
      %v1898 = vunpack.c.l.b16 %v1129
      %v1899 = vunpack.c.h.b16 %v1129
      %v1900 = vunpack.c.l.b16 %v1130
      %v1901 = vunpack.c.h.b16 %v1130
      %v1902 = vunpack.c.l.b16 %v1131
      %v1903 = vunpack.c.h.b16 %v1131
      %v1904 = vunpack.c.l.b16 %v1132
      %v1905 = vunpack.c.h.b16 %v1132
      %v1906 = vunpack.c.l.b16 %v1133
      %v1907 = vunpack.c.h.b16 %v1133
      %v1908 = vunpack.c.l.b16 %v1134
      %v1909 = vunpack.c.h.b16 %v1134
      %v1910 = vunpack.c.l.b16 %v1135
      %v1911 = vunpack.c.h.b16 %v1135
      %v1912 = vunpack.c.l.b16 %v1136
      %v1913 = vunpack.c.h.b16 %v1136
      %v1914 = vunpack.c.l.b16 %v1137
      %v1915 = vunpack.c.h.b16 %v1137
      %v1916 = vunpack.c.l.b16 %v1138
      %v1917 = vunpack.c.h.b16 %v1138
      %v1918 = vunpack.c.l.b16 %v1139
      %v1919 = vunpack.c.h.b16 %v1139
      %v1920 = vunpack.c.l.b16 %v1140
      %v1921 = vunpack.c.h.b16 %v1140
      %v1922 = vunpack.c.l.b16 %v1141
      %v1923 = vunpack.c.h.b16 %v1141
      %v1924 = vunpack.c.l.b16 %v1142
      %v1925 = vunpack.c.h.b16 %v1142
      %v1926 = vunpack.c.l.b16 %v1143
      %v1927 = vunpack.c.h.b16 %v1143
      %v1928 = vunpack.c.l.b16 %v1144
      %v1929 = vunpack.c.h.b16 %v1144
      %v1930 = vunpack.c.l.b16 %v1145
      %v1931 = vunpack.c.h.b16 %v1145
      %v1932 = vpack.c.b16 %v1428, %v1420
      %v1933 = vpack.c.b16 %v1429, %v1421
      %v1934 = vpack.c.b16 %v1430, %v1422
      %v1935 = vpack.c.b16 %v1431, %v1423
      %v1936 = vpack.c.b16 %v1432, %v1424
      %v1937 = vpack.c.b16 %v1433, %v1425
      %v1938 = vpack.c.b16 %v1434, %v1426
      %v1939 = vpack.c.b16 %v1435, %v1427
      %v1940 = vpack.c.b16 %v1444, %v1436
      %v1941 = vpack.c.b16 %v1445, %v1437
      %v1942 = vpack.c.b16 %v1446, %v1438
      %v1943 = vpack.c.b16 %v1447, %v1439
      %v1944 = vpack.c.b16 %v1448, %v1440
      %v1945 = vpack.c.b16 %v1449, %v1441
      %v1946 = vpack.c.b16 %v1450, %v1442
      %v1947 = vpack.c.b16 %v1451, %v1443
      %v1948 = vpack.c.b16 %v1460, %v1452
      %v1949 = vpack.c.b16 %v1461, %v1453
      %v1950 = vpack.c.b16 %v1462, %v1454
      %v1951 = vpack.c.b16 %v1463, %v1455
      %v1952 = vpack.c.b16 %v1464, %v1456
      %v1953 = vpack.c.b16 %v1465, %v1457
      %v1954 = vpack.c.b16 %v1466, %v1458
      %v1955 = vpack.c.b16 %v1467, %v1459
      %v1956 = vpack.c.b16 %v1476, %v1468
      %v1957 = vpack.c.b16 %v1477, %v1469
      %v1958 = vpack.c.b16 %v1478, %v1470
      %v1959 = vpack.c.b16 %v1479, %v1471
      %v1960 = vpack.c.b16 %v1480, %v1472
      %v1961 = vpack.c.b16 %v1481, %v1473
      %v1962 = vpack.c.b16 %v1482, %v1474
      %v1963 = vpack.c.b16 %v1483, %v1475
      %v1964 = vpack.c.b16 %v1492, %v1484
      %v1965 = vpack.c.b16 %v1493, %v1485
      %v1966 = vpack.c.b16 %v1494, %v1486
      %v1967 = vpack.c.b16 %v1495, %v1487
      %v1968 = vpack.c.b16 %v1496, %v1488
      %v1969 = vpack.c.b16 %v1497, %v1489
      %v1970 = vpack.c.b16 %v1498, %v1490
      %v1971 = vpack.c.b16 %v1499, %v1491
      %v1972 = vpack.c.b16 %v1508, %v1500
      %v1973 = vpack.c.b16 %v1509, %v1501
      %v1974 = vpack.c.b16 %v1510, %v1502
      %v1975 = vpack.c.b16 %v1511, %v1503
      %v1976 = vpack.c.b16 %v1512, %v1504
      %v1977 = vpack.c.b16 %v1513, %v1505
      %v1978 = vpack.c.b16 %v1514, %v1506
      %v1979 = vpack.c.b16 %v1515, %v1507
      %v1980 = vpack.c.b16 %v1524, %v1516
      %v1981 = vpack.c.b16 %v1525, %v1517
      %v1982 = vpack.c.b16 %v1526, %v1518
      %v1983 = vpack.c.b16 %v1527, %v1519
      %v1984 = vpack.c.b16 %v1528, %v1520
      %v1985 = vpack.c.b16 %v1529, %v1521
      %v1986 = vpack.c.b16 %v1530, %v1522
      %v1987 = vpack.c.b16 %v1531, %v1523
      %v1988 = vpack.c.b16 %v1540, %v1532
      %v1989 = vpack.c.b16 %v1541, %v1533
      %v1990 = vpack.c.b16 %v1542, %v1534
      %v1991 = vpack.c.b16 %v1543, %v1535
      %v1992 = vpack.c.b16 %v1544, %v1536
      %v1993 = vpack.c.b16 %v1545, %v1537
      %v1994 = vpack.c.b16 %v1546, %v1538
      %v1995 = vpack.c.b16 %v1547, %v1539
      %v1996 = vpack.c.b16 %v1556, %v1548
      %v1997 = vpack.c.b16 %v1557, %v1549
      %v1998 = vpack.c.b16 %v1558, %v1550
      %v1999 = vpack.c.b16 %v1559, %v1551
      %v2000 = vpack.c.b16 %v1560, %v1552
      %v2001 = vpack.c.b16 %v1561, %v1553
      %v2002 = vpack.c.b16 %v1562, %v1554
      %v2003 = vpack.c.b16 %v1563, %v1555
      %v2004 = vpack.c.b16 %v1572, %v1564
      %v2005 = vpack.c.b16 %v1573, %v1565
      %v2006 = vpack.c.b16 %v1574, %v1566
      %v2007 = vpack.c.b16 %v1575, %v1567
      %v2008 = vpack.c.b16 %v1576, %v1568
      %v2009 = vpack.c.b16 %v1577, %v1569
      %v2010 = vpack.c.b16 %v1578, %v1570
      %v2011 = vpack.c.b16 %v1579, %v1571
      %v2012 = vpack.c.b16 %v1588, %v1580
      %v2013 = vpack.c.b16 %v1589, %v1581
      %v2014 = vpack.c.b16 %v1590, %v1582
      %v2015 = vpack.c.b16 %v1591, %v1583
      %v2016 = vpack.c.b16 %v1592, %v1584
      %v2017 = vpack.c.b16 %v1593, %v1585
      %v2018 = vpack.c.b16 %v1594, %v1586
      %v2019 = vpack.c.b16 %v1595, %v1587
      %v2020 = vpack.c.b16 %v1604, %v1596
      %v2021 = vpack.c.b16 %v1605, %v1597
      %v2022 = vpack.c.b16 %v1606, %v1598
      %v2023 = vpack.c.b16 %v1607, %v1599
      %v2024 = vpack.c.b16 %v1608, %v1600
      %v2025 = vpack.c.b16 %v1609, %v1601
      %v2026 = vpack.c.b16 %v1610, %v1602
      %v2027 = vpack.c.b16 %v1611, %v1603
      %v2028 = vpack.c.b16 %v1620, %v1612
      %v2029 = vpack.c.b16 %v1621, %v1613
      %v2030 = vpack.c.b16 %v1622, %v1614
      %v2031 = vpack.c.b16 %v1623, %v1615
      %v2032 = vpack.c.b16 %v1624, %v1616
      %v2033 = vpack.c.b16 %v1625, %v1617
      %v2034 = vpack.c.b16 %v1626, %v1618
      %v2035 = vpack.c.b16 %v1627, %v1619
      %v2036 = vpack.c.b16 %v1636, %v1628
      %v2037 = vpack.c.b16 %v1637, %v1629
      %v2038 = vpack.c.b16 %v1638, %v1630
      %v2039 = vpack.c.b16 %v1639, %v1631
      %v2040 = vpack.c.b16 %v1640, %v1632
      %v2041 = vpack.c.b16 %v1641, %v1633
      %v2042 = vpack.c.b16 %v1642, %v1634
      %v2043 = vpack.c.b16 %v1643, %v1635
      %v2044 = vpack.c.b16 %v1652, %v1644
      %v2045 = vpack.c.b16 %v1653, %v1645
      %v2046 = vpack.c.b16 %v1654, %v1646
      %v2047 = vpack.c.b16 %v1655, %v1647
      %v2048 = vpack.c.b16 %v1656, %v1648
      %v2049 = vpack.c.b16 %v1657, %v1649
      %v2050 = vpack.c.b16 %v1658, %v1650
      %v2051 = vpack.c.b16 %v1659, %v1651
      %v2052 = vpack.c.b16 %v1668, %v1660
      %v2053 = vpack.c.b16 %v1669, %v1661
      %v2054 = vpack.c.b16 %v1670, %v1662
      %v2055 = vpack.c.b16 %v1671, %v1663
      %v2056 = vpack.c.b16 %v1672, %v1664
      %v2057 = vpack.c.b16 %v1673, %v1665
      %v2058 = vpack.c.b16 %v1674, %v1666
      %v2059 = vpack.c.b16 %v1675, %v1667
      %v2060 = vpack.c.b16 %v1684, %v1676
      %v2061 = vpack.c.b16 %v1685, %v1677
      %v2062 = vpack.c.b16 %v1686, %v1678
      %v2063 = vpack.c.b16 %v1687, %v1679
      %v2064 = vpack.c.b16 %v1688, %v1680
      %v2065 = vpack.c.b16 %v1689, %v1681
      %v2066 = vpack.c.b16 %v1690, %v1682
      %v2067 = vpack.c.b16 %v1691, %v1683
      %v2068 = vpack.c.b16 %v1700, %v1692
      %v2069 = vpack.c.b16 %v1701, %v1693
      %v2070 = vpack.c.b16 %v1702, %v1694
      %v2071 = vpack.c.b16 %v1703, %v1695
      %v2072 = vpack.c.b16 %v1704, %v1696
      %v2073 = vpack.c.b16 %v1705, %v1697
      %v2074 = vpack.c.b16 %v1706, %v1698
      %v2075 = vpack.c.b16 %v1707, %v1699
      %v2076 = vpack.c.b16 %v1716, %v1708
      %v2077 = vpack.c.b16 %v1717, %v1709
      %v2078 = vpack.c.b16 %v1718, %v1710
      %v2079 = vpack.c.b16 %v1719, %v1711
      %v2080 = vpack.c.b16 %v1720, %v1712
      %v2081 = vpack.c.b16 %v1721, %v1713
      %v2082 = vpack.c.b16 %v1722, %v1714
      %v2083 = vpack.c.b16 %v1723, %v1715
      %v2084 = vpack.c.b16 %v1732, %v1724
      %v2085 = vpack.c.b16 %v1733, %v1725
      %v2086 = vpack.c.b16 %v1734, %v1726
      %v2087 = vpack.c.b16 %v1735, %v1727
      %v2088 = vpack.c.b16 %v1736, %v1728
      %v2089 = vpack.c.b16 %v1737, %v1729
      %v2090 = vpack.c.b16 %v1738, %v1730
      %v2091 = vpack.c.b16 %v1739, %v1731
      %v2092 = vpack.c.b16 %v1748, %v1740
      %v2093 = vpack.c.b16 %v1749, %v1741
      %v2094 = vpack.c.b16 %v1750, %v1742
      %v2095 = vpack.c.b16 %v1751, %v1743
      %v2096 = vpack.c.b16 %v1752, %v1744
      %v2097 = vpack.c.b16 %v1753, %v1745
      %v2098 = vpack.c.b16 %v1754, %v1746
      %v2099 = vpack.c.b16 %v1755, %v1747
      %v2100 = vpack.c.b16 %v1764, %v1756
      %v2101 = vpack.c.b16 %v1765, %v1757
      %v2102 = vpack.c.b16 %v1766, %v1758
      %v2103 = vpack.c.b16 %v1767, %v1759
      %v2104 = vpack.c.b16 %v1768, %v1760
      %v2105 = vpack.c.b16 %v1769, %v1761
      %v2106 = vpack.c.b16 %v1770, %v1762
      %v2107 = vpack.c.b16 %v1771, %v1763
      %v2108 = vpack.c.b16 %v1780, %v1772
      %v2109 = vpack.c.b16 %v1781, %v1773
      %v2110 = vpack.c.b16 %v1782, %v1774
      %v2111 = vpack.c.b16 %v1783, %v1775
      %v2112 = vpack.c.b16 %v1784, %v1776
      %v2113 = vpack.c.b16 %v1785, %v1777
      %v2114 = vpack.c.b16 %v1786, %v1778
      %v2115 = vpack.c.b16 %v1787, %v1779
      %v2116 = vpack.c.b16 %v1796, %v1788
      %v2117 = vpack.c.b16 %v1797, %v1789
      %v2118 = vpack.c.b16 %v1798, %v1790
      %v2119 = vpack.c.b16 %v1799, %v1791
      %v2120 = vpack.c.b16 %v1800, %v1792
      %v2121 = vpack.c.b16 %v1801, %v1793
      %v2122 = vpack.c.b16 %v1802, %v1794
      %v2123 = vpack.c.b16 %v1803, %v1795
      %v2124 = vpack.c.b16 %v1812, %v1804
      %v2125 = vpack.c.b16 %v1813, %v1805
      %v2126 = vpack.c.b16 %v1814, %v1806
      %v2127 = vpack.c.b16 %v1815, %v1807
      %v2128 = vpack.c.b16 %v1816, %v1808
      %v2129 = vpack.c.b16 %v1817, %v1809
      %v2130 = vpack.c.b16 %v1818, %v1810
      %v2131 = vpack.c.b16 %v1819, %v1811
      %v2132 = vpack.c.b16 %v1828, %v1820
      %v2133 = vpack.c.b16 %v1829, %v1821
      %v2134 = vpack.c.b16 %v1830, %v1822
      %v2135 = vpack.c.b16 %v1831, %v1823
      %v2136 = vpack.c.b16 %v1832, %v1824
      %v2137 = vpack.c.b16 %v1833, %v1825
      %v2138 = vpack.c.b16 %v1834, %v1826
      %v2139 = vpack.c.b16 %v1835, %v1827
      %v2140 = vpack.c.b16 %v1844, %v1836
      %v2141 = vpack.c.b16 %v1845, %v1837
      %v2142 = vpack.c.b16 %v1846, %v1838
      %v2143 = vpack.c.b16 %v1847, %v1839
      %v2144 = vpack.c.b16 %v1848, %v1840
      %v2145 = vpack.c.b16 %v1849, %v1841
      %v2146 = vpack.c.b16 %v1850, %v1842
      %v2147 = vpack.c.b16 %v1851, %v1843
      %v2148 = vpack.c.b16 %v1860, %v1852
      %v2149 = vpack.c.b16 %v1861, %v1853
      %v2150 = vpack.c.b16 %v1862, %v1854
      %v2151 = vpack.c.b16 %v1863, %v1855
      %v2152 = vpack.c.b16 %v1864, %v1856
      %v2153 = vpack.c.b16 %v1865, %v1857
      %v2154 = vpack.c.b16 %v1866, %v1858
      %v2155 = vpack.c.b16 %v1867, %v1859
      %v2156 = vpack.c.b16 %v1876, %v1868
      %v2157 = vpack.c.b16 %v1877, %v1869
      %v2158 = vpack.c.b16 %v1878, %v1870
      %v2159 = vpack.c.b16 %v1879, %v1871
      %v2160 = vpack.c.b16 %v1880, %v1872
      %v2161 = vpack.c.b16 %v1881, %v1873
      %v2162 = vpack.c.b16 %v1882, %v1874
      %v2163 = vpack.c.b16 %v1883, %v1875
      %v2164 = vpack.c.b16 %v1892, %v1884
      %v2165 = vpack.c.b16 %v1893, %v1885
      %v2166 = vpack.c.b16 %v1894, %v1886
      %v2167 = vpack.c.b16 %v1895, %v1887
      %v2168 = vpack.c.b16 %v1896, %v1888
      %v2169 = vpack.c.b16 %v1897, %v1889
      %v2170 = vpack.c.b16 %v1898, %v1890
      %v2171 = vpack.c.b16 %v1899, %v1891
      %v2172 = vpack.c.b16 %v1908, %v1900
      %v2173 = vpack.c.b16 %v1909, %v1901
      %v2174 = vpack.c.b16 %v1910, %v1902
      %v2175 = vpack.c.b16 %v1911, %v1903
      %v2176 = vpack.c.b16 %v1912, %v1904
      %v2177 = vpack.c.b16 %v1913, %v1905
      %v2178 = vpack.c.b16 %v1914, %v1906
      %v2179 = vpack.c.b16 %v1915, %v1907
      %v2180 = vpack.c.b16 %v1924, %v1916
      %v2181 = vpack.c.b16 %v1925, %v1917
      %v2182 = vpack.c.b16 %v1926, %v1918
      %v2183 = vpack.c.b16 %v1927, %v1919
      %v2184 = vpack.c.b16 %v1928, %v1920
      %v2185 = vpack.c.b16 %v1929, %v1921
      %v2186 = vpack.c.b16 %v1930, %v1922
      %v2187 = vpack.c.b16 %v1931, %v1923
      %2444 = vmatpush.bf16.msra.mxu0 %v1988
      %2445 = vmatpush.bf16.msra.mxu0 %v1980
      %2446 = vmatpush.bf16.msra.mxu0 %v1972
      %2447 = vmatpush.bf16.msra.mxu0 %v1964
      %2448 = vmatpush.bf16.msra.mxu0 %v1956
      %2449 = vmatpush.bf16.msra.mxu0 %v1948
      %2450 = vmatpush.bf16.msra.mxu0 %v1940
      %2451 = vmatpush.bf16.msra.mxu0 %v1932
      %2452 = vmatmul.bf16.gmra.mxu0 %v886
      %v2453 = vpop.f32.mrf.mxu0
      %v2454 = vadd.f32 %v1148, %v2453
      %v2455 = vpop.f32.mrf.mxu0
      %v2456 = vadd.f32 %v1148, %v2455
      %2457 = vdwg.mxu0
      %2458 = vmatpush.bf16.msra.mxu0 %v2052
      %2459 = vmatpush.bf16.msra.mxu0 %v2044
      %2460 = vmatpush.bf16.msra.mxu0 %v2036
      %2461 = vmatpush.bf16.msra.mxu0 %v2028
      %2462 = vmatpush.bf16.msra.mxu0 %v2020
      %2463 = vmatpush.bf16.msra.mxu0 %v2012
      %2464 = vmatpush.bf16.msra.mxu0 %v2004
      %2465 = vmatpush.bf16.msra.mxu0 %v1996
      %2466 = vmatmul.bf16.gmra.mxu0 %v887
      %v2467 = vpop.f32.mrf.mxu0
      %v2468 = vadd.f32 %v2454, %v2467
      %v2469 = vpop.f32.mrf.mxu0
      %v2470 = vadd.f32 %v2456, %v2469
      %2471 = vdwg.mxu0
      %2472 = vmatpush.bf16.msra.mxu0 %v2116
      %2473 = vmatpush.bf16.msra.mxu0 %v2108
      %2474 = vmatpush.bf16.msra.mxu0 %v2100
      %2475 = vmatpush.bf16.msra.mxu0 %v2092
      %2476 = vmatpush.bf16.msra.mxu0 %v2084
      %2477 = vmatpush.bf16.msra.mxu0 %v2076
      %2478 = vmatpush.bf16.msra.mxu0 %v2068
      %2479 = vmatpush.bf16.msra.mxu0 %v2060
      %2480 = vmatmul.bf16.gmra.mxu0 %v888
      %v2481 = vpop.f32.mrf.mxu0
      %v2482 = vadd.f32 %v2468, %v2481
      %v2483 = vpop.f32.mrf.mxu0
      %v2484 = vadd.f32 %v2470, %v2483
      %2485 = vdwg.mxu0
      %2486 = vmatpush.bf16.msra.mxu0 %v2180
      %2487 = vmatpush.bf16.msra.mxu0 %v2172
      %2488 = vmatpush.bf16.msra.mxu0 %v2164
      %2489 = vmatpush.bf16.msra.mxu0 %v2156
      %2490 = vmatpush.bf16.msra.mxu0 %v2148
      %2491 = vmatpush.bf16.msra.mxu0 %v2140
      %2492 = vmatpush.bf16.msra.mxu0 %v2132
      %2493 = vmatpush.bf16.msra.mxu0 %v2124
      %2494 = vmatmul.bf16.gmra.mxu0 %v889
      %v2495 = vpop.f32.mrf.mxu0
      %v2496 = vadd.f32 %v2482, %v2495
      %v2497 = vpop.f32.mrf.mxu0
      %v2498 = vadd.f32 %v2484, %v2497
      %2499 = vdwg.mxu0
      %2500 = vmatpush.bf16.msra.mxu0 %v1989
      %2501 = vmatpush.bf16.msra.mxu0 %v1981
      %2502 = vmatpush.bf16.msra.mxu0 %v1973
      %2503 = vmatpush.bf16.msra.mxu0 %v1965
      %2504 = vmatpush.bf16.msra.mxu0 %v1957
      %2505 = vmatpush.bf16.msra.mxu0 %v1949
      %2506 = vmatpush.bf16.msra.mxu0 %v1941
      %2507 = vmatpush.bf16.msra.mxu0 %v1933
      %2508 = vmatmul.bf16.gmra.mxu0 %v886
      %v2509 = vpop.f32.mrf.mxu0
      %v2510 = vadd.f32 %v1149, %v2509
      %v2511 = vpop.f32.mrf.mxu0
      %v2512 = vadd.f32 %v1149, %v2511
      %2513 = vdwg.mxu0
      %2514 = vmatpush.bf16.msra.mxu0 %v2053
      %2515 = vmatpush.bf16.msra.mxu0 %v2045
      %2516 = vmatpush.bf16.msra.mxu0 %v2037
      %2517 = vmatpush.bf16.msra.mxu0 %v2029
      %2518 = vmatpush.bf16.msra.mxu0 %v2021
      %2519 = vmatpush.bf16.msra.mxu0 %v2013
      %2520 = vmatpush.bf16.msra.mxu0 %v2005
      %2521 = vmatpush.bf16.msra.mxu0 %v1997
      %2522 = vmatmul.bf16.gmra.mxu0 %v887
      %v2523 = vpop.f32.mrf.mxu0
      %v2524 = vadd.f32 %v2510, %v2523
      %v2525 = vpop.f32.mrf.mxu0
      %v2526 = vadd.f32 %v2512, %v2525
      %2527 = vdwg.mxu0
      %2528 = vmatpush.bf16.msra.mxu0 %v2117
      %2529 = vmatpush.bf16.msra.mxu0 %v2109
      %2530 = vmatpush.bf16.msra.mxu0 %v2101
      %2531 = vmatpush.bf16.msra.mxu0 %v2093
      %2532 = vmatpush.bf16.msra.mxu0 %v2085
      %2533 = vmatpush.bf16.msra.mxu0 %v2077
      %2534 = vmatpush.bf16.msra.mxu0 %v2069
      %2535 = vmatpush.bf16.msra.mxu0 %v2061
      %2536 = vmatmul.bf16.gmra.mxu0 %v888
      %v2537 = vpop.f32.mrf.mxu0
      %v2538 = vadd.f32 %v2524, %v2537
      %v2539 = vpop.f32.mrf.mxu0
      %v2540 = vadd.f32 %v2526, %v2539
      %2541 = vdwg.mxu0
      %2542 = vmatpush.bf16.msra.mxu0 %v2181
      %2543 = vmatpush.bf16.msra.mxu0 %v2173
      %2544 = vmatpush.bf16.msra.mxu0 %v2165
      %2545 = vmatpush.bf16.msra.mxu0 %v2157
      %2546 = vmatpush.bf16.msra.mxu0 %v2149
      %2547 = vmatpush.bf16.msra.mxu0 %v2141
      %2548 = vmatpush.bf16.msra.mxu0 %v2133
      %2549 = vmatpush.bf16.msra.mxu0 %v2125
      %2550 = vmatmul.bf16.gmra.mxu0 %v889
      %v2551 = vpop.f32.mrf.mxu0
      %v2552 = vadd.f32 %v2538, %v2551
      %v2553 = vpop.f32.mrf.mxu0
      %v2554 = vadd.f32 %v2540, %v2553
      %2555 = vdwg.mxu0
      %2556 = vmatpush.bf16.msra.mxu0 %v1990
      %2557 = vmatpush.bf16.msra.mxu0 %v1982
      %2558 = vmatpush.bf16.msra.mxu0 %v1974
      %2559 = vmatpush.bf16.msra.mxu0 %v1966
      %2560 = vmatpush.bf16.msra.mxu0 %v1958
      %2561 = vmatpush.bf16.msra.mxu0 %v1950
      %2562 = vmatpush.bf16.msra.mxu0 %v1942
      %2563 = vmatpush.bf16.msra.mxu0 %v1934
      %2564 = vmatmul.bf16.gmra.mxu0 %v886
      %v2565 = vpop.f32.mrf.mxu0
      %v2566 = vadd.f32 %v1150, %v2565
      %v2567 = vpop.f32.mrf.mxu0
      %v2568 = vadd.f32 %v1150, %v2567
      %2569 = vdwg.mxu0
      %2570 = vmatpush.bf16.msra.mxu0 %v2054
      %2571 = vmatpush.bf16.msra.mxu0 %v2046
      %2572 = vmatpush.bf16.msra.mxu0 %v2038
      %2573 = vmatpush.bf16.msra.mxu0 %v2030
      %2574 = vmatpush.bf16.msra.mxu0 %v2022
      %2575 = vmatpush.bf16.msra.mxu0 %v2014
      %2576 = vmatpush.bf16.msra.mxu0 %v2006
      %2577 = vmatpush.bf16.msra.mxu0 %v1998
      %2578 = vmatmul.bf16.gmra.mxu0 %v887
      %v2579 = vpop.f32.mrf.mxu0
      %v2580 = vadd.f32 %v2566, %v2579
      %v2581 = vpop.f32.mrf.mxu0
      %v2582 = vadd.f32 %v2568, %v2581
      %2583 = vdwg.mxu0
      %2584 = vmatpush.bf16.msra.mxu0 %v2118
      %2585 = vmatpush.bf16.msra.mxu0 %v2110
      %2586 = vmatpush.bf16.msra.mxu0 %v2102
      %2587 = vmatpush.bf16.msra.mxu0 %v2094
      %2588 = vmatpush.bf16.msra.mxu0 %v2086
      %2589 = vmatpush.bf16.msra.mxu0 %v2078
      %2590 = vmatpush.bf16.msra.mxu0 %v2070
      %2591 = vmatpush.bf16.msra.mxu0 %v2062
      %2592 = vmatmul.bf16.gmra.mxu0 %v888
      %v2593 = vpop.f32.mrf.mxu0
      %v2594 = vadd.f32 %v2580, %v2593
      %v2595 = vpop.f32.mrf.mxu0
      %v2596 = vadd.f32 %v2582, %v2595
      %2597 = vdwg.mxu0
      %2598 = vmatpush.bf16.msra.mxu0 %v2182
      %2599 = vmatpush.bf16.msra.mxu0 %v2174
      %2600 = vmatpush.bf16.msra.mxu0 %v2166
      %2601 = vmatpush.bf16.msra.mxu0 %v2158
      %2602 = vmatpush.bf16.msra.mxu0 %v2150
      %2603 = vmatpush.bf16.msra.mxu0 %v2142
      %2604 = vmatpush.bf16.msra.mxu0 %v2134
      %2605 = vmatpush.bf16.msra.mxu0 %v2126
      %2606 = vmatmul.bf16.gmra.mxu0 %v889
      %v2607 = vpop.f32.mrf.mxu0
      %v2608 = vadd.f32 %v2594, %v2607
      %v2609 = vpop.f32.mrf.mxu0
      %v2610 = vadd.f32 %v2596, %v2609
      %2611 = vdwg.mxu0
      %2612 = vmatpush.bf16.msra.mxu0 %v1991
      %2613 = vmatpush.bf16.msra.mxu0 %v1983
      %2614 = vmatpush.bf16.msra.mxu0 %v1975
      %2615 = vmatpush.bf16.msra.mxu0 %v1967
      %2616 = vmatpush.bf16.msra.mxu0 %v1959
      %2617 = vmatpush.bf16.msra.mxu0 %v1951
      %2618 = vmatpush.bf16.msra.mxu0 %v1943
      %2619 = vmatpush.bf16.msra.mxu0 %v1935
      %2620 = vmatmul.bf16.gmra.mxu0 %v886
      %v2621 = vpop.f32.mrf.mxu0
      %v2622 = vadd.f32 %v1151, %v2621
      %v2623 = vpop.f32.mrf.mxu0
      %v2624 = vadd.f32 %v1151, %v2623
      %2625 = vdwg.mxu0
      %2626 = vmatpush.bf16.msra.mxu0 %v2055
      %2627 = vmatpush.bf16.msra.mxu0 %v2047
      %2628 = vmatpush.bf16.msra.mxu0 %v2039
      %2629 = vmatpush.bf16.msra.mxu0 %v2031
      %2630 = vmatpush.bf16.msra.mxu0 %v2023
      %2631 = vmatpush.bf16.msra.mxu0 %v2015
      %2632 = vmatpush.bf16.msra.mxu0 %v2007
      %2633 = vmatpush.bf16.msra.mxu0 %v1999
      %2634 = vmatmul.bf16.gmra.mxu0 %v887
      %v2635 = vpop.f32.mrf.mxu0
      %v2636 = vadd.f32 %v2622, %v2635
      %v2637 = vpop.f32.mrf.mxu0
      %v2638 = vadd.f32 %v2624, %v2637
      %2639 = vdwg.mxu0
      %2640 = vmatpush.bf16.msra.mxu0 %v2119
      %2641 = vmatpush.bf16.msra.mxu0 %v2111
      %2642 = vmatpush.bf16.msra.mxu0 %v2103
      %2643 = vmatpush.bf16.msra.mxu0 %v2095
      %2644 = vmatpush.bf16.msra.mxu0 %v2087
      %2645 = vmatpush.bf16.msra.mxu0 %v2079
      %2646 = vmatpush.bf16.msra.mxu0 %v2071
      %2647 = vmatpush.bf16.msra.mxu0 %v2063
      %2648 = vmatmul.bf16.gmra.mxu0 %v888
      %v2649 = vpop.f32.mrf.mxu0
      %v2650 = vadd.f32 %v2636, %v2649
      %v2651 = vpop.f32.mrf.mxu0
      %v2652 = vadd.f32 %v2638, %v2651
      %2653 = vdwg.mxu0
      %2654 = vmatpush.bf16.msra.mxu0 %v2183
      %2655 = vmatpush.bf16.msra.mxu0 %v2175
      %2656 = vmatpush.bf16.msra.mxu0 %v2167
      %2657 = vmatpush.bf16.msra.mxu0 %v2159
      %2658 = vmatpush.bf16.msra.mxu0 %v2151
      %2659 = vmatpush.bf16.msra.mxu0 %v2143
      %2660 = vmatpush.bf16.msra.mxu0 %v2135
      %2661 = vmatpush.bf16.msra.mxu0 %v2127
      %2662 = vmatmul.bf16.gmra.mxu0 %v889
      %v2663 = vpop.f32.mrf.mxu0
      %v2664 = vadd.f32 %v2650, %v2663
      %v2665 = vpop.f32.mrf.mxu0
      %v2666 = vadd.f32 %v2652, %v2665
      %2667 = vdwg.mxu0
      %2668 = vmatpush.bf16.msra.mxu0 %v1992
      %2669 = vmatpush.bf16.msra.mxu0 %v1984
      %2670 = vmatpush.bf16.msra.mxu0 %v1976
      %2671 = vmatpush.bf16.msra.mxu0 %v1968
      %2672 = vmatpush.bf16.msra.mxu0 %v1960
      %2673 = vmatpush.bf16.msra.mxu0 %v1952
      %2674 = vmatpush.bf16.msra.mxu0 %v1944
      %2675 = vmatpush.bf16.msra.mxu0 %v1936
      %2676 = vmatmul.bf16.gmra.mxu0 %v886
      %v2677 = vpop.f32.mrf.mxu0
      %v2678 = vadd.f32 %v1152, %v2677
      %v2679 = vpop.f32.mrf.mxu0
      %v2680 = vadd.f32 %v1152, %v2679
      %2681 = vdwg.mxu0
      %2682 = vmatpush.bf16.msra.mxu0 %v2056
      %2683 = vmatpush.bf16.msra.mxu0 %v2048
      %2684 = vmatpush.bf16.msra.mxu0 %v2040
      %2685 = vmatpush.bf16.msra.mxu0 %v2032
      %2686 = vmatpush.bf16.msra.mxu0 %v2024
      %2687 = vmatpush.bf16.msra.mxu0 %v2016
      %2688 = vmatpush.bf16.msra.mxu0 %v2008
      %2689 = vmatpush.bf16.msra.mxu0 %v2000
      %2690 = vmatmul.bf16.gmra.mxu0 %v887
      %v2691 = vpop.f32.mrf.mxu0
      %v2692 = vadd.f32 %v2678, %v2691
      %v2693 = vpop.f32.mrf.mxu0
      %v2694 = vadd.f32 %v2680, %v2693
      %2695 = vdwg.mxu0
      %2696 = vmatpush.bf16.msra.mxu0 %v2120
      %2697 = vmatpush.bf16.msra.mxu0 %v2112
      %2698 = vmatpush.bf16.msra.mxu0 %v2104
      %2699 = vmatpush.bf16.msra.mxu0 %v2096
      %2700 = vmatpush.bf16.msra.mxu0 %v2088
      %2701 = vmatpush.bf16.msra.mxu0 %v2080
      %2702 = vmatpush.bf16.msra.mxu0 %v2072
      %2703 = vmatpush.bf16.msra.mxu0 %v2064
      %2704 = vmatmul.bf16.gmra.mxu0 %v888
      %v2705 = vpop.f32.mrf.mxu0
      %v2706 = vadd.f32 %v2692, %v2705
      %v2707 = vpop.f32.mrf.mxu0
      %v2708 = vadd.f32 %v2694, %v2707
      %2709 = vdwg.mxu0
      %2710 = vmatpush.bf16.msra.mxu0 %v2184
      %2711 = vmatpush.bf16.msra.mxu0 %v2176
      %2712 = vmatpush.bf16.msra.mxu0 %v2168
      %2713 = vmatpush.bf16.msra.mxu0 %v2160
      %2714 = vmatpush.bf16.msra.mxu0 %v2152
      %2715 = vmatpush.bf16.msra.mxu0 %v2144
      %2716 = vmatpush.bf16.msra.mxu0 %v2136
      %2717 = vmatpush.bf16.msra.mxu0 %v2128
      %2718 = vmatmul.bf16.gmra.mxu0 %v889
      %v2719 = vpop.f32.mrf.mxu0
      %v2720 = vadd.f32 %v2706, %v2719
      %v2721 = vpop.f32.mrf.mxu0
      %v2722 = vadd.f32 %v2708, %v2721
      %2723 = vdwg.mxu0
      %2724 = vmatpush.bf16.msra.mxu0 %v1993
      %2725 = vmatpush.bf16.msra.mxu0 %v1985
      %2726 = vmatpush.bf16.msra.mxu0 %v1977
      %2727 = vmatpush.bf16.msra.mxu0 %v1969
      %2728 = vmatpush.bf16.msra.mxu0 %v1961
      %2729 = vmatpush.bf16.msra.mxu0 %v1953
      %2730 = vmatpush.bf16.msra.mxu0 %v1945
      %2731 = vmatpush.bf16.msra.mxu0 %v1937
      %2732 = vmatmul.bf16.gmra.mxu0 %v886
      %v2733 = vpop.f32.mrf.mxu0
      %v2734 = vadd.f32 %v1153, %v2733
      %v2735 = vpop.f32.mrf.mxu0
      %v2736 = vadd.f32 %v1153, %v2735
      %2737 = vdwg.mxu0
      %2738 = vmatpush.bf16.msra.mxu0 %v2057
      %2739 = vmatpush.bf16.msra.mxu0 %v2049
      %2740 = vmatpush.bf16.msra.mxu0 %v2041
      %2741 = vmatpush.bf16.msra.mxu0 %v2033
      %2742 = vmatpush.bf16.msra.mxu0 %v2025
      %2743 = vmatpush.bf16.msra.mxu0 %v2017
      %2744 = vmatpush.bf16.msra.mxu0 %v2009
      %2745 = vmatpush.bf16.msra.mxu0 %v2001
      %2746 = vmatmul.bf16.gmra.mxu0 %v887
      %v2747 = vpop.f32.mrf.mxu0
      %v2748 = vadd.f32 %v2734, %v2747
      %v2749 = vpop.f32.mrf.mxu0
      %v2750 = vadd.f32 %v2736, %v2749
      %2751 = vdwg.mxu0
      %2752 = vmatpush.bf16.msra.mxu0 %v2121
      %2753 = vmatpush.bf16.msra.mxu0 %v2113
      %2754 = vmatpush.bf16.msra.mxu0 %v2105
      %2755 = vmatpush.bf16.msra.mxu0 %v2097
      %2756 = vmatpush.bf16.msra.mxu0 %v2089
      %2757 = vmatpush.bf16.msra.mxu0 %v2081
      %2758 = vmatpush.bf16.msra.mxu0 %v2073
      %2759 = vmatpush.bf16.msra.mxu0 %v2065
      %2760 = vmatmul.bf16.gmra.mxu0 %v888
      %v2761 = vpop.f32.mrf.mxu0
      %v2762 = vadd.f32 %v2748, %v2761
      %v2763 = vpop.f32.mrf.mxu0
      %v2764 = vadd.f32 %v2750, %v2763
      %2765 = vdwg.mxu0
      %2766 = vmatpush.bf16.msra.mxu0 %v2185
      %2767 = vmatpush.bf16.msra.mxu0 %v2177
      %2768 = vmatpush.bf16.msra.mxu0 %v2169
      %2769 = vmatpush.bf16.msra.mxu0 %v2161
      %2770 = vmatpush.bf16.msra.mxu0 %v2153
      %2771 = vmatpush.bf16.msra.mxu0 %v2145
      %2772 = vmatpush.bf16.msra.mxu0 %v2137
      %2773 = vmatpush.bf16.msra.mxu0 %v2129
      %2774 = vmatmul.bf16.gmra.mxu0 %v889
      %v2775 = vpop.f32.mrf.mxu0
      %v2776 = vadd.f32 %v2762, %v2775
      %v2777 = vpop.f32.mrf.mxu0
      %v2778 = vadd.f32 %v2764, %v2777
      %2779 = vdwg.mxu0
      %2780 = vmatpush.bf16.msra.mxu0 %v1994
      %2781 = vmatpush.bf16.msra.mxu0 %v1986
      %2782 = vmatpush.bf16.msra.mxu0 %v1978
      %2783 = vmatpush.bf16.msra.mxu0 %v1970
      %2784 = vmatpush.bf16.msra.mxu0 %v1962
      %2785 = vmatpush.bf16.msra.mxu0 %v1954
      %2786 = vmatpush.bf16.msra.mxu0 %v1946
      %2787 = vmatpush.bf16.msra.mxu0 %v1938
      %2788 = vmatmul.bf16.gmra.mxu0 %v886
      %v2789 = vpop.f32.mrf.mxu0
      %v2790 = vadd.f32 %v1154, %v2789
      %v2791 = vpop.f32.mrf.mxu0
      %v2792 = vadd.f32 %v1154, %v2791
      %2793 = vdwg.mxu0
      %2794 = vmatpush.bf16.msra.mxu0 %v2058
      %2795 = vmatpush.bf16.msra.mxu0 %v2050
      %2796 = vmatpush.bf16.msra.mxu0 %v2042
      %2797 = vmatpush.bf16.msra.mxu0 %v2034
      %2798 = vmatpush.bf16.msra.mxu0 %v2026
      %2799 = vmatpush.bf16.msra.mxu0 %v2018
      %2800 = vmatpush.bf16.msra.mxu0 %v2010
      %2801 = vmatpush.bf16.msra.mxu0 %v2002
      %2802 = vmatmul.bf16.gmra.mxu0 %v887
      %v2803 = vpop.f32.mrf.mxu0
      %v2804 = vadd.f32 %v2790, %v2803
      %v2805 = vpop.f32.mrf.mxu0
      %v2806 = vadd.f32 %v2792, %v2805
      %2807 = vdwg.mxu0
      %2808 = vmatpush.bf16.msra.mxu0 %v2122
      %2809 = vmatpush.bf16.msra.mxu0 %v2114
      %2810 = vmatpush.bf16.msra.mxu0 %v2106
      %2811 = vmatpush.bf16.msra.mxu0 %v2098
      %2812 = vmatpush.bf16.msra.mxu0 %v2090
      %2813 = vmatpush.bf16.msra.mxu0 %v2082
      %2814 = vmatpush.bf16.msra.mxu0 %v2074
      %2815 = vmatpush.bf16.msra.mxu0 %v2066
      %2816 = vmatmul.bf16.gmra.mxu0 %v888
      %v2817 = vpop.f32.mrf.mxu0
      %v2818 = vadd.f32 %v2804, %v2817
      %v2819 = vpop.f32.mrf.mxu0
      %v2820 = vadd.f32 %v2806, %v2819
      %2821 = vdwg.mxu0
      %2822 = vmatpush.bf16.msra.mxu0 %v2186
      %2823 = vmatpush.bf16.msra.mxu0 %v2178
      %2824 = vmatpush.bf16.msra.mxu0 %v2170
      %2825 = vmatpush.bf16.msra.mxu0 %v2162
      %2826 = vmatpush.bf16.msra.mxu0 %v2154
      %2827 = vmatpush.bf16.msra.mxu0 %v2146
      %2828 = vmatpush.bf16.msra.mxu0 %v2138
      %2829 = vmatpush.bf16.msra.mxu0 %v2130
      %2830 = vmatmul.bf16.gmra.mxu0 %v889
      %v2831 = vpop.f32.mrf.mxu0
      %v2832 = vadd.f32 %v2818, %v2831
      %v2833 = vpop.f32.mrf.mxu0
      %v2834 = vadd.f32 %v2820, %v2833
      %2835 = vdwg.mxu0
      %2836 = vmatpush.bf16.msra.mxu0 %v1995
      %2837 = vmatpush.bf16.msra.mxu0 %v1987
      %2838 = vmatpush.bf16.msra.mxu0 %v1979
      %2839 = vmatpush.bf16.msra.mxu0 %v1971
      %2840 = vmatpush.bf16.msra.mxu0 %v1963
      %2841 = vmatpush.bf16.msra.mxu0 %v1955
      %2842 = vmatpush.bf16.msra.mxu0 %v1947
      %2843 = vmatpush.bf16.msra.mxu0 %v1939
      %2844 = vmatmul.bf16.gmra.mxu0 %v886
      %v2845 = vpop.f32.mrf.mxu0
      %v2846 = vadd.f32 %v1155, %v2845
      %v2847 = vpop.f32.mrf.mxu0
      %v2848 = vadd.f32 %v1155, %v2847
      %2849 = vdwg.mxu0
      %2850 = vmatpush.bf16.msra.mxu0 %v2059
      %2851 = vmatpush.bf16.msra.mxu0 %v2051
      %2852 = vmatpush.bf16.msra.mxu0 %v2043
      %2853 = vmatpush.bf16.msra.mxu0 %v2035
      %2854 = vmatpush.bf16.msra.mxu0 %v2027
      %2855 = vmatpush.bf16.msra.mxu0 %v2019
      %2856 = vmatpush.bf16.msra.mxu0 %v2011
      %2857 = vmatpush.bf16.msra.mxu0 %v2003
      %2858 = vmatmul.bf16.gmra.mxu0 %v887
      %v2859 = vpop.f32.mrf.mxu0
      %v2860 = vadd.f32 %v2846, %v2859
      %v2861 = vpop.f32.mrf.mxu0
      %v2862 = vadd.f32 %v2848, %v2861
      %2863 = vdwg.mxu0
      %2864 = vmatpush.bf16.msra.mxu0 %v2123
      %2865 = vmatpush.bf16.msra.mxu0 %v2115
      %2866 = vmatpush.bf16.msra.mxu0 %v2107
      %2867 = vmatpush.bf16.msra.mxu0 %v2099
      %2868 = vmatpush.bf16.msra.mxu0 %v2091
      %2869 = vmatpush.bf16.msra.mxu0 %v2083
      %2870 = vmatpush.bf16.msra.mxu0 %v2075
      %2871 = vmatpush.bf16.msra.mxu0 %v2067
      %2872 = vmatmul.bf16.gmra.mxu0 %v888
      %v2873 = vpop.f32.mrf.mxu0
      %v2874 = vadd.f32 %v2860, %v2873
      %v2875 = vpop.f32.mrf.mxu0
      %v2876 = vadd.f32 %v2862, %v2875
      %2877 = vdwg.mxu0
      %2878 = vmatpush.bf16.msra.mxu0 %v2187
      %2879 = vmatpush.bf16.msra.mxu0 %v2179
      %2880 = vmatpush.bf16.msra.mxu0 %v2171
      %2881 = vmatpush.bf16.msra.mxu0 %v2163
      %2882 = vmatpush.bf16.msra.mxu0 %v2155
      %2883 = vmatpush.bf16.msra.mxu0 %v2147
      %2884 = vmatpush.bf16.msra.mxu0 %v2139
      %2885 = vmatpush.bf16.msra.mxu0 %v2131
      %2886 = vmatmul.bf16.gmra.mxu0 %v889
      %v2887 = vpop.f32.mrf.mxu0
      %v2888 = vadd.f32 %v2874, %v2887
      %v2889 = vpop.f32.mrf.mxu0
      %v2890 = vadd.f32 %v2876, %v2889
      %2891 = vdwg.mxu0
      %v2892 = vmul.f32 %v2496, 0.2
      %v2893 = vmul.f32 %v2552, 0.2
      %v2894 = vmul.f32 %v2608, 0.2
      %v2895 = vmul.f32 %v2664, 0.2
      %v2896 = vmul.f32 %v2720, 0.2
      %v2897 = vmul.f32 %v2776, 0.2
      %v2898 = vmul.f32 %v2832, 0.2
      %v2899 = vmul.f32 %v2888, 0.2
      %v2900 = vmul.f32 %v2498, 0.2
      %v2901 = vmul.f32 %v2554, 0.2
      %v2902 = vmul.f32 %v2610, 0.2
      %v2903 = vmul.f32 %v2666, 0.2
      %v2904 = vmul.f32 %v2722, 0.2
      %v2905 = vmul.f32 %v2778, 0.2
      %v2906 = vmul.f32 %v2834, 0.2
      %v2907 = vmul.f32 %v2890, 0.2
      %v2908 = vmax.f32 %v2496, %v2892
      %v2909 = vmax.f32 %v2552, %v2893
      %v2910 = vmax.f32 %v2608, %v2894
      %v2911 = vmax.f32 %v2664, %v2895
      %v2912 = vmax.f32 %v2720, %v2896
      %v2913 = vmax.f32 %v2776, %v2897
      %v2914 = vmax.f32 %v2832, %v2898
      %v2915 = vmax.f32 %v2888, %v2899
      %v2916 = vmax.f32 %v2498, %v2900
      %v2917 = vmax.f32 %v2554, %v2901
      %v2918 = vmax.f32 %v2610, %v2902
      %v2919 = vmax.f32 %v2666, %v2903
      %v2920 = vmax.f32 %v2722, %v2904
      %v2921 = vmax.f32 %v2778, %v2905
      %v2922 = vmax.f32 %v2834, %v2906
      %v2923 = vmax.f32 %v2890, %v2907
      %2924 = vst [vmem:[#allocation2] sm:$0xff] %v2908
      %2925 = vst [vmem:[#allocation2 + $0x8] sm:$0xff] %v2909
      %2926 = vst [vmem:[#allocation2 + $0x10] sm:$0xff] %v2910
      %2927 = vst [vmem:[#allocation2 + $0x18] sm:$0xff] %v2911
      %2928 = vst [vmem:[#allocation2 + $0x20] sm:$0xff] %v2912
      %2929 = vst [vmem:[#allocation2 + $0x28] sm:$0xff] %v2913
      %2930 = vst [vmem:[#allocation2 + $0x30] sm:$0xff] %v2914
      %2931 = vst [vmem:[#allocation2 + $0x38] sm:$0xff] %v2915
      %2932 = vst [vmem:[#allocation2 + $0x40] sm:$0xff] %v2916
      %2933 = vst [vmem:[#allocation2 + $0x48] sm:$0xff] %v2917
      %2934 = vst [vmem:[#allocation2 + $0x50] sm:$0xff] %v2918
      %2935 = vst [vmem:[#allocation2 + $0x58] sm:$0xff] %v2919
      %2936 = vst [vmem:[#allocation2 + $0x60] sm:$0xff] %v2920
      %2937 = vst [vmem:[#allocation2 + $0x68] sm:$0xff] %v2921
      %2938 = vst [vmem:[#allocation2 + $0x70] sm:$0xff] %v2922
      %2939 = vst [vmem:[#allocation2 + $0x78] sm:$0xff] %v2923
    $region85: #{tpu_custom_call.1} parent=1 // pred_fallthru
      _
    %v2940 = vld [vmem:[#allocation2] sm:$0xff]
    %v2941 = vld [vmem:[#allocation2 + $0x8] sm:$0xff]
    %v2942 = vld [vmem:[#allocation2 + $0x10] sm:$0xff]
    %v2943 = vld [vmem:[#allocation2 + $0x18] sm:$0xff]
    %v2944 = vld [vmem:[#allocation2 + $0x20] sm:$0xff]
    %v2945 = vld [vmem:[#allocation2 + $0x28] sm:$0xff]
    %v2946 = vld [vmem:[#allocation2 + $0x30] sm:$0xff]
    %v2947 = vld [vmem:[#allocation2 + $0x38] sm:$0xff]
    %v2948 = vld [vmem:[#allocation2 + $0x40] sm:$0xff]
    %v2949 = vld [vmem:[#allocation2 + $0x48] sm:$0xff]
    %v2950 = vld [vmem:[#allocation2 + $0x50] sm:$0xff]
    %v2951 = vld [vmem:[#allocation2 + $0x58] sm:$0xff]
    %v2952 = vld [vmem:[#allocation2 + $0x60] sm:$0xff]
    %v2953 = vld [vmem:[#allocation2 + $0x68] sm:$0xff]
    %v2954 = vld [vmem:[#allocation2 + $0x70] sm:$0xff]
    %v2955 = vld [vmem:[#allocation2 + $0x78] sm:$0xff]
    %v2956 = vpack.c.bf16 %v2948, %v2940
    %v2957 = vpack.c.bf16 %v2949, %v2941
    %v2958 = vpack.c.bf16 %v2950, %v2942
    %v2959 = vpack.c.bf16 %v2951, %v2943
    %v2960 = vpack.c.bf16 %v2952, %v2944
    %v2961 = vpack.c.bf16 %v2953, %v2945
    %v2962 = vpack.c.bf16 %v2954, %v2946
    %v2963 = vpack.c.bf16 %v2955, %v2947
    %v2964 = vld [vmem:[#allocation17] sm:$0xff]
    %v2965 = vld [vmem:[#allocation17 + $0x8] sm:$0xff]
    %v2966 = vld [vmem:[#allocation17 + $0x10] sm:$0xff]
    %v2967 = vld [vmem:[#allocation17 + $0x18] sm:$0xff]
    %v2968 = vld [vmem:[#allocation17 + $0x20] sm:$0xff]
    %v2969 = vld [vmem:[#allocation17 + $0x28] sm:$0xff]
    %v2970 = vld [vmem:[#allocation17 + $0x30] sm:$0xff]
    %v2971 = vld [vmem:[#allocation17 + $0x38] sm:$0xff]
    %v2972 = vld [vmem:[#allocation17 + $0x40] sm:$0xff]
    %v2973 = vld [vmem:[#allocation17 + $0x48] sm:$0xff]
    %v2974 = vld [vmem:[#allocation17 + $0x50] sm:$0xff]
    %v2975 = vld [vmem:[#allocation17 + $0x58] sm:$0xff]
    %v2976 = vld [vmem:[#allocation17 + $0x60] sm:$0xff]
    %v2977 = vld [vmem:[#allocation17 + $0x68] sm:$0xff]
    %v2978 = vld [vmem:[#allocation17 + $0x70] sm:$0xff]
    %v2979 = vld [vmem:[#allocation17 + $0x78] sm:$0xff]
    %v2980 = vld [vmem:[#allocation17 + $0x80] sm:$0xff]
    %v2981 = vld [vmem:[#allocation17 + $0x88] sm:$0xff]
    %v2982 = vld [vmem:[#allocation17 + $0x90] sm:$0xff]
    %v2983 = vld [vmem:[#allocation17 + $0x98] sm:$0xff]
    %v2984 = vld [vmem:[#allocation17 + $0xa0] sm:$0xff]
    %v2985 = vld [vmem:[#allocation17 + $0xa8] sm:$0xff]
    %v2986 = vld [vmem:[#allocation17 + $0xb0] sm:$0xff]
    %v2987 = vld [vmem:[#allocation17 + $0xb8] sm:$0xff]
    %v2988 = vld [vmem:[#allocation17 + $0xc0] sm:$0xff]
    %v2989 = vld [vmem:[#allocation17 + $0xc8] sm:$0xff]
    %v2990 = vld [vmem:[#allocation17 + $0xd0] sm:$0xff]
    %v2991 = vld [vmem:[#allocation17 + $0xd8] sm:$0xff]
    %v2992 = vld [vmem:[#allocation17 + $0xe0] sm:$0xff]
    %v2993 = vld [vmem:[#allocation17 + $0xe8] sm:$0xff]
    %v2994 = vld [vmem:[#allocation17 + $0xf0] sm:$0xff]
    %v2995 = vld [vmem:[#allocation17 + $0xf8] sm:$0xff]
    %v2996 = vld [vmem:[#allocation17 + $0x100] sm:$0xff]
    %v2997 = vld [vmem:[#allocation17 + $0x108] sm:$0xff]
    %v2998 = vld [vmem:[#allocation17 + $0x110] sm:$0xff]
    %v2999 = vld [vmem:[#allocation17 + $0x118] sm:$0xff]
    %v3000 = vld [vmem:[#allocation17 + $0x120] sm:$0xff]
    %v3001 = vld [vmem:[#allocation17 + $0x128] sm:$0xff]
    %v3002 = vld [vmem:[#allocation17 + $0x130] sm:$0xff]
    %v3003 = vld [vmem:[#allocation17 + $0x138] sm:$0xff]
    %v3004 = vld [vmem:[#allocation17 + $0x140] sm:$0xff]
    %v3005 = vld [vmem:[#allocation17 + $0x148] sm:$0xff]
    %v3006 = vld [vmem:[#allocation17 + $0x150] sm:$0xff]
    %v3007 = vld [vmem:[#allocation17 + $0x158] sm:$0xff]
    %v3008 = vld [vmem:[#allocation17 + $0x160] sm:$0xff]
    %v3009 = vld [vmem:[#allocation17 + $0x168] sm:$0xff]
    %v3010 = vld [vmem:[#allocation17 + $0x170] sm:$0xff]
    %v3011 = vld [vmem:[#allocation17 + $0x178] sm:$0xff]
    %v3012 = vld [vmem:[#allocation17 + $0x180] sm:$0xff]
    %v3013 = vld [vmem:[#allocation17 + $0x188] sm:$0xff]
    %v3014 = vld [vmem:[#allocation17 + $0x190] sm:$0xff]
    %v3015 = vld [vmem:[#allocation17 + $0x198] sm:$0xff]
    %v3016 = vld [vmem:[#allocation17 + $0x1a0] sm:$0xff]
    %v3017 = vld [vmem:[#allocation17 + $0x1a8] sm:$0xff]
    %v3018 = vld [vmem:[#allocation17 + $0x1b0] sm:$0xff]
    %v3019 = vld [vmem:[#allocation17 + $0x1b8] sm:$0xff]
    %v3020 = vld [vmem:[#allocation17 + $0x1c0] sm:$0xff]
    %v3021 = vld [vmem:[#allocation17 + $0x1c8] sm:$0xff]
    %v3022 = vld [vmem:[#allocation17 + $0x1d0] sm:$0xff]
    %v3023 = vld [vmem:[#allocation17 + $0x1d8] sm:$0xff]
    %v3024 = vld [vmem:[#allocation17 + $0x1e0] sm:$0xff]
    %v3025 = vld [vmem:[#allocation17 + $0x1e8] sm:$0xff]
    %v3026 = vld [vmem:[#allocation17 + $0x1f0] sm:$0xff]
    %v3027 = vld [vmem:[#allocation17 + $0x1f8] sm:$0xff]
    %v3028 = vld [vmem:[#allocation17 + $0x200] sm:$0xff]
    %v3029 = vld [vmem:[#allocation17 + $0x208] sm:$0xff]
    %v3030 = vld [vmem:[#allocation17 + $0x210] sm:$0xff]
    %v3031 = vld [vmem:[#allocation17 + $0x218] sm:$0xff]
    %v3032 = vld [vmem:[#allocation17 + $0x220] sm:$0xff]
    %v3033 = vld [vmem:[#allocation17 + $0x228] sm:$0xff]
    %v3034 = vld [vmem:[#allocation17 + $0x230] sm:$0xff]
    %v3035 = vld [vmem:[#allocation17 + $0x238] sm:$0xff]
    %v3036 = vld [vmem:[#allocation17 + $0x240] sm:$0xff]
    %v3037 = vld [vmem:[#allocation17 + $0x248] sm:$0xff]
    %v3038 = vld [vmem:[#allocation17 + $0x250] sm:$0xff]
    %v3039 = vld [vmem:[#allocation17 + $0x258] sm:$0xff]
    %v3040 = vld [vmem:[#allocation17 + $0x260] sm:$0xff]
    %v3041 = vld [vmem:[#allocation17 + $0x268] sm:$0xff]
    %v3042 = vld [vmem:[#allocation17 + $0x270] sm:$0xff]
    %v3043 = vld [vmem:[#allocation17 + $0x278] sm:$0xff]
    %v3044 = vld [vmem:[#allocation17 + $0x280] sm:$0xff]
    %v3045 = vld [vmem:[#allocation17 + $0x288] sm:$0xff]
    %v3046 = vld [vmem:[#allocation17 + $0x290] sm:$0xff]
    %v3047 = vld [vmem:[#allocation17 + $0x298] sm:$0xff]
    %v3048 = vld [vmem:[#allocation17 + $0x2a0] sm:$0xff]
    %v3049 = vld [vmem:[#allocation17 + $0x2a8] sm:$0xff]
    %v3050 = vld [vmem:[#allocation17 + $0x2b0] sm:$0xff]
    %v3051 = vld [vmem:[#allocation17 + $0x2b8] sm:$0xff]
    %v3052 = vld [vmem:[#allocation17 + $0x2c0] sm:$0xff]
    %v3053 = vld [vmem:[#allocation17 + $0x2c8] sm:$0xff]
    %v3054 = vld [vmem:[#allocation17 + $0x2d0] sm:$0xff]
    %v3055 = vld [vmem:[#allocation17 + $0x2d8] sm:$0xff]
    %v3056 = vld [vmem:[#allocation17 + $0x2e0] sm:$0xff]
    %v3057 = vld [vmem:[#allocation17 + $0x2e8] sm:$0xff]
    %v3058 = vld [vmem:[#allocation17 + $0x2f0] sm:$0xff]
    %v3059 = vld [vmem:[#allocation17 + $0x2f8] sm:$0xff]
    %v3060 = vld [vmem:[#allocation17 + $0x300] sm:$0xff]
    %v3061 = vld [vmem:[#allocation17 + $0x308] sm:$0xff]
    %v3062 = vld [vmem:[#allocation17 + $0x310] sm:$0xff]
    %v3063 = vld [vmem:[#allocation17 + $0x318] sm:$0xff]
    %v3064 = vld [vmem:[#allocation17 + $0x320] sm:$0xff]
    %v3065 = vld [vmem:[#allocation17 + $0x328] sm:$0xff]
    %v3066 = vld [vmem:[#allocation17 + $0x330] sm:$0xff]
    %v3067 = vld [vmem:[#allocation17 + $0x338] sm:$0xff]
    %v3068 = vld [vmem:[#allocation17 + $0x340] sm:$0xff]
    %v3069 = vld [vmem:[#allocation17 + $0x348] sm:$0xff]
    %v3070 = vld [vmem:[#allocation17 + $0x350] sm:$0xff]
    %v3071 = vld [vmem:[#allocation17 + $0x358] sm:$0xff]
    %v3072 = vld [vmem:[#allocation17 + $0x360] sm:$0xff]
    %v3073 = vld [vmem:[#allocation17 + $0x368] sm:$0xff]
    %v3074 = vld [vmem:[#allocation17 + $0x370] sm:$0xff]
    %v3075 = vld [vmem:[#allocation17 + $0x378] sm:$0xff]
    %v3076 = vld [vmem:[#allocation17 + $0x380] sm:$0xff]
    %v3077 = vld [vmem:[#allocation17 + $0x388] sm:$0xff]
    %v3078 = vld [vmem:[#allocation17 + $0x390] sm:$0xff]
    %v3079 = vld [vmem:[#allocation17 + $0x398] sm:$0xff]
    %v3080 = vld [vmem:[#allocation17 + $0x3a0] sm:$0xff]
    %v3081 = vld [vmem:[#allocation17 + $0x3a8] sm:$0xff]
    %v3082 = vld [vmem:[#allocation17 + $0x3b0] sm:$0xff]
    %v3083 = vld [vmem:[#allocation17 + $0x3b8] sm:$0xff]
    %v3084 = vld [vmem:[#allocation17 + $0x3c0] sm:$0xff]
    %v3085 = vld [vmem:[#allocation17 + $0x3c8] sm:$0xff]
    %v3086 = vld [vmem:[#allocation17 + $0x3d0] sm:$0xff]
    %v3087 = vld [vmem:[#allocation17 + $0x3d8] sm:$0xff]
    %v3088 = vld [vmem:[#allocation17 + $0x3e0] sm:$0xff]
    %v3089 = vld [vmem:[#allocation17 + $0x3e8] sm:$0xff]
    %v3090 = vld [vmem:[#allocation17 + $0x3f0] sm:$0xff]
    %v3091 = vld [vmem:[#allocation17 + $0x3f8] sm:$0xff]
    %v3092 = vld [vmem:[%s10] sm:$0x3]
    %v3094 = vperm.slane %v3092, 0
    %v3095 = vperm.slane %v3092, 1
    %v3226 = vunpack.c.l.b16 %v2964
    %v3227 = vunpack.c.h.b16 %v2964
    %v3228 = vunpack.c.l.b16 %v2965
    %v3229 = vunpack.c.h.b16 %v2965
    %v3230 = vunpack.c.l.b16 %v2966
    %v3231 = vunpack.c.h.b16 %v2966
    %v3232 = vunpack.c.l.b16 %v2967
    %v3233 = vunpack.c.h.b16 %v2967
    %v3234 = vunpack.c.l.b16 %v2968
    %v3235 = vunpack.c.h.b16 %v2968
    %v3236 = vunpack.c.l.b16 %v2969
    %v3237 = vunpack.c.h.b16 %v2969
    %v3238 = vunpack.c.l.b16 %v2970
    %v3239 = vunpack.c.h.b16 %v2970
    %v3240 = vunpack.c.l.b16 %v2971
    %v3241 = vunpack.c.h.b16 %v2971
    %v3242 = vunpack.c.l.b16 %v2972
    %v3243 = vunpack.c.h.b16 %v2972
    %v3244 = vunpack.c.l.b16 %v2973
    %v3245 = vunpack.c.h.b16 %v2973
    %v3246 = vunpack.c.l.b16 %v2974
    %v3247 = vunpack.c.h.b16 %v2974
    %v3248 = vunpack.c.l.b16 %v2975
    %v3249 = vunpack.c.h.b16 %v2975
    %v3250 = vunpack.c.l.b16 %v2976
    %v3251 = vunpack.c.h.b16 %v2976
    %v3252 = vunpack.c.l.b16 %v2977
    %v3253 = vunpack.c.h.b16 %v2977
    %v3254 = vunpack.c.l.b16 %v2978
    %v3255 = vunpack.c.h.b16 %v2978
    %v3256 = vunpack.c.l.b16 %v2979
    %v3257 = vunpack.c.h.b16 %v2979
    %v3258 = vunpack.c.l.b16 %v2980
    %v3259 = vunpack.c.h.b16 %v2980
    %v3260 = vunpack.c.l.b16 %v2981
    %v3261 = vunpack.c.h.b16 %v2981
    %v3262 = vunpack.c.l.b16 %v2982
    %v3263 = vunpack.c.h.b16 %v2982
    %v3264 = vunpack.c.l.b16 %v2983
    %v3265 = vunpack.c.h.b16 %v2983
    %v3266 = vunpack.c.l.b16 %v2984
    %v3267 = vunpack.c.h.b16 %v2984
    %v3268 = vunpack.c.l.b16 %v2985
    %v3269 = vunpack.c.h.b16 %v2985
    %v3270 = vunpack.c.l.b16 %v2986
    %v3271 = vunpack.c.h.b16 %v2986
    %v3272 = vunpack.c.l.b16 %v2987
    %v3273 = vunpack.c.h.b16 %v2987
    %v3274 = vunpack.c.l.b16 %v2988
    %v3275 = vunpack.c.h.b16 %v2988
    %v3276 = vunpack.c.l.b16 %v2989
    %v3277 = vunpack.c.h.b16 %v2989
    %v3278 = vunpack.c.l.b16 %v2990
    %v3279 = vunpack.c.h.b16 %v2990
    %v3280 = vunpack.c.l.b16 %v2991
    %v3281 = vunpack.c.h.b16 %v2991
    %v3282 = vunpack.c.l.b16 %v2992
    %v3283 = vunpack.c.h.b16 %v2992
    %v3284 = vunpack.c.l.b16 %v2993
    %v3285 = vunpack.c.h.b16 %v2993
    %v3286 = vunpack.c.l.b16 %v2994
    %v3287 = vunpack.c.h.b16 %v2994
    %v3288 = vunpack.c.l.b16 %v2995
    %v3289 = vunpack.c.h.b16 %v2995
    %v3290 = vunpack.c.l.b16 %v2996
    %v3291 = vunpack.c.h.b16 %v2996
    %v3292 = vunpack.c.l.b16 %v2997
    %v3293 = vunpack.c.h.b16 %v2997
    %v3294 = vunpack.c.l.b16 %v2998
    %v3295 = vunpack.c.h.b16 %v2998
    %v3296 = vunpack.c.l.b16 %v2999
    %v3297 = vunpack.c.h.b16 %v2999
    %v3298 = vunpack.c.l.b16 %v3000
    %v3299 = vunpack.c.h.b16 %v3000
    %v3300 = vunpack.c.l.b16 %v3001
    %v3301 = vunpack.c.h.b16 %v3001
    %v3302 = vunpack.c.l.b16 %v3002
    %v3303 = vunpack.c.h.b16 %v3002
    %v3304 = vunpack.c.l.b16 %v3003
    %v3305 = vunpack.c.h.b16 %v3003
    %v3306 = vunpack.c.l.b16 %v3004
    %v3307 = vunpack.c.h.b16 %v3004
    %v3308 = vunpack.c.l.b16 %v3005
    %v3309 = vunpack.c.h.b16 %v3005
    %v3310 = vunpack.c.l.b16 %v3006
    %v3311 = vunpack.c.h.b16 %v3006
    %v3312 = vunpack.c.l.b16 %v3007
    %v3313 = vunpack.c.h.b16 %v3007
    %v3314 = vunpack.c.l.b16 %v3008
    %v3315 = vunpack.c.h.b16 %v3008
    %v3316 = vunpack.c.l.b16 %v3009
    %v3317 = vunpack.c.h.b16 %v3009
    %v3318 = vunpack.c.l.b16 %v3010
    %v3319 = vunpack.c.h.b16 %v3010
    %v3320 = vunpack.c.l.b16 %v3011
    %v3321 = vunpack.c.h.b16 %v3011
    %v3322 = vunpack.c.l.b16 %v3012
    %v3323 = vunpack.c.h.b16 %v3012
    %v3324 = vunpack.c.l.b16 %v3013
    %v3325 = vunpack.c.h.b16 %v3013
    %v3326 = vunpack.c.l.b16 %v3014
    %v3327 = vunpack.c.h.b16 %v3014
    %v3328 = vunpack.c.l.b16 %v3015
    %v3329 = vunpack.c.h.b16 %v3015
    %v3330 = vunpack.c.l.b16 %v3016
    %v3331 = vunpack.c.h.b16 %v3016
    %v3332 = vunpack.c.l.b16 %v3017
    %v3333 = vunpack.c.h.b16 %v3017
    %v3334 = vunpack.c.l.b16 %v3018
    %v3335 = vunpack.c.h.b16 %v3018
    %v3336 = vunpack.c.l.b16 %v3019
    %v3337 = vunpack.c.h.b16 %v3019
    %v3338 = vunpack.c.l.b16 %v3020
    %v3339 = vunpack.c.h.b16 %v3020
    %v3340 = vunpack.c.l.b16 %v3021
    %v3341 = vunpack.c.h.b16 %v3021
    %v3342 = vunpack.c.l.b16 %v3022
    %v3343 = vunpack.c.h.b16 %v3022
    %v3344 = vunpack.c.l.b16 %v3023
    %v3345 = vunpack.c.h.b16 %v3023
    %v3346 = vunpack.c.l.b16 %v3024
    %v3347 = vunpack.c.h.b16 %v3024
    %v3348 = vunpack.c.l.b16 %v3025
    %v3349 = vunpack.c.h.b16 %v3025
    %v3350 = vunpack.c.l.b16 %v3026
    %v3351 = vunpack.c.h.b16 %v3026
    %v3352 = vunpack.c.l.b16 %v3027
    %v3353 = vunpack.c.h.b16 %v3027
    %v3354 = vunpack.c.l.b16 %v3028
    %v3355 = vunpack.c.h.b16 %v3028
    %v3356 = vunpack.c.l.b16 %v3029
    %v3357 = vunpack.c.h.b16 %v3029
    %v3358 = vunpack.c.l.b16 %v3030
    %v3359 = vunpack.c.h.b16 %v3030
    %v3360 = vunpack.c.l.b16 %v3031
    %v3361 = vunpack.c.h.b16 %v3031
    %v3362 = vunpack.c.l.b16 %v3032
    %v3363 = vunpack.c.h.b16 %v3032
    %v3364 = vunpack.c.l.b16 %v3033
    %v3365 = vunpack.c.h.b16 %v3033
    %v3366 = vunpack.c.l.b16 %v3034
    %v3367 = vunpack.c.h.b16 %v3034
    %v3368 = vunpack.c.l.b16 %v3035
    %v3369 = vunpack.c.h.b16 %v3035
    %v3370 = vunpack.c.l.b16 %v3036
    %v3371 = vunpack.c.h.b16 %v3036
    %v3372 = vunpack.c.l.b16 %v3037
    %v3373 = vunpack.c.h.b16 %v3037
    %v3374 = vunpack.c.l.b16 %v3038
    %v3375 = vunpack.c.h.b16 %v3038
    %v3376 = vunpack.c.l.b16 %v3039
    %v3377 = vunpack.c.h.b16 %v3039
    %v3378 = vunpack.c.l.b16 %v3040
    %v3379 = vunpack.c.h.b16 %v3040
    %v3380 = vunpack.c.l.b16 %v3041
    %v3381 = vunpack.c.h.b16 %v3041
    %v3382 = vunpack.c.l.b16 %v3042
    %v3383 = vunpack.c.h.b16 %v3042
    %v3384 = vunpack.c.l.b16 %v3043
    %v3385 = vunpack.c.h.b16 %v3043
    %v3386 = vunpack.c.l.b16 %v3044
    %v3387 = vunpack.c.h.b16 %v3044
    %v3388 = vunpack.c.l.b16 %v3045
    %v3389 = vunpack.c.h.b16 %v3045
    %v3390 = vunpack.c.l.b16 %v3046
    %v3391 = vunpack.c.h.b16 %v3046
    %v3392 = vunpack.c.l.b16 %v3047
    %v3393 = vunpack.c.h.b16 %v3047
    %v3394 = vunpack.c.l.b16 %v3048
    %v3395 = vunpack.c.h.b16 %v3048
    %v3396 = vunpack.c.l.b16 %v3049
    %v3397 = vunpack.c.h.b16 %v3049
    %v3398 = vunpack.c.l.b16 %v3050
    %v3399 = vunpack.c.h.b16 %v3050
    %v3400 = vunpack.c.l.b16 %v3051
    %v3401 = vunpack.c.h.b16 %v3051
    %v3402 = vunpack.c.l.b16 %v3052
    %v3403 = vunpack.c.h.b16 %v3052
    %v3404 = vunpack.c.l.b16 %v3053
    %v3405 = vunpack.c.h.b16 %v3053
    %v3406 = vunpack.c.l.b16 %v3054
    %v3407 = vunpack.c.h.b16 %v3054
    %v3408 = vunpack.c.l.b16 %v3055
    %v3409 = vunpack.c.h.b16 %v3055
    %v3410 = vunpack.c.l.b16 %v3056
    %v3411 = vunpack.c.h.b16 %v3056
    %v3412 = vunpack.c.l.b16 %v3057
    %v3413 = vunpack.c.h.b16 %v3057
    %v3414 = vunpack.c.l.b16 %v3058
    %v3415 = vunpack.c.h.b16 %v3058
    %v3416 = vunpack.c.l.b16 %v3059
    %v3417 = vunpack.c.h.b16 %v3059
    %v3418 = vunpack.c.l.b16 %v3060
    %v3419 = vunpack.c.h.b16 %v3060
    %v3420 = vunpack.c.l.b16 %v3061
    %v3421 = vunpack.c.h.b16 %v3061
    %v3422 = vunpack.c.l.b16 %v3062
    %v3423 = vunpack.c.h.b16 %v3062
    %v3424 = vunpack.c.l.b16 %v3063
    %v3425 = vunpack.c.h.b16 %v3063
    %v3426 = vunpack.c.l.b16 %v3064
    %v3427 = vunpack.c.h.b16 %v3064
    %v3428 = vunpack.c.l.b16 %v3065
    %v3429 = vunpack.c.h.b16 %v3065
    %v3430 = vunpack.c.l.b16 %v3066
    %v3431 = vunpack.c.h.b16 %v3066
    %v3432 = vunpack.c.l.b16 %v3067
    %v3433 = vunpack.c.h.b16 %v3067
    %v3434 = vunpack.c.l.b16 %v3068
    %v3435 = vunpack.c.h.b16 %v3068
    %v3436 = vunpack.c.l.b16 %v3069
    %v3437 = vunpack.c.h.b16 %v3069
    %v3438 = vunpack.c.l.b16 %v3070
    %v3439 = vunpack.c.h.b16 %v3070
    %v3440 = vunpack.c.l.b16 %v3071
    %v3441 = vunpack.c.h.b16 %v3071
    %v3442 = vunpack.c.l.b16 %v3072
    %v3443 = vunpack.c.h.b16 %v3072
    %v3444 = vunpack.c.l.b16 %v3073
    %v3445 = vunpack.c.h.b16 %v3073
    %v3446 = vunpack.c.l.b16 %v3074
    %v3447 = vunpack.c.h.b16 %v3074
    %v3448 = vunpack.c.l.b16 %v3075
    %v3449 = vunpack.c.h.b16 %v3075
    %v3450 = vunpack.c.l.b16 %v3076
    %v3451 = vunpack.c.h.b16 %v3076
    %v3452 = vunpack.c.l.b16 %v3077
    %v3453 = vunpack.c.h.b16 %v3077
    %v3454 = vunpack.c.l.b16 %v3078
    %v3455 = vunpack.c.h.b16 %v3078
    %v3456 = vunpack.c.l.b16 %v3079
    %v3457 = vunpack.c.h.b16 %v3079
    %v3458 = vunpack.c.l.b16 %v3080
    %v3459 = vunpack.c.h.b16 %v3080
    %v3460 = vunpack.c.l.b16 %v3081
    %v3461 = vunpack.c.h.b16 %v3081
    %v3462 = vunpack.c.l.b16 %v3082
    %v3463 = vunpack.c.h.b16 %v3082
    %v3464 = vunpack.c.l.b16 %v3083
    %v3465 = vunpack.c.h.b16 %v3083
    %v3466 = vunpack.c.l.b16 %v3084
    %v3467 = vunpack.c.h.b16 %v3084
    %v3468 = vunpack.c.l.b16 %v3085
    %v3469 = vunpack.c.h.b16 %v3085
    %v3470 = vunpack.c.l.b16 %v3086
    %v3471 = vunpack.c.h.b16 %v3086
    %v3472 = vunpack.c.l.b16 %v3087
    %v3473 = vunpack.c.h.b16 %v3087
    %v3474 = vunpack.c.l.b16 %v3088
    %v3475 = vunpack.c.h.b16 %v3088
    %v3476 = vunpack.c.l.b16 %v3089
    %v3477 = vunpack.c.h.b16 %v3089
    %v3478 = vunpack.c.l.b16 %v3090
    %v3479 = vunpack.c.h.b16 %v3090
    %v3480 = vunpack.c.l.b16 %v3091
    %v3481 = vunpack.c.h.b16 %v3091
    %v3482 = vpack.c.b16 %v3228, %v3226
    %v3483 = vpack.c.b16 %v3229, %v3227
    %v3484 = vpack.c.b16 %v3232, %v3230
    %v3485 = vpack.c.b16 %v3233, %v3231
    %v3486 = vpack.c.b16 %v3236, %v3234
    %v3487 = vpack.c.b16 %v3237, %v3235
    %v3488 = vpack.c.b16 %v3240, %v3238
    %v3489 = vpack.c.b16 %v3241, %v3239
    %v3490 = vpack.c.b16 %v3244, %v3242
    %v3491 = vpack.c.b16 %v3245, %v3243
    %v3492 = vpack.c.b16 %v3248, %v3246
    %v3493 = vpack.c.b16 %v3249, %v3247
    %v3494 = vpack.c.b16 %v3252, %v3250
    %v3495 = vpack.c.b16 %v3253, %v3251
    %v3496 = vpack.c.b16 %v3256, %v3254
    %v3497 = vpack.c.b16 %v3257, %v3255
    %v3498 = vpack.c.b16 %v3260, %v3258
    %v3499 = vpack.c.b16 %v3261, %v3259
    %v3500 = vpack.c.b16 %v3264, %v3262
    %v3501 = vpack.c.b16 %v3265, %v3263
    %v3502 = vpack.c.b16 %v3268, %v3266
    %v3503 = vpack.c.b16 %v3269, %v3267
    %v3504 = vpack.c.b16 %v3272, %v3270
    %v3505 = vpack.c.b16 %v3273, %v3271
    %v3506 = vpack.c.b16 %v3276, %v3274
    %v3507 = vpack.c.b16 %v3277, %v3275
    %v3508 = vpack.c.b16 %v3280, %v3278
    %v3509 = vpack.c.b16 %v3281, %v3279
    %v3510 = vpack.c.b16 %v3284, %v3282
    %v3511 = vpack.c.b16 %v3285, %v3283
    %v3512 = vpack.c.b16 %v3288, %v3286
    %v3513 = vpack.c.b16 %v3289, %v3287
    %v3514 = vpack.c.b16 %v3292, %v3290
    %v3515 = vpack.c.b16 %v3293, %v3291
    %v3516 = vpack.c.b16 %v3296, %v3294
    %v3517 = vpack.c.b16 %v3297, %v3295
    %v3518 = vpack.c.b16 %v3300, %v3298
    %v3519 = vpack.c.b16 %v3301, %v3299
    %v3520 = vpack.c.b16 %v3304, %v3302
    %v3521 = vpack.c.b16 %v3305, %v3303
    %v3522 = vpack.c.b16 %v3308, %v3306
    %v3523 = vpack.c.b16 %v3309, %v3307
    %v3524 = vpack.c.b16 %v3312, %v3310
    %v3525 = vpack.c.b16 %v3313, %v3311
    %v3526 = vpack.c.b16 %v3316, %v3314
    %v3527 = vpack.c.b16 %v3317, %v3315
    %v3528 = vpack.c.b16 %v3320, %v3318
    %v3529 = vpack.c.b16 %v3321, %v3319
    %v3530 = vpack.c.b16 %v3324, %v3322
    %v3531 = vpack.c.b16 %v3325, %v3323
    %v3532 = vpack.c.b16 %v3328, %v3326
    %v3533 = vpack.c.b16 %v3329, %v3327
    %v3534 = vpack.c.b16 %v3332, %v3330
    %v3535 = vpack.c.b16 %v3333, %v3331
    %v3536 = vpack.c.b16 %v3336, %v3334
    %v3537 = vpack.c.b16 %v3337, %v3335
    %v3538 = vpack.c.b16 %v3340, %v3338
    %v3539 = vpack.c.b16 %v3341, %v3339
    %v3540 = vpack.c.b16 %v3344, %v3342
    %v3541 = vpack.c.b16 %v3345, %v3343
    %v3542 = vpack.c.b16 %v3348, %v3346
    %v3543 = vpack.c.b16 %v3349, %v3347
    %v3544 = vpack.c.b16 %v3352, %v3350
    %v3545 = vpack.c.b16 %v3353, %v3351
    %v3546 = vpack.c.b16 %v3356, %v3354
    %v3547 = vpack.c.b16 %v3357, %v3355
    %v3548 = vpack.c.b16 %v3360, %v3358
    %v3549 = vpack.c.b16 %v3361, %v3359
    %v3550 = vpack.c.b16 %v3364, %v3362
    %v3551 = vpack.c.b16 %v3365, %v3363
    %v3552 = vpack.c.b16 %v3368, %v3366
    %v3553 = vpack.c.b16 %v3369, %v3367
    %v3554 = vpack.c.b16 %v3372, %v3370
    %v3555 = vpack.c.b16 %v3373, %v3371
    %v3556 = vpack.c.b16 %v3376, %v3374
    %v3557 = vpack.c.b16 %v3377, %v3375
    %v3558 = vpack.c.b16 %v3380, %v3378
    %v3559 = vpack.c.b16 %v3381, %v3379
    %v3560 = vpack.c.b16 %v3384, %v3382
    %v3561 = vpack.c.b16 %v3385, %v3383
    %v3562 = vpack.c.b16 %v3388, %v3386
    %v3563 = vpack.c.b16 %v3389, %v3387
    %v3564 = vpack.c.b16 %v3392, %v3390
    %v3565 = vpack.c.b16 %v3393, %v3391
    %v3566 = vpack.c.b16 %v3396, %v3394
    %v3567 = vpack.c.b16 %v3397, %v3395
    %v3568 = vpack.c.b16 %v3400, %v3398
    %v3569 = vpack.c.b16 %v3401, %v3399
    %v3570 = vpack.c.b16 %v3404, %v3402
    %v3571 = vpack.c.b16 %v3405, %v3403
    %v3572 = vpack.c.b16 %v3408, %v3406
    %v3573 = vpack.c.b16 %v3409, %v3407
    %v3574 = vpack.c.b16 %v3412, %v3410
    %v3575 = vpack.c.b16 %v3413, %v3411
    %v3576 = vpack.c.b16 %v3416, %v3414
    %v3577 = vpack.c.b16 %v3417, %v3415
    %v3578 = vpack.c.b16 %v3420, %v3418
    %v3579 = vpack.c.b16 %v3421, %v3419
    %v3580 = vpack.c.b16 %v3424, %v3422
    %v3581 = vpack.c.b16 %v3425, %v3423
    %v3582 = vpack.c.b16 %v3428, %v3426
    %v3583 = vpack.c.b16 %v3429, %v3427
    %v3584 = vpack.c.b16 %v3432, %v3430
    %v3585 = vpack.c.b16 %v3433, %v3431
    %v3586 = vpack.c.b16 %v3436, %v3434
    %v3587 = vpack.c.b16 %v3437, %v3435
    %v3588 = vpack.c.b16 %v3440, %v3438
    %v3589 = vpack.c.b16 %v3441, %v3439
    %v3590 = vpack.c.b16 %v3444, %v3442
    %v3591 = vpack.c.b16 %v3445, %v3443
    %v3592 = vpack.c.b16 %v3448, %v3446
    %v3593 = vpack.c.b16 %v3449, %v3447
    %v3594 = vpack.c.b16 %v3452, %v3450
    %v3595 = vpack.c.b16 %v3453, %v3451
    %v3596 = vpack.c.b16 %v3456, %v3454
    %v3597 = vpack.c.b16 %v3457, %v3455
    %v3598 = vpack.c.b16 %v3460, %v3458
    %v3599 = vpack.c.b16 %v3461, %v3459
    %v3600 = vpack.c.b16 %v3464, %v3462
    %v3601 = vpack.c.b16 %v3465, %v3463
    %v3602 = vpack.c.b16 %v3468, %v3466
    %v3603 = vpack.c.b16 %v3469, %v3467
    %v3604 = vpack.c.b16 %v3472, %v3470
    %v3605 = vpack.c.b16 %v3473, %v3471
    %v3606 = vpack.c.b16 %v3476, %v3474
    %v3607 = vpack.c.b16 %v3477, %v3475
    %v3608 = vpack.c.b16 %v3480, %v3478
    %v3609 = vpack.c.b16 %v3481, %v3479
    %3738 = vmatpush.bf16.msra.mxu0 %v3496
    %3739 = vmatpush.bf16.msra.mxu0 %v3494
    %3740 = vmatpush.bf16.msra.mxu0 %v3492
    %3741 = vmatpush.bf16.msra.mxu0 %v3490
    %3742 = vmatpush.bf16.msra.mxu0 %v3488
    %3743 = vmatpush.bf16.msra.mxu0 %v3486
    %3744 = vmatpush.bf16.msra.mxu0 %v3484
    %3745 = vmatpush.bf16.msra.mxu0 %v3482
    %3746 = vmatmul.bf16.gmra.mxu0 %v2956
    %v3747 = vpop.f32.mrf.mxu0
    %v3748 = vadd.f32 %v3094, %v3747
    %v3749 = vpop.f32.mrf.mxu0
    %v3750 = vadd.f32 %v3094, %v3749
    %3751 = vdwg.mxu0
    %3752 = vmatpush.bf16.msra.mxu0 %v3512
    %3753 = vmatpush.bf16.msra.mxu0 %v3510
    %3754 = vmatpush.bf16.msra.mxu0 %v3508
    %3755 = vmatpush.bf16.msra.mxu0 %v3506
    %3756 = vmatpush.bf16.msra.mxu0 %v3504
    %3757 = vmatpush.bf16.msra.mxu0 %v3502
    %3758 = vmatpush.bf16.msra.mxu0 %v3500
    %3759 = vmatpush.bf16.msra.mxu0 %v3498
    %3760 = vmatmul.bf16.gmra.mxu0 %v2957
    %v3761 = vpop.f32.mrf.mxu0
    %v3762 = vadd.f32 %v3748, %v3761
    %v3763 = vpop.f32.mrf.mxu0
    %v3764 = vadd.f32 %v3750, %v3763
    %3765 = vdwg.mxu0
    %3766 = vmatpush.bf16.msra.mxu0 %v3528
    %3767 = vmatpush.bf16.msra.mxu0 %v3526
    %3768 = vmatpush.bf16.msra.mxu0 %v3524
    %3769 = vmatpush.bf16.msra.mxu0 %v3522
    %3770 = vmatpush.bf16.msra.mxu0 %v3520
    %3771 = vmatpush.bf16.msra.mxu0 %v3518
    %3772 = vmatpush.bf16.msra.mxu0 %v3516
    %3773 = vmatpush.bf16.msra.mxu0 %v3514
    %3774 = vmatmul.bf16.gmra.mxu0 %v2958
    %v3775 = vpop.f32.mrf.mxu0
    %v3776 = vadd.f32 %v3762, %v3775
    %v3777 = vpop.f32.mrf.mxu0
    %v3778 = vadd.f32 %v3764, %v3777
    %3779 = vdwg.mxu0
    %3780 = vmatpush.bf16.msra.mxu0 %v3544
    %3781 = vmatpush.bf16.msra.mxu0 %v3542
    %3782 = vmatpush.bf16.msra.mxu0 %v3540
    %3783 = vmatpush.bf16.msra.mxu0 %v3538
    %3784 = vmatpush.bf16.msra.mxu0 %v3536
    %3785 = vmatpush.bf16.msra.mxu0 %v3534
    %3786 = vmatpush.bf16.msra.mxu0 %v3532
    %3787 = vmatpush.bf16.msra.mxu0 %v3530
    %3788 = vmatmul.bf16.gmra.mxu0 %v2959
    %v3789 = vpop.f32.mrf.mxu0
    %v3790 = vadd.f32 %v3776, %v3789
    %v3791 = vpop.f32.mrf.mxu0
    %v3792 = vadd.f32 %v3778, %v3791
    %3793 = vdwg.mxu0
    %3794 = vmatpush.bf16.msra.mxu0 %v3560
    %3795 = vmatpush.bf16.msra.mxu0 %v3558
    %3796 = vmatpush.bf16.msra.mxu0 %v3556
    %3797 = vmatpush.bf16.msra.mxu0 %v3554
    %3798 = vmatpush.bf16.msra.mxu0 %v3552
    %3799 = vmatpush.bf16.msra.mxu0 %v3550
    %3800 = vmatpush.bf16.msra.mxu0 %v3548
    %3801 = vmatpush.bf16.msra.mxu0 %v3546
    %3802 = vmatmul.bf16.gmra.mxu0 %v2960
    %v3803 = vpop.f32.mrf.mxu0
    %v3804 = vadd.f32 %v3790, %v3803
    %v3805 = vpop.f32.mrf.mxu0
    %v3806 = vadd.f32 %v3792, %v3805
    %3807 = vdwg.mxu0
    %3808 = vmatpush.bf16.msra.mxu0 %v3576
    %3809 = vmatpush.bf16.msra.mxu0 %v3574
    %3810 = vmatpush.bf16.msra.mxu0 %v3572
    %3811 = vmatpush.bf16.msra.mxu0 %v3570
    %3812 = vmatpush.bf16.msra.mxu0 %v3568
    %3813 = vmatpush.bf16.msra.mxu0 %v3566
    %3814 = vmatpush.bf16.msra.mxu0 %v3564
    %3815 = vmatpush.bf16.msra.mxu0 %v3562
    %3816 = vmatmul.bf16.gmra.mxu0 %v2961
    %v3817 = vpop.f32.mrf.mxu0
    %v3818 = vadd.f32 %v3804, %v3817
    %v3819 = vpop.f32.mrf.mxu0
    %v3820 = vadd.f32 %v3806, %v3819
    %3821 = vdwg.mxu0
    %3822 = vmatpush.bf16.msra.mxu0 %v3592
    %3823 = vmatpush.bf16.msra.mxu0 %v3590
    %3824 = vmatpush.bf16.msra.mxu0 %v3588
    %3825 = vmatpush.bf16.msra.mxu0 %v3586
    %3826 = vmatpush.bf16.msra.mxu0 %v3584
    %3827 = vmatpush.bf16.msra.mxu0 %v3582
    %3828 = vmatpush.bf16.msra.mxu0 %v3580
    %3829 = vmatpush.bf16.msra.mxu0 %v3578
    %3830 = vmatmul.bf16.gmra.mxu0 %v2962
    %v3831 = vpop.f32.mrf.mxu0
    %v3832 = vadd.f32 %v3818, %v3831
    %v3833 = vpop.f32.mrf.mxu0
    %v3834 = vadd.f32 %v3820, %v3833
    %3835 = vdwg.mxu0
    %3836 = vmatpush.bf16.msra.mxu0 %v3608
    %3837 = vmatpush.bf16.msra.mxu0 %v3606
    %3838 = vmatpush.bf16.msra.mxu0 %v3604
    %3839 = vmatpush.bf16.msra.mxu0 %v3602
    %3840 = vmatpush.bf16.msra.mxu0 %v3600
    %3841 = vmatpush.bf16.msra.mxu0 %v3598
    %3842 = vmatpush.bf16.msra.mxu0 %v3596
    %3843 = vmatpush.bf16.msra.mxu0 %v3594
    %3844 = vmatmul.bf16.gmra.mxu0 %v2963
    %v3845 = vpop.f32.mrf.mxu0
    %v3846 = vadd.f32 %v3832, %v3845
    %v3847 = vpop.f32.mrf.mxu0
    %v3848 = vadd.f32 %v3834, %v3847
    %3849 = vdwg.mxu0
    %3850 = vmatpush.bf16.msra.mxu0 %v3497
    %3851 = vmatpush.bf16.msra.mxu0 %v3495
    %3852 = vmatpush.bf16.msra.mxu0 %v3493
    %3853 = vmatpush.bf16.msra.mxu0 %v3491
    %3854 = vmatpush.bf16.msra.mxu0 %v3489
    %3855 = vmatpush.bf16.msra.mxu0 %v3487
    %3856 = vmatpush.bf16.msra.mxu0 %v3485
    %3857 = vmatpush.bf16.msra.mxu0 %v3483
    %3858 = vmatmul.bf16.gmra.mxu0 %v2956
    %v3859 = vpop.f32.mrf.mxu0
    %v3860 = vadd.f32 %v3095, %v3859
    %v3861 = vpop.f32.mrf.mxu0
    %v3862 = vadd.f32 %v3095, %v3861
    %3863 = vdwg.mxu0
    %3864 = vmatpush.bf16.msra.mxu0 %v3513
    %3865 = vmatpush.bf16.msra.mxu0 %v3511
    %3866 = vmatpush.bf16.msra.mxu0 %v3509
    %3867 = vmatpush.bf16.msra.mxu0 %v3507
    %3868 = vmatpush.bf16.msra.mxu0 %v3505
    %3869 = vmatpush.bf16.msra.mxu0 %v3503
    %3870 = vmatpush.bf16.msra.mxu0 %v3501
    %3871 = vmatpush.bf16.msra.mxu0 %v3499
    %3872 = vmatmul.bf16.gmra.mxu0 %v2957
    %v3873 = vpop.f32.mrf.mxu0
    %v3874 = vadd.f32 %v3860, %v3873
    %v3875 = vpop.f32.mrf.mxu0
    %v3876 = vadd.f32 %v3862, %v3875
    %3877 = vdwg.mxu0
    %3878 = vmatpush.bf16.msra.mxu0 %v3529
    %3879 = vmatpush.bf16.msra.mxu0 %v3527
    %3880 = vmatpush.bf16.msra.mxu0 %v3525
    %3881 = vmatpush.bf16.msra.mxu0 %v3523
    %3882 = vmatpush.bf16.msra.mxu0 %v3521
    %3883 = vmatpush.bf16.msra.mxu0 %v3519
    %3884 = vmatpush.bf16.msra.mxu0 %v3517
    %3885 = vmatpush.bf16.msra.mxu0 %v3515
    %3886 = vmatmul.bf16.gmra.mxu0 %v2958
    %v3887 = vpop.f32.mrf.mxu0
    %v3888 = vadd.f32 %v3874, %v3887
    %v3889 = vpop.f32.mrf.mxu0
    %v3890 = vadd.f32 %v3876, %v3889
    %3891 = vdwg.mxu0
    %3892 = vmatpush.bf16.msra.mxu0 %v3545
    %3893 = vmatpush.bf16.msra.mxu0 %v3543
    %3894 = vmatpush.bf16.msra.mxu0 %v3541
    %3895 = vmatpush.bf16.msra.mxu0 %v3539
    %3896 = vmatpush.bf16.msra.mxu0 %v3537
    %3897 = vmatpush.bf16.msra.mxu0 %v3535
    %3898 = vmatpush.bf16.msra.mxu0 %v3533
    %3899 = vmatpush.bf16.msra.mxu0 %v3531
    %3900 = vmatmul.bf16.gmra.mxu0 %v2959
    %v3901 = vpop.f32.mrf.mxu0
    %v3902 = vadd.f32 %v3888, %v3901
    %v3903 = vpop.f32.mrf.mxu0
    %v3904 = vadd.f32 %v3890, %v3903
    %3905 = vdwg.mxu0
    %3906 = vmatpush.bf16.msra.mxu0 %v3561
    %3907 = vmatpush.bf16.msra.mxu0 %v3559
    %3908 = vmatpush.bf16.msra.mxu0 %v3557
    %3909 = vmatpush.bf16.msra.mxu0 %v3555
    %3910 = vmatpush.bf16.msra.mxu0 %v3553
    %3911 = vmatpush.bf16.msra.mxu0 %v3551
    %3912 = vmatpush.bf16.msra.mxu0 %v3549
    %3913 = vmatpush.bf16.msra.mxu0 %v3547
    %3914 = vmatmul.bf16.gmra.mxu0 %v2960
    %v3915 = vpop.f32.mrf.mxu0
    %v3916 = vadd.f32 %v3902, %v3915
    %v3917 = vpop.f32.mrf.mxu0
    %v3918 = vadd.f32 %v3904, %v3917
    %3919 = vdwg.mxu0
    %3920 = vmatpush.bf16.msra.mxu0 %v3577
    %3921 = vmatpush.bf16.msra.mxu0 %v3575
    %3922 = vmatpush.bf16.msra.mxu0 %v3573
    %3923 = vmatpush.bf16.msra.mxu0 %v3571
    %3924 = vmatpush.bf16.msra.mxu0 %v3569
    %3925 = vmatpush.bf16.msra.mxu0 %v3567
    %3926 = vmatpush.bf16.msra.mxu0 %v3565
    %3927 = vmatpush.bf16.msra.mxu0 %v3563
    %3928 = vmatmul.bf16.gmra.mxu0 %v2961
    %v3929 = vpop.f32.mrf.mxu0
    %v3930 = vadd.f32 %v3916, %v3929
    %v3931 = vpop.f32.mrf.mxu0
    %v3932 = vadd.f32 %v3918, %v3931
    %3933 = vdwg.mxu0
    %3934 = vmatpush.bf16.msra.mxu0 %v3593
    %3935 = vmatpush.bf16.msra.mxu0 %v3591
    %3936 = vmatpush.bf16.msra.mxu0 %v3589
    %3937 = vmatpush.bf16.msra.mxu0 %v3587
    %3938 = vmatpush.bf16.msra.mxu0 %v3585
    %3939 = vmatpush.bf16.msra.mxu0 %v3583
    %3940 = vmatpush.bf16.msra.mxu0 %v3581
    %3941 = vmatpush.bf16.msra.mxu0 %v3579
    %3942 = vmatmul.bf16.gmra.mxu0 %v2962
    %v3943 = vpop.f32.mrf.mxu0
    %v3944 = vadd.f32 %v3930, %v3943
    %v3945 = vpop.f32.mrf.mxu0
    %v3946 = vadd.f32 %v3932, %v3945
    %3947 = vdwg.mxu0
    %3948 = vmatpush.bf16.msra.mxu0 %v3609
    %3949 = vmatpush.bf16.msra.mxu0 %v3607
    %3950 = vmatpush.bf16.msra.mxu0 %v3605
    %3951 = vmatpush.bf16.msra.mxu0 %v3603
    %3952 = vmatpush.bf16.msra.mxu0 %v3601
    %3953 = vmatpush.bf16.msra.mxu0 %v3599
    %3954 = vmatpush.bf16.msra.mxu0 %v3597
    %3955 = vmatpush.bf16.msra.mxu0 %v3595
    %3956 = vmatmul.bf16.gmra.mxu0 %v2963
    %v3957 = vpop.f32.mrf.mxu0
    %v3958 = vadd.f32 %v3944, %v3957
    %v3959 = vpop.f32.mrf.mxu0
    %v3960 = vadd.f32 %v3946, %v3959
    %3961 = vdwg.mxu0
    %v3962 = vtanh.pop %v3846
    %v3963 = vtanh.pop %v3958
    %v3964 = vtanh.pop %v3848
    %v3965 = vtanh.pop %v3960
    %v3966 = vpack.c.bf16 %v3963, %v3962
    %v3967 = vpack.c.bf16 %v3965, %v3964
    %3968 = vst [vmem:[#allocation18] sm:$0xff] %v3966
    %3969 = vst [vmem:[#allocation18 + $0x8] sm:$0xff] %v3967
    // Predicated region
    $region86: #{tpu_custom_call.1} parent=1 // pred_check
      _
    $region87: #{tpu_custom_call.1} parent=1 // pred_check_branch
      %3971 = sbr.rel (0) target = $region89
    $region88: #{tpu_custom_call.1} parent=1 // pred_region
      %3973 = vsyncadd [#allocation5], 0
      %s3974 = sshll.u32 [#allocation18], 4
      %s3975 = int_to_ptr.vmem [resolvable:$true] %s3974
      %s3976 = sshll.u32 %s11, 4
      %s3977 = int_to_ptr.hbm [resolvable:$true] %s3976
      %3982 = dma.vmem_to_hbm [thread:$0]  %s3975, 256, %s3977, [#allocation5], 128, 128, 8
    $region89: #{tpu_custom_call.1} parent=1 // pred_fallthru
      _
    // Predicated region
    $region90: #{tpu_custom_call.1} parent=1 // pred_check
      _
    $region91: #{tpu_custom_call.1} parent=1 // pred_check_branch
      %3984 = sbr.rel (0) target = $region93
    $region92: #{tpu_custom_call.1} parent=1 // pred_region
      %3986 = dma.done [#allocation5], 256
    $region93: #{tpu_custom_call.1} parent=1 // pred_fallthru
      _
    %3987 = vsyncpa [#allocation4], 1
    %3988 = vsyncpa [#allocation7], 1
    %3989 = vsyncpa [#allocation10], 1
    %3990 = vsyncpa [#allocation13], 1
    %3991 = vsyncpa [#allocation16], 1
    %3992 = vsyncpa [#allocation5], 1

</llo_original>
